<compile_context>
chip_gen: v5e
topology: v5e:2x2
jax: 0.10.0
libtpu: 0.0.40
codegen_flags: <defaults>
</compile_context>

<pallas_src>
import functools
import math

import jax
import jax.numpy as jnp
from jax.experimental import pallas as pl
from jax.experimental.pallas import tpu as pltpu

_EPS = 1e-5                         # torch LayerNorm default


def _vmem_limit_bytes():
    # ~96 MiB on v5e/v6e (128 MiB physical), ~48 MiB on v7x (64 MiB physical).
    try:
        cap = pltpu.get_tpu_info().vmem_capacity_bytes
        return min(int(cap * 3 // 4), 100 * 1024 * 1024)
    except Exception:
        return 64 * 1024 * 1024


_VMEM_LIMIT = _vmem_limit_bytes()


def _pick_tile(dim, pref):
    """Row/col (non-contraction) tile: full dim when small, else `pref` (ragged tails OK)."""
    return dim if dim <= pref else pref


def _pick_div(dim, prefs=(512, 256, 128)):
    """Contraction tile: must divide `dim` exactly (padded K-tail garbage would corrupt
    the accumulation); falls back to the full dim."""
    for p in prefs:
        if dim % p == 0:
            return p
    return dim


def _ln_rows(h, g, b):
    """LayerNorm over the last dim, biased variance (matches torch), f32 math."""
    mean = jnp.mean(h, axis=-1, keepdims=True)
    c = h - mean
    var = jnp.mean(c * c, axis=-1, keepdims=True)
    return c * jax.lax.rsqrt(var + _EPS) * g + b


# --------------------------- tiled matmul + bias ----------------------------

def _matmul_bias_kernel(x_ref, w_ref, b_ref, o_ref, acc_ref):
    @pl.when(pl.program_id(2) == 0)
    def _():
        acc_ref[...] = jnp.zeros_like(acc_ref)

    acc_ref[...] += jnp.dot(x_ref[...].astype(jnp.bfloat16), w_ref[...],
                            preferred_element_type=jnp.float32)

    @pl.when(pl.program_id(2) == pl.num_programs(2) - 1)
    def _():
        o_ref[...] = (acc_ref[...] + b_ref[...]).astype(o_ref.dtype)


def matmul_bias(x, w, b, out_dtype=jnp.float32):
    """x:(M,K) @ w:(K,N) bf16 + b:(1,N) -> (M,N) out_dtype, tiled over (M,N,K)."""
    M, K = x.shape
    N = w.shape[1]
    tm, tn, tk = _pick_tile(M, 512), _pick_tile(N, 512), _pick_div(K)
    grid = (pl.cdiv(M, tm), pl.cdiv(N, tn), pl.cdiv(K, tk))
    cost = pl.CostEstimate(
        flops=2 * M * N * K, transcendentals=0,
        bytes_accessed=(x.dtype.itemsize * M * K + 2 * K * N + 4 * N
                        + jnp.dtype(out_dtype).itemsize * M * N))
    return pl.pallas_call(
        _matmul_bias_kernel,
        out_shape=jax.ShapeDtypeStruct((M, N), out_dtype),
        grid_spec=pltpu.PrefetchScalarGridSpec(
            num_scalar_prefetch=0, grid=grid,
            in_specs=[pl.BlockSpec((tm, tk), lambda i, j, k: (i, k)),
                      pl.BlockSpec((tk, tn), lambda i, j, k: (k, j)),
                      pl.BlockSpec((1, tn), lambda i, j, k: (0, j))],
            out_specs=pl.BlockSpec((tm, tn), lambda i, j, k: (i, j)),
            scratch_shapes=[pltpu.VMEM((tm, tn), jnp.float32)]),
        compiler_params=pltpu.CompilerParams(
            dimension_semantics=("parallel", "parallel", "arbitrary"),
            vmem_limit_bytes=_VMEM_LIMIT),
        cost_estimate=cost,
    )(x, w, b)


# -------------- fused QKV / KV projections (bf16 outputs, no XLA slices) -----

def _qkv_proj_kernel(x_ref, w_ref, b_ref, q_ref, k_ref, v_ref):
    d = q_ref.shape[-1]
    y = jnp.dot(x_ref[...].astype(jnp.bfloat16), w_ref[...],
                preferred_element_type=jnp.float32) + b_ref[...]
    q_ref[...] = y[:, :d].astype(q_ref.dtype)
    k_ref[...] = y[:, d:2 * d].astype(k_ref.dtype)
    v_ref[...] = y[:, 2 * d:].astype(v_ref.dtype)


def qkv_proj(x, w, b):
    """x:(M,D) @ w:(D,3D) + b -> (q, k, v) each (M,D) bf16."""
    M, D = x.shape
    tm = _pick_tile(M, 512)
    out = jax.ShapeDtypeStruct((M, D), jnp.bfloat16)
    cost = pl.CostEstimate(flops=2 * M * D * 3 * D, transcendentals=0,
                           bytes_accessed=4 * M * D + 2 * D * 3 * D + 3 * 2 * M * D)
    return pl.pallas_call(
        _qkv_proj_kernel,
        out_shape=(out, out, out),
        grid_spec=pltpu.PrefetchScalarGridSpec(
            num_scalar_prefetch=0, grid=(pl.cdiv(M, tm),),
            in_specs=[pl.BlockSpec((tm, D), lambda i: (i, 0)),
                      pl.BlockSpec((D, 3 * D), lambda i: (0, 0),
                                   pipeline_mode=pl.Buffered(1)),
                      pl.BlockSpec((1, 3 * D), lambda i: (0, 0))],
            out_specs=(pl.BlockSpec((tm, D), lambda i: (i, 0)),
                       pl.BlockSpec((tm, D), lambda i: (i, 0)),
                       pl.BlockSpec((tm, D), lambda i: (i, 0)))),
        compiler_params=pltpu.CompilerParams(
            dimension_semantics=("parallel",),
            vmem_limit_bytes=_VMEM_LIMIT),
        cost_estimate=cost,
    )(x, w, b)


def _kv_proj_kernel(x_ref, w_ref, b_ref, k_ref, v_ref):
    d = k_ref.shape[-1]
    y = jnp.dot(x_ref[...].astype(jnp.bfloat16), w_ref[...],
                preferred_element_type=jnp.float32) + b_ref[...]
    k_ref[...] = y[:, :d].astype(k_ref.dtype)
    v_ref[...] = y[:, d:].astype(v_ref.dtype)


def kv_proj(x, w, b):
    """x:(M,D) @ w:(D,2D) + b -> (k, v) each (M,D) bf16."""
    M, D = x.shape
    tm = _pick_tile(M, 512)
    out = jax.ShapeDtypeStruct((M, D), jnp.bfloat16)
    cost = pl.CostEstimate(flops=2 * M * D * 2 * D, transcendentals=0,
                           bytes_accessed=4 * M * D + 2 * D * 2 * D + 2 * 2 * M * D)
    return pl.pallas_call(
        _kv_proj_kernel,
        out_shape=(out, out),
        grid_spec=pltpu.PrefetchScalarGridSpec(
            num_scalar_prefetch=0, grid=(pl.cdiv(M, tm),),
            in_specs=[pl.BlockSpec((tm, D), lambda i: (i, 0)),
                      pl.BlockSpec((D, 2 * D), lambda i: (0, 0),
                                   pipeline_mode=pl.Buffered(1)),
                      pl.BlockSpec((1, 2 * D), lambda i: (0, 0))],
            out_specs=(pl.BlockSpec((tm, D), lambda i: (i, 0)),
                       pl.BlockSpec((tm, D), lambda i: (i, 0)))),
        compiler_params=pltpu.CompilerParams(
            dimension_semantics=("parallel",),
            vmem_limit_bytes=_VMEM_LIMIT),
        cost_estimate=cost,
    )(x, w, b)


# ----------------- matmul + bias + residual + LayerNorm (fused) -------------

def _matmul_res_ln_kernel(x_ref, w_ref, b_ref, r_ref, g_ref, be_ref, o_ref):
    y = jnp.dot(x_ref[...].astype(jnp.bfloat16), w_ref[...],
                preferred_element_type=jnp.float32)
    o_ref[...] = _ln_rows(y + b_ref[...] + r_ref[...],
                          g_ref[...], be_ref[...]).astype(o_ref.dtype)


def matmul_res_ln(x, w, b, res, gamma, beta):
    """LayerNorm(res + x @ w + b); N = d_model kept whole per tile (LN needs full rows)."""
    M, K = x.shape
    N = w.shape[1]
    tm = _pick_tile(M, 256)
    cost = pl.CostEstimate(flops=2 * M * K * N, transcendentals=0,
                           bytes_accessed=(x.dtype.itemsize * M * K + 2 * K * N
                                           + 4 * M * N + 4 * M * N))
    return pl.pallas_call(
        _matmul_res_ln_kernel,
        out_shape=jax.ShapeDtypeStruct((M, N), jnp.float32),
        grid_spec=pltpu.PrefetchScalarGridSpec(
            num_scalar_prefetch=0, grid=(pl.cdiv(M, tm),),
            in_specs=[pl.BlockSpec((tm, K), lambda i: (i, 0)),
                      pl.BlockSpec((K, N), lambda i: (0, 0),
                                   pipeline_mode=pl.Buffered(1)),
                      pl.BlockSpec((1, N), lambda i: (0, 0)),
                      pl.BlockSpec((tm, N), lambda i: (i, 0)),
                      pl.BlockSpec((1, N), lambda i: (0, 0)),
                      pl.BlockSpec((1, N), lambda i: (0, 0))],
            out_specs=pl.BlockSpec((tm, N), lambda i: (i, 0))),
        compiler_params=pltpu.CompilerParams(
            dimension_semantics=("parallel",),
            vmem_limit_bytes=_VMEM_LIMIT),
        cost_estimate=cost,
    )(x, w, b, res, gamma, beta)


# ---- fused FFN: linear1 + ReLU + linear2 + residual + LN, d_ff chunked ------

def _ffn_res_ln_kernel(x_ref, w1_ref, b1_ref, w2_ref, b2_ref, g_ref, be_ref,
                       o_ref, acc_ref):
    k = pl.program_id(1)

    @pl.when(k == 0)
    def _():
        acc_ref[...] = jnp.zeros_like(acc_ref)

    x = x_ref[...]                                                     # (tm, D) f32
    h = jnp.dot(x.astype(jnp.bfloat16), w1_ref[...],
                preferred_element_type=jnp.float32)                    # (tm, tdff) in VMEM only
    h = jnp.maximum(h + b1_ref[...], 0.0)
    acc_ref[...] += jnp.dot(h.astype(jnp.bfloat16), w2_ref[...],
                            preferred_element_type=jnp.float32)

    @pl.when(k == pl.num_programs(1) - 1)
    def _():
        o_ref[...] = _ln_rows(acc_ref[...] + b2_ref[...] + x,
                              g_ref[...], be_ref[...]).astype(o_ref.dtype)


def ffn_res_ln(x, w1, b1, w2, b2, gamma, beta):
    """LayerNorm(x + linear2(relu(linear1(x)))), with d_ff chunked on a grid axis so the
    (tm, d_ff) intermediate and w1/w2 tiles stay bounded in VMEM."""
    M, D = x.shape
    dff = w1.shape[1]
    tm = _pick_tile(M, 256)
    tdff = _pick_div(dff, (1024, 512, 256, 128))
    grid = (pl.cdiv(M, tm), dff // tdff)
    cost = pl.CostEstimate(
        flops=4 * M * D * dff, transcendentals=0,
        bytes_accessed=4 * M * D + 2 * D * dff + 2 * dff * D + 4 * M * D)
    return pl.pallas_call(
        _ffn_res_ln_kernel,
        out_shape=jax.ShapeDtypeStruct((M, D), jnp.float32),
        grid_spec=pltpu.PrefetchScalarGridSpec(
            num_scalar_prefetch=0, grid=grid,
            in_specs=[pl.BlockSpec((tm, D), lambda i, k: (i, 0)),
                      pl.BlockSpec((D, tdff), lambda i, k: (0, k)),
                      pl.BlockSpec((1, tdff), lambda i, k: (0, k)),
                      pl.BlockSpec((tdff, D), lambda i, k: (k, 0)),
                      pl.BlockSpec((1, D), lambda i, k: (0, 0)),
                      pl.BlockSpec((1, D), lambda i, k: (0, 0)),
                      pl.BlockSpec((1, D), lambda i, k: (0, 0))],
            out_specs=pl.BlockSpec((tm, D), lambda i, k: (i, 0)),
            scratch_shapes=[pltpu.VMEM((tm, D), jnp.float32)]),
        compiler_params=pltpu.CompilerParams(
            dimension_semantics=("parallel", "arbitrary"),
            vmem_limit_bytes=_VMEM_LIMIT),
        cost_estimate=cost,
    )(x, w1, b1, w2, b2, gamma, beta)


# ----------------------------- standalone LayerNorm -------------------------

def _ln_kernel(x_ref, g_ref, b_ref, o_ref):
    o_ref[...] = _ln_rows(x_ref[...], g_ref[...], b_ref[...])


def layernorm(x, gamma, beta):
    M, D = x.shape
    tm = _pick_tile(M, 512)
    return pl.pallas_call(
        _ln_kernel,
        out_shape=jax.ShapeDtypeStruct((M, D), jnp.float32),
        grid_spec=pltpu.PrefetchScalarGridSpec(
            num_scalar_prefetch=0, grid=(pl.cdiv(M, tm),),
            in_specs=[pl.BlockSpec((tm, D), lambda i: (i, 0)),
                      pl.BlockSpec((1, D), lambda i: (0, 0)),
                      pl.BlockSpec((1, D), lambda i: (0, 0))],
            out_specs=pl.BlockSpec((tm, D), lambda i: (i, 0))),
        compiler_params=pltpu.CompilerParams(
            dimension_semantics=("parallel",),
            vmem_limit_bytes=_VMEM_LIMIT),
    )(x, gamma, beta)


# ---------------- flash-style multi-head attention (lane-dense bf16 I/O) ----

def _mha_kernel(q_ref, k_ref, v_ref, o_ref, m_sc, l_sc, acc_sc, *, nhead, sk, tkv):
    kv = pl.program_id(2)
    D = q_ref.shape[-1]
    dh = D // nhead

    @pl.when(kv == 0)
    def _():
        m_sc[...] = jnp.full(m_sc.shape, -jnp.inf, m_sc.dtype)
        l_sc[...] = jnp.zeros(l_sc.shape, l_sc.dtype)
        acc_sc[...] = jnp.zeros(acc_sc.shape, acc_sc.dtype)

    q = q_ref[0]                  # (tq, D) bf16; 1/sqrt(dh) already folded into the weights
    k = k_ref[0]
    v = v_ref[0]

    ragged = (sk % tkv) != 0      # static: masking code only generated when needed
    if ragged:
        valid = sk - kv * tkv
        col = jax.lax.broadcasted_iota(jnp.int32, (q.shape[0], tkv), 1)

    # TODO(synk): batch/pack heads into one >=256-deep contraction for v6e/v7x MXU utilization.
    for h in range(nhead):        # heads stay packed along the lane axis (static slices)
        sl = slice(h * dh, (h + 1) * dh)
        s = jax.lax.dot_general(q[:, sl], k[:, sl], (((1,), (1,)), ((), ())),
                                preferred_element_type=jnp.float32)        # (tq, tkv) f32
        if ragged:
            s = jnp.where(col < valid, s, -jnp.inf)
        m_prev = m_sc[h]
        m_new = jnp.maximum(m_prev, jnp.max(s, axis=-1, keepdims=True))
        alpha = jnp.exp(m_prev - m_new)
        p = jnp.exp(s - m_new)
        l_sc[h] = alpha * l_sc[h] + jnp.sum(p, axis=-1, keepdims=True)
        acc_sc[h] = alpha * acc_sc[h] + jax.lax.dot_general(
            p.astype(jnp.bfloat16), v[:, sl], (((1,), (0,)), ((), ())),
            preferred_element_type=jnp.float32)
        m_sc[h] = m_new

    @pl.when(kv == pl.num_programs(2) - 1)
    def _():
        heads = [acc_sc[h] * pl.reciprocal(l_sc[h], approx=True) for h in range(nhead)]
        o_ref[0] = jnp.concatenate(heads, axis=-1).astype(o_ref.dtype)     # lane-dense (tq, D)


def mha_attention(q, k, v, nhead):
    """q:(B,Sq,D), k/v:(B,Sk,D) bf16 with heads packed along D -> (B,Sq,D) bf16."""
    B, Sq, D = q.shape
    Sk = k.shape[1]
    dh = D // nhead
    tq = _pick_tile(Sq, 256)
    tkv = _pick_tile(Sk, 256)
    grid = (B, pl.cdiv(Sq, tq), pl.cdiv(Sk, tkv))
    return pl.pallas_call(
        functools.partial(_mha_kernel, nhead=nhead, sk=Sk, tkv=tkv),
        out_shape=jax.ShapeDtypeStruct((B, Sq, D), jnp.bfloat16),
        grid_spec=pltpu.PrefetchScalarGridSpec(
            num_scalar_prefetch=0, grid=grid,
            in_specs=[pl.BlockSpec((1, tq, D), lambda b, qi, t: (b, qi, 0)),
                      pl.BlockSpec((1, tkv, D), lambda b, qi, t: (b, t, 0)),
                      pl.BlockSpec((1, tkv, D), lambda b, qi, t: (b, t, 0))],
            out_specs=pl.BlockSpec((1, tq, D), lambda b, qi, t: (b, qi, 0)),
            scratch_shapes=[pltpu.VMEM((nhead, tq, 1), jnp.float32),
                            pltpu.VMEM((nhead, tq, 1), jnp.float32),
                            pltpu.VMEM((nhead, tq, dh), jnp.float32)]),
        compiler_params=pltpu.CompilerParams(
            dimension_semantics=("parallel", "parallel", "arbitrary"),
            vmem_limit_bytes=_VMEM_LIMIT),
    )(q, k, v)


# ------------------------------- model pieces -------------------------------

def self_attention(p, x, nhead):
    B, S, D = x.shape
    q, k, v = qkv_proj(x.reshape(B * S, D), p['w_qkv'], p['b_qkv'])
    return mha_attention(q.reshape(B, S, D), k.reshape(B, S, D), v.reshape(B, S, D), nhead)


def cross_attention(p, x, mem, nhead):
    B, St, D = x.shape
    Ss = mem.shape[1]
    q = matmul_bias(x.reshape(B * St, D), p['w_q'], p['b_q'], out_dtype=jnp.bfloat16)
    k, v = kv_proj(mem.reshape(B * Ss, D), p['w_kv'], p['b_kv'])
    return mha_attention(q.reshape(B, St, D), k.reshape(B, Ss, D), v.reshape(B, Ss, D), nhead)


def encoder_layer(p, x, nhead):
    B, S, D = x.shape
    x2d = x.reshape(B * S, D)
    sa = self_attention(p['self_attn'], x, nhead).reshape(B * S, D)
    x2 = matmul_res_ln(sa, p['self_attn']['w_out'], p['self_attn']['b_out'],
                       x2d, p['norm1']['gamma'], p['norm1']['beta'])
    x3 = ffn_res_ln(x2, p['w1'], p['b1'], p['w2'], p['b2'],
                    p['norm2']['gamma'], p['norm2']['beta'])
    return x3.reshape(B, S, D)


def decoder_layer(p, x, mem, nhead):
    B, S, D = x.shape
    x2d = x.reshape(B * S, D)
    sa = self_attention(p['self_attn'], x, nhead).reshape(B * S, D)
    x2 = matmul_res_ln(sa, p['self_attn']['w_out'], p['self_attn']['b_out'],
                       x2d, p['norm1']['gamma'], p['norm1']['beta'])
    ca = cross_attention(p['cross_attn'], x2.reshape(B, S, D), mem, nhead).reshape(B * S, D)
    x3 = matmul_res_ln(ca, p['cross_attn']['w_out'], p['cross_attn']['b_out'],
                       x2, p['norm2']['gamma'], p['norm2']['beta'])
    x4 = ffn_res_ln(x3, p['w1'], p['b1'], p['w2'], p['b2'],
                    p['norm3']['gamma'], p['norm3']['beta'])
    return x4.reshape(B, S, D)


def transformer_forward(params, src_ids, tgt_ids, nhead):
    emb = params['embedding']
    src_e = jnp.take(emb, src_ids, axis=0)          # glue: embedding gather (XLA)
    tgt_e = jnp.take(emb, tgt_ids, axis=0)

    mem = src_e
    for lp in params['encoder_layers']:
        mem = encoder_layer(lp, mem, nhead)
    B, Ss, D = mem.shape
    mem = layernorm(mem.reshape(B * Ss, D),
                    params['encoder_norm']['gamma'],
                    params['encoder_norm']['beta']).reshape(B, Ss, D)

    out = tgt_e
    for lp in params['decoder_layers']:
        out = decoder_layer(lp, out, mem, nhead)
    Bt, St, _ = out.shape
    out = layernorm(out.reshape(Bt * St, D),
                    params['decoder_norm']['gamma'],
                    params['decoder_norm']['beta'])

    vocab = params['fc_w'].shape[1]
    logits = matmul_bias(out, params['fc_w'], params['fc_b'])
    return logits.reshape(Bt, St, vocab)


# ---------------------------- parameter init --------------------------------
# Weights stored ONCE in kernel-ready layout: (in, out) == torch_weight.T, bf16.
# 1/sqrt(dh) is folded into the Q projection weights/bias at init.

def _normal(key, shape, std=0.02):
    return std * jax.random.normal(key, shape, jnp.float32)


def _init_ln(d):
    return dict(gamma=jnp.ones((1, d), jnp.float32), beta=jnp.zeros((1, d), jnp.float32))


def _init_self_attn(key, d, nhead):
    k1, k2 = jax.random.split(key)
    scale = 1.0 / math.sqrt(d // nhead)
    qcol = jnp.concatenate([jnp.full((d,), scale, jnp.float32),
                            jnp.ones((2 * d,), jnp.float32)])
    return dict(w_qkv=(_normal(k1, (d, 3 * d)) * qcol).astype(jnp.bfloat16),  # in_proj.T, Q pre-scaled
                b_qkv=jnp.zeros((1, 3 * d), jnp.float32) * qcol,
                w_out=_normal(k2, (d, d)).astype(jnp.bfloat16),               # out_proj.weight.T
                b_out=jnp.zeros((1, d), jnp.float32))


def _init_cross_attn(key, d, nhead):
    k1, k2, k3 = jax.random.split(key, 3)
    scale = 1.0 / math.sqrt(d // nhead)
    return dict(w_q=(scale * _normal(k1, (d, d))).astype(jnp.bfloat16),
                b_q=scale * jnp.zeros((1, d), jnp.float32),
                w_kv=_normal(k2, (d, 2 * d)).astype(jnp.bfloat16),
                b_kv=jnp.zeros((1, 2 * d), jnp.float32),
                w_out=_normal(k3, (d, d)).astype(jnp.bfloat16),
                b_out=jnp.zeros((1, d), jnp.float32))


def _init_ffn(key, d, d_ff):
    k1, k2 = jax.random.split(key)
    return dict(w1=_normal(k1, (d, d_ff)).astype(jnp.bfloat16),
                b1=jnp.zeros((1, d_ff), jnp.float32),
                w2=_normal(k2, (d_ff, d)).astype(jnp.bfloat16),
                b2=jnp.zeros((1, d), jnp.float32))


def _init_enc_layer(key, d, nhead, d_ff):
    k1, k2 = jax.random.split(key)
    return dict(self_attn=_init_self_attn(k1, d, nhead), **_init_ffn(k2, d, d_ff),
                norm1=_init_ln(d), norm2=_init_ln(d))


def _init_dec_layer(key, d, nhead, d_ff):
    k1, k2, k3 = jax.random.split(key, 3)
    return dict(self_attn=_init_self_attn(k1, d, nhead),
                cross_attn=_init_cross_attn(k2, d, nhead),
                **_init_ffn(k3, d, d_ff),
                norm1=_init_ln(d), norm2=_init_ln(d), norm3=_init_ln(d))


def init_params(key, vocab, d_model, nhead, n_layers, d_ff):
    ks = jax.random.split(key, 2 * n_layers + 2)
    return dict(
        embedding=_normal(ks[0], (vocab, d_model)),
        encoder_layers=[_init_enc_layer(ks[1 + i], d_model, nhead, d_ff)
                        for i in range(n_layers)],
        decoder_layers=[_init_dec_layer(ks[1 + n_layers + i], d_model, nhead, d_ff)
                        for i in range(n_layers)],
        encoder_norm=_init_ln(d_model),
        decoder_norm=_init_ln(d_model),
        fc_w=_normal(ks[-1], (d_model, vocab)).astype(jnp.bfloat16),   # == fc.weight.T
        fc_b=jnp.zeros((1, vocab), jnp.float32),
    )


# ------------------------------------ main -----------------------------------

if __name__ == "__main__":
    vocab_size, d_model, n_heads, n_layers = 64, 32, 4, 2
    d_ff = 2048                    # nn.Transformer default dim_feedforward
    B, S_src, S_tgt = 2, 8, 8

    key = jax.random.PRNGKey(0)
    kp, ks, kt = jax.random.split(key, 3)
    params = init_params(kp, vocab_size, d_model, n_heads, n_layers, d_ff)
    src = jax.random.randint(ks, (B, S_src), 0, vocab_size, dtype=jnp.int32)
    tgt = jax.random.randint(kt, (B, S_tgt), 0, vocab_size, dtype=jnp.int32)

    fwd = jax.jit(functools.partial(transformer_forward, nhead=n_heads))
    logits = jax.block_until_ready(fwd(params, src, tgt))

    assert logits.shape == (B, S_tgt, vocab_size), logits.shape
    assert logits.dtype == jnp.float32
    assert bool(jnp.all(jnp.isfinite(logits)))
    print("KERNEL_OK")
</pallas_src>

<mosaic_0001>
module attributes {stable_mosaic.version = 11 : i64} {
  func.func @_qkv_proj_kernel(%arg0: i32, %arg1: memref<16x32xf32, #tpu.memory_space<vmem>>, %arg2: memref<32x96xbf16, #tpu.memory_space<vmem>>, %arg3: memref<1x96xf32, #tpu.memory_space<vmem>>, %arg4: memref<16x32xbf16, #tpu.memory_space<vmem>>, %arg5: memref<16x32xbf16, #tpu.memory_space<vmem>>, %arg6: memref<16x32xbf16, #tpu.memory_space<vmem>>) attributes {dimension_semantics = [#tpu.dimension_semantics<parallel>], iteration_bounds = array<i64: 1>, scalar_prefetch = 0 : i64, scratch_operands = 0 : i64, tpu.core_type = #tpu.core_type<tc>, window_params = [{transform_indices = @transform_0, window_bounds = array<i64: 16, 32>}, {pipeline_mode = #tpu.pipeline_mode<synchronous>, transform_indices = @transform_1, window_bounds = array<i64: 32, 96>}, {pipeline_mode = #tpu.pipeline_mode<synchronous>, transform_indices = @transform_2, window_bounds = array<i64: 1, 96>}, {transform_indices = @transform_3, window_bounds = array<i64: 16, 32>}, {transform_indices = @transform_4, window_bounds = array<i64: 16, 32>}, {transform_indices = @transform_5, window_bounds = array<i64: 16, 32>}]} {
    %c0 = arith.constant 0 : index
    %c0_0 = arith.constant 0 : index
    %0 = vector.load %arg1[%c0, %c0_0] : memref<16x32xf32, #tpu.memory_space<vmem>>, vector<16x32xf32>
    %1 = arith.truncf %0 : vector<16x32xf32> to vector<16x32xbf16>
    %c0_1 = arith.constant 0 : index
    %c0_2 = arith.constant 0 : index
    %2 = vector.load %arg2[%c0_1, %c0_2] : memref<32x96xbf16, #tpu.memory_space<vmem>>, vector<32x96xbf16>
    %cst = arith.constant dense<0.000000e+00> : vector<16x96xf32>
    %3 = tpu.matmul %1, %2, %cst {dimension_numbers = #tpu.dot_dimension_numbers<[1], [0], [0], [1], [0, 0, 1, 1], [], []>} : vector<16x32xbf16>, vector<32x96xbf16>, vector<16x96xf32> -> vector<16x96xf32>
    %c0_3 = arith.constant 0 : index
    %c0_4 = arith.constant 0 : index
    %4 = vector.load %arg3[%c0_3, %c0_4] : memref<1x96xf32, #tpu.memory_space<vmem>>, vector<1x96xf32>
    %5 = vector.broadcast %4 : vector<1x96xf32> to vector<16x96xf32>
    %6 = arith.addf %3, %5 : vector<16x96xf32>
    %7 = vector.extract_strided_slice %6 {offsets = [0, 0], sizes = [16, 32], strides = [1, 1]} : vector<16x96xf32> to vector<16x32xf32>
    %8 = arith.truncf %7 : vector<16x32xf32> to vector<16x32xbf16>
    %c0_5 = arith.constant 0 : index
    %c0_6 = arith.constant 0 : index
    %9 = vector.load %arg4[%c0_5, %c0_6] : memref<16x32xbf16, #tpu.memory_space<vmem>>, vector<16x32xbf16>
    tpu.vector_store %arg4[%c0_5, %c0_6], %8 {strides = array<i32>} : memref<16x32xbf16, #tpu.memory_space<vmem>>, vector<16x32xbf16>,
    %10 = vector.extract_strided_slice %6 {offsets = [0, 32], sizes = [16, 32], strides = [1, 1]} : vector<16x96xf32> to vector<16x32xf32>
    %11 = arith.truncf %10 : vector<16x32xf32> to vector<16x32xbf16>
    %c0_7 = arith.constant 0 : index
    %c0_8 = arith.constant 0 : index
    %12 = vector.load %arg5[%c0_7, %c0_8] : memref<16x32xbf16, #tpu.memory_space<vmem>>, vector<16x32xbf16>
    tpu.vector_store %arg5[%c0_7, %c0_8], %11 {strides = array<i32>} : memref<16x32xbf16, #tpu.memory_space<vmem>>, vector<16x32xbf16>,
    %13 = vector.extract_strided_slice %6 {offsets = [0, 64], sizes = [16, 32], strides = [1, 1]} : vector<16x96xf32> to vector<16x32xf32>
    %14 = arith.truncf %13 : vector<16x32xf32> to vector<16x32xbf16>
    %c0_9 = arith.constant 0 : index
    %c0_10 = arith.constant 0 : index
    %15 = vector.load %arg6[%c0_9, %c0_10] : memref<16x32xbf16, #tpu.memory_space<vmem>>, vector<16x32xbf16>
    tpu.vector_store %arg6[%c0_9, %c0_10], %14 {strides = array<i32>} : memref<16x32xbf16, #tpu.memory_space<vmem>>, vector<16x32xbf16>,
    return
  }
  func.func @transform_0(%arg0: i32) -> (i32, i32) {
    %c0_i32 = arith.constant 0 : i32
    %c0_i32_0 = arith.constant 0 : i32
    return %arg0, %c0_i32 : i32, i32
  }
  func.func @transform_1(%arg0: i32) -> (i32, i32) {
    %c0_i32 = arith.constant 0 : i32
    %c0_i32_0 = arith.constant 0 : i32
    %c0_i32_1 = arith.constant 0 : i32
    return %c0_i32, %c0_i32_0 : i32, i32
  }
  func.func @transform_2(%arg0: i32) -> (i32, i32) {
    %c0_i32 = arith.constant 0 : i32
    %c0_i32_0 = arith.constant 0 : i32
    %c0_i32_1 = arith.constant 0 : i32
    return %c0_i32, %c0_i32_0 : i32, i32
  }
  func.func @transform_3(%arg0: i32) -> (i32, i32) {
    %c0_i32 = arith.constant 0 : i32
    %c0_i32_0 = arith.constant 0 : i32
    return %arg0, %c0_i32 : i32, i32
  }
  func.func @transform_4(%arg0: i32) -> (i32, i32) {
    %c0_i32 = arith.constant 0 : i32
    %c0_i32_0 = arith.constant 0 : i32
    return %arg0, %c0_i32 : i32, i32
  }
  func.func @transform_5(%arg0: i32) -> (i32, i32) {
    %c0_i32 = arith.constant 0 : i32
    %c0_i32_0 = arith.constant 0 : i32
    return %arg0, %c0_i32 : i32, i32
  }
}

module attributes {stable_mosaic.version = 11 : i64} {
  func.func @_matmul_res_ln_kernel(%arg0: i32, %arg1: memref<16x32xbf16, #tpu.memory_space<vmem>>, %arg2: memref<32x32xbf16, #tpu.memory_space<vmem>>, %arg3: memref<1x32xf32, #tpu.memory_space<vmem>>, %arg4: memref<16x32xf32, #tpu.memory_space<vmem>>, %arg5: memref<1x32xf32, #tpu.memory_space<vmem>>, %arg6: memref<1x32xf32, #tpu.memory_space<vmem>>, %arg7: memref<16x32xf32, #tpu.memory_space<vmem>>) attributes {dimension_semantics = [#tpu.dimension_semantics<parallel>], iteration_bounds = array<i64: 1>, scalar_prefetch = 0 : i64, scratch_operands = 0 : i64, tpu.core_type = #tpu.core_type<tc>, window_params = [{transform_indices = @transform_0, window_bounds = array<i64: 16, 32>}, {pipeline_mode = #tpu.pipeline_mode<synchronous>, transform_indices = @transform_1, window_bounds = array<i64: 32, 32>}, {pipeline_mode = #tpu.pipeline_mode<synchronous>, transform_indices = @transform_2, window_bounds = array<i64: 1, 32>}, {transform_indices = @transform_3, window_bounds = array<i64: 16, 32>}, {pipeline_mode = #tpu.pipeline_mode<synchronous>, transform_indices = @transform_4, window_bounds = array<i64: 1, 32>}, {pipeline_mode = #tpu.pipeline_mode<synchronous>, transform_indices = @transform_5, window_bounds = array<i64: 1, 32>}, {transform_indices = @transform_6, window_bounds = array<i64: 16, 32>}]} {
    %c0 = arith.constant 0 : index
    %c0_0 = arith.constant 0 : index
    %0 = vector.load %arg1[%c0, %c0_0] : memref<16x32xbf16, #tpu.memory_space<vmem>>, vector<16x32xbf16>
    %c0_1 = arith.constant 0 : index
    %c0_2 = arith.constant 0 : index
    %1 = vector.load %arg2[%c0_1, %c0_2] : memref<32x32xbf16, #tpu.memory_space<vmem>>, vector<32x32xbf16>
    %cst = arith.constant dense<0.000000e+00> : vector<16x32xf32>
    %2 = tpu.matmul %0, %1, %cst {dimension_numbers = #tpu.dot_dimension_numbers<[1], [0], [0], [1], [0, 0, 1, 1], [], []>} : vector<16x32xbf16>, vector<32x32xbf16>, vector<16x32xf32> -> vector<16x32xf32>
    %c0_3 = arith.constant 0 : index
    %c0_4 = arith.constant 0 : index
    %3 = vector.load %arg3[%c0_3, %c0_4] : memref<1x32xf32, #tpu.memory_space<vmem>>, vector<1x32xf32>
    %4 = vector.broadcast %3 : vector<1x32xf32> to vector<16x32xf32>
    %5 = arith.addf %2, %4 : vector<16x32xf32>
    %c0_5 = arith.constant 0 : index
    %c0_6 = arith.constant 0 : index
    %6 = vector.load %arg4[%c0_5, %c0_6] : memref<16x32xf32, #tpu.memory_space<vmem>>, vector<16x32xf32>
    %7 = arith.addf %5, %6 : vector<16x32xf32>
    %c0_7 = arith.constant 0 : index
    %c0_8 = arith.constant 0 : index
    %8 = vector.load %arg5[%c0_7, %c0_8] : memref<1x32xf32, #tpu.memory_space<vmem>>, vector<1x32xf32>
    %c0_9 = arith.constant 0 : index
    %c0_10 = arith.constant 0 : index
    %9 = vector.load %arg6[%c0_9, %c0_10] : memref<1x32xf32, #tpu.memory_space<vmem>>, vector<1x32xf32>
    %cst_11 = arith.constant dense<0.000000e+00> : vector<16xf32>
    %10 = vector.multi_reduction <add>, %7, %cst_11 [1] : vector<16x32xf32> to vector<16xf32>
    %11 = vector.shape_cast %10 : vector<16xf32> to vector<16x1xf32>
    %cst_12 = arith.constant 3.200000e+01 : f32
    %12 = vector.broadcast %cst_12 : f32 to vector<16x1xf32>
    %13 = arith.divf %11, %12 : vector<16x1xf32>
    %14 = vector.broadcast %13 : vector<16x1xf32> to vector<16x32xf32>
    %15 = arith.subf %7, %14 : vector<16x32xf32>
    %16 = arith.mulf %15, %15 : vector<16x32xf32>
    %cst_13 = arith.constant dense<0.000000e+00> : vector<16xf32>
    %17 = vector.multi_reduction <add>, %16, %cst_13 [1] : vector<16x32xf32> to vector<16xf32>
    %18 = vector.shape_cast %17 : vector<16xf32> to vector<16x1xf32>
    %cst_14 = arith.constant 3.200000e+01 : f32
    %19 = vector.broadcast %cst_14 : f32 to vector<16x1xf32>
    %20 = arith.divf %18, %19 : vector<16x1xf32>
    %cst_15 = arith.constant 9.99999974E-6 : f32
    %21 = vector.broadcast %cst_15 : f32 to vector<16x1xf32>
    %22 = arith.addf %20, %21 : vector<16x1xf32>
    %23 = math.rsqrt %22 : vector<16x1xf32>
    %24 = vector.broadcast %23 : vector<16x1xf32> to vector<16x32xf32>
    %25 = arith.mulf %15, %24 : vector<16x32xf32>
    %26 = vector.broadcast %8 : vector<1x32xf32> to vector<16x32xf32>
    %27 = arith.mulf %25, %26 : vector<16x32xf32>
    %28 = vector.broadcast %9 : vector<1x32xf32> to vector<16x32xf32>
    %29 = arith.addf %27, %28 : vector<16x32xf32>
    %c0_16 = arith.constant 0 : index
    %c0_17 = arith.constant 0 : index
    %30 = vector.load %arg7[%c0_16, %c0_17] : memref<16x32xf32, #tpu.memory_space<vmem>>, vector<16x32xf32>
    tpu.vector_store %arg7[%c0_16, %c0_17], %29 {strides = array<i32>} : memref<16x32xf32, #tpu.memory_space<vmem>>, vector<16x32xf32>,
    return
  }
  func.func @transform_0(%arg0: i32) -> (i32, i32) {
    %c0_i32 = arith.constant 0 : i32
    %c0_i32_0 = arith.constant 0 : i32
    return %arg0, %c0_i32 : i32, i32
  }
  func.func @transform_1(%arg0: i32) -> (i32, i32) {
    %c0_i32 = arith.constant 0 : i32
    %c0_i32_0 = arith.constant 0 : i32
    %c0_i32_1 = arith.constant 0 : i32
    return %c0_i32, %c0_i32_0 : i32, i32
  }
  func.func @transform_2(%arg0: i32) -> (i32, i32) {
    %c0_i32 = arith.constant 0 : i32
    %c0_i32_0 = arith.constant 0 : i32
    %c0_i32_1 = arith.constant 0 : i32
    return %c0_i32, %c0_i32_0 : i32, i32
  }
  func.func @transform_3(%arg0: i32) -> (i32, i32) {
    %c0_i32 = arith.constant 0 : i32
    %c0_i32_0 = arith.constant 0 : i32
    return %arg0, %c0_i32 : i32, i32
  }
  func.func @transform_4(%arg0: i32) -> (i32, i32) {
    %c0_i32 = arith.constant 0 : i32
    %c0_i32_0 = arith.constant 0 : i32
    %c0_i32_1 = arith.constant 0 : i32
    return %c0_i32, %c0_i32_0 : i32, i32
  }
  func.func @transform_5(%arg0: i32) -> (i32, i32) {
    %c0_i32 = arith.constant 0 : i32
    %c0_i32_0 = arith.constant 0 : i32
    %c0_i32_1 = arith.constant 0 : i32
    return %c0_i32, %c0_i32_0 : i32, i32
  }
  func.func @transform_6(%arg0: i32) -> (i32, i32) {
    %c0_i32 = arith.constant 0 : i32
    %c0_i32_0 = arith.constant 0 : i32
    return %arg0, %c0_i32 : i32, i32
  }
}

module attributes {stable_mosaic.version = 11 : i64} {
  func.func @_matmul_bias_kernel(%arg0: i32, %arg1: i32, %arg2: i32, %arg3: memref<16x32xf32, #tpu.memory_space<vmem>>, %arg4: memref<32x32xbf16, #tpu.memory_space<vmem>>, %arg5: memref<1x32xf32, #tpu.memory_space<vmem>>, %arg6: memref<16x32xbf16, #tpu.memory_space<vmem>>, %arg7: memref<16x32xf32, #tpu.memory_space<vmem>>) attributes {dimension_semantics = [#tpu.dimension_semantics<parallel>, #tpu.dimension_semantics<parallel>, #tpu.dimension_semantics<arbitrary>], iteration_bounds = array<i64: 1, 1, 1>, scalar_prefetch = 0 : i64, scratch_operands = 1 : i64, tpu.core_type = #tpu.core_type<tc>, window_params = [{transform_indices = @transform_0, window_bounds = array<i64: 16, 32>}, {transform_indices = @transform_1, window_bounds = array<i64: 32, 32>}, {transform_indices = @transform_2, window_bounds = array<i64: 1, 32>}, {transform_indices = @transform_3, window_bounds = array<i64: 16, 32>}]} {
    %c0_i32 = arith.constant 0 : i32
    %0 = arith.cmpi eq, %arg2, %c0_i32 : i32
    %1 = arith.extui %0 : i1 to i32
    %c0_i32_0 = arith.constant 0 : i32
    %2 = arith.cmpi ne, %1, %c0_i32_0 : i32
    scf.if %2 {
      %cst_10 = arith.constant 0.000000e+00 : f32
      %13 = vector.broadcast %cst_10 : f32 to vector<16x32xf32>
      %c0_11 = arith.constant 0 : index
      %c0_12 = arith.constant 0 : index
      %14 = vector.load %arg7[%c0_11, %c0_12] : memref<16x32xf32, #tpu.memory_space<vmem>>, vector<16x32xf32>
      tpu.vector_store %arg7[%c0_11, %c0_12], %13 {strides = array<i32>} : memref<16x32xf32, #tpu.memory_space<vmem>>, vector<16x32xf32>,
    } else {
    }
    %c0 = arith.constant 0 : index
    %c0_1 = arith.constant 0 : index
    %3 = vector.load %arg7[%c0, %c0_1] : memref<16x32xf32, #tpu.memory_space<vmem>>, vector<16x32xf32>
    %c0_2 = arith.constant 0 : index
    %c0_3 = arith.constant 0 : index
    %4 = vector.load %arg3[%c0_2, %c0_3] : memref<16x32xf32, #tpu.memory_space<vmem>>, vector<16x32xf32>
    %5 = arith.truncf %4 : vector<16x32xf32> to vector<16x32xbf16>
    %c0_4 = arith.constant 0 : index
    %c0_5 = arith.constant 0 : index
    %6 = vector.load %arg4[%c0_4, %c0_5] : memref<32x32xbf16, #tpu.memory_space<vmem>>, vector<32x32xbf16>
    %cst = arith.constant dense<0.000000e+00> : vector<16x32xf32>
    %7 = tpu.matmul %5, %6, %cst {dimension_numbers = #tpu.dot_dimension_numbers<[1], [0], [0], [1], [0, 0, 1, 1], [], []>} : vector<16x32xbf16>, vector<32x32xbf16>, vector<16x32xf32> -> vector<16x32xf32>
    %8 = arith.addf %3, %7 : vector<16x32xf32>
    %c0_6 = arith.constant 0 : index
    %c0_7 = arith.constant 0 : index
    %9 = vector.load %arg7[%c0_6, %c0_7] : memref<16x32xf32, #tpu.memory_space<vmem>>, vector<16x32xf32>
    tpu.vector_store %arg7[%c0_6, %c0_7], %8 {strides = array<i32>} : memref<16x32xf32, #tpu.memory_space<vmem>>, vector<16x32xf32>,
    %c0_i32_8 = arith.constant 0 : i32
    %10 = arith.cmpi eq, %arg2, %c0_i32_8 : i32
    %11 = arith.extui %10 : i1 to i32
    %c0_i32_9 = arith.constant 0 : i32
    %12 = arith.cmpi ne, %11, %c0_i32_9 : i32
    scf.if %12 {
      %c0_10 = arith.constant 0 : index
      %c0_11 = arith.constant 0 : index
      %13 = vector.load %arg7[%c0_10, %c0_11] : memref<16x32xf32, #tpu.memory_space<vmem>>, vector<16x32xf32>
      %c0_12 = arith.constant 0 : index
      %c0_13 = arith.constant 0 : index
      %14 = vector.load %arg5[%c0_12, %c0_13] : memref<1x32xf32, #tpu.memory_space<vmem>>, vector<1x32xf32>
      %15 = vector.broadcast %14 : vector<1x32xf32> to vector<16x32xf32>
      %16 = arith.addf %13, %15 : vector<16x32xf32>
      %17 = arith.truncf %16 : vector<16x32xf32> to vector<16x32xbf16>
      %c0_14 = arith.constant 0 : index
      %c0_15 = arith.constant 0 : index
      %18 = vector.load %arg6[%c0_14, %c0_15] : memref<16x32xbf16, #tpu.memory_space<vmem>>, vector<16x32xbf16>
      tpu.vector_store %arg6[%c0_14, %c0_15], %17 {strides = array<i32>} : memref<16x32xbf16, #tpu.memory_space<vmem>>, vector<16x32xbf16>,
    } else {
    }
    return
  }
  func.func @transform_0(%arg0: i32, %arg1: i32, %arg2: i32) -> (i32, i32) {
    %c0_i32 = arith.constant 0 : i32
    return %arg0, %arg2 : i32, i32
  }
  func.func @transform_1(%arg0: i32, %arg1: i32, %arg2: i32) -> (i32, i32) {
    %c0_i32 = arith.constant 0 : i32
    return %arg2, %arg1 : i32, i32
  }
  func.func @transform_2(%arg0: i32, %arg1: i32, %arg2: i32) -> (i32, i32) {
    %c0_i32 = arith.constant 0 : i32
    %c0_i32_0 = arith.constant 0 : i32
    return %c0_i32, %arg1 : i32, i32
  }
  func.func @transform_3(%arg0: i32, %arg1: i32, %arg2: i32) -> (i32, i32) {
    %c0_i32 = arith.constant 0 : i32
    return %arg0, %arg1 : i32, i32
  }
}

module attributes {stable_mosaic.version = 11 : i64} {
  func.func @_mha_kernel(%arg0: i32, %arg1: i32, %arg2: i32, %arg3: memref<1x8x32xbf16, #tpu.memory_space<vmem>>, %arg4: memref<1x8x32xbf16, #tpu.memory_space<vmem>>, %arg5: memref<1x8x32xbf16, #tpu.memory_space<vmem>>, %arg6: memref<1x8x32xbf16, #tpu.memory_space<vmem>>, %arg7: memref<4x8x1xf32, #tpu.memory_space<vmem>>, %arg8: memref<4x8x1xf32, #tpu.memory_space<vmem>>, %arg9: memref<4x8x8xf32, #tpu.memory_space<vmem>>) attributes {dimension_semantics = [#tpu.dimension_semantics<parallel>, #tpu.dimension_semantics<parallel>, #tpu.dimension_semantics<arbitrary>], iteration_bounds = array<i64: 2, 1, 1>, scalar_prefetch = 0 : i64, scratch_operands = 3 : i64, tpu.core_type = #tpu.core_type<tc>, window_params = [{transform_indices = @transform_0, window_bounds = array<i64: 1, 8, 32>}, {transform_indices = @transform_1, window_bounds = array<i64: 1, 8, 32>}, {transform_indices = @transform_2, window_bounds = array<i64: 1, 8, 32>}, {transform_indices = @transform_3, window_bounds = array<i64: 1, 8, 32>}]} {
    %c0_i32 = arith.constant 0 : i32
    %0 = arith.cmpi eq, %arg2, %c0_i32 : i32
    %1 = arith.extui %0 : i1 to i32
    %c0_i32_0 = arith.constant 0 : i32
    %2 = arith.cmpi ne, %1, %c0_i32_0 : i32
    scf.if %2 {
      %cst_95 = arith.constant 0xFF800000 : f32
      %156 = vector.broadcast %cst_95 : f32 to vector<4x8x1xf32>
      %c0_96 = arith.constant 0 : index
      %c0_97 = arith.constant 0 : index
      %c0_98 = arith.constant 0 : index
      %157 = vector.load %arg7[%c0_96, %c0_97, %c0_98] : memref<4x8x1xf32, #tpu.memory_space<vmem>>, vector<4x8x1xf32>
      tpu.vector_store %arg7[%c0_96, %c0_97, %c0_98], %156 {strides = array<i32>} : memref<4x8x1xf32, #tpu.memory_space<vmem>>, vector<4x8x1xf32>,
      %cst_99 = arith.constant 0.000000e+00 : f32
      %158 = vector.broadcast %cst_99 : f32 to vector<4x8x1xf32>
      %c0_100 = arith.constant 0 : index
      %c0_101 = arith.constant 0 : index
      %c0_102 = arith.constant 0 : index
      %159 = vector.load %arg8[%c0_100, %c0_101, %c0_102] : memref<4x8x1xf32, #tpu.memory_space<vmem>>, vector<4x8x1xf32>
      tpu.vector_store %arg8[%c0_100, %c0_101, %c0_102], %158 {strides = array<i32>} : memref<4x8x1xf32, #tpu.memory_space<vmem>>, vector<4x8x1xf32>,
      %cst_103 = arith.constant 0.000000e+00 : f32
      %160 = vector.broadcast %cst_103 : f32 to vector<4x8x8xf32>
      %c0_104 = arith.constant 0 : index
      %c0_105 = arith.constant 0 : index
      %c0_106 = arith.constant 0 : index
      %161 = vector.load %arg9[%c0_104, %c0_105, %c0_106] : memref<4x8x8xf32, #tpu.memory_space<vmem>>, vector<4x8x8xf32>
      tpu.vector_store %arg9[%c0_104, %c0_105, %c0_106], %160 {strides = array<i32>} : memref<4x8x8xf32, #tpu.memory_space<vmem>>, vector<4x8x8xf32>,
    } else {
    }
    %c0 = arith.constant 0 : index
    %c0_1 = arith.constant 0 : index
    %c0_2 = arith.constant 0 : index
    %3 = vector.load %arg3[%c0, %c0_1, %c0_2] : memref<1x8x32xbf16, #tpu.memory_space<vmem>>, vector<1x8x32xbf16>
    %4 = vector.shape_cast %3 : vector<1x8x32xbf16> to vector<8x32xbf16>
    %c0_3 = arith.constant 0 : index
    %c0_4 = arith.constant 0 : index
    %c0_5 = arith.constant 0 : index
    %5 = vector.load %arg4[%c0_3, %c0_4, %c0_5] : memref<1x8x32xbf16, #tpu.memory_space<vmem>>, vector<1x8x32xbf16>
    %6 = vector.shape_cast %5 : vector<1x8x32xbf16> to vector<8x32xbf16>
    %c0_6 = arith.constant 0 : index
    %c0_7 = arith.constant 0 : index
    %c0_8 = arith.constant 0 : index
    %7 = vector.load %arg5[%c0_6, %c0_7, %c0_8] : memref<1x8x32xbf16, #tpu.memory_space<vmem>>, vector<1x8x32xbf16>
    %8 = vector.shape_cast %7 : vector<1x8x32xbf16> to vector<8x32xbf16>
    %9 = vector.extract_strided_slice %4 {offsets = [0, 0], sizes = [8, 8], strides = [1, 1]} : vector<8x32xbf16> to vector<8x8xbf16>
    %10 = vector.extract_strided_slice %6 {offsets = [0, 0], sizes = [8, 8], strides = [1, 1]} : vector<8x32xbf16> to vector<8x8xbf16>
    %cst = arith.constant dense<0.000000e+00> : vector<8x8xf32>
    %11 = tpu.matmul %9, %10, %cst {dimension_numbers = #tpu.dot_dimension_numbers<[1], [1], [0], [0], [0, 0, 1, 0], [], []>} : vector<8x8xbf16>, vector<8x8xbf16>, vector<8x8xf32> -> vector<8x8xf32>
    %c0_9 = arith.constant 0 : index
    %c0_10 = arith.constant 0 : index
    %c0_11 = arith.constant 0 : index
    %12 = vector.load %arg7[%c0_9, %c0_10, %c0_11] : memref<4x8x1xf32, #tpu.memory_space<vmem>>, vector<1x8x1xf32>
    %13 = vector.shape_cast %12 : vector<1x8x1xf32> to vector<8x1xf32>
    %cst_12 = arith.constant dense<0xFF800000> : vector<8xf32>
    %14 = vector.multi_reduction <maximumf>, %11, %cst_12 [1] : vector<8x8xf32> to vector<8xf32>
    %15 = vector.shape_cast %14 : vector<8xf32> to vector<8x1xf32>
    %16 = arith.maximumf %13, %15 : vector<8x1xf32>
    %17 = arith.subf %13, %16 : vector<8x1xf32>
    %18 = math.exp %17 : vector<8x1xf32>
    %19 = vector.broadcast %16 : vector<8x1xf32> to vector<8x8xf32>
    %20 = arith.subf %11, %19 : vector<8x8xf32>
    %21 = math.exp %20 : vector<8x8xf32>
    %c0_13 = arith.constant 0 : index
    %c0_14 = arith.constant 0 : index
    %c0_15 = arith.constant 0 : index
    %22 = vector.load %arg8[%c0_13, %c0_14, %c0_15] : memref<4x8x1xf32, #tpu.memory_space<vmem>>, vector<1x8x1xf32>
    %23 = vector.shape_cast %22 : vector<1x8x1xf32> to vector<8x1xf32>
    %24 = arith.mulf %18, %23 : vector<8x1xf32>
    %cst_16 = arith.constant dense<0.000000e+00> : vector<8xf32>
    %25 = vector.multi_reduction <add>, %21, %cst_16 [1] : vector<8x8xf32> to vector<8xf32>
    %26 = vector.shape_cast %25 : vector<8xf32> to vector<8x1xf32>
    %27 = arith.addf %24, %26 : vector<8x1xf32>
    %c0_17 = arith.constant 0 : index
    %c0_18 = arith.constant 0 : index
    %c0_19 = arith.constant 0 : index
    %28 = vector.load %arg8[%c0_17, %c0_18, %c0_19] : memref<4x8x1xf32, #tpu.memory_space<vmem>>, vector<1x8x1xf32>
    %29 = vector.shape_cast %28 : vector<1x8x1xf32> to vector<8x1xf32>
    %30 = vector.shape_cast %27 : vector<8x1xf32> to vector<1x8x1xf32>
    tpu.vector_store %arg8[%c0_17, %c0_18, %c0_19], %30 {strides = array<i32>} : memref<4x8x1xf32, #tpu.memory_space<vmem>>, vector<1x8x1xf32>,
    %c0_20 = arith.constant 0 : index
    %c0_21 = arith.constant 0 : index
    %c0_22 = arith.constant 0 : index
    %31 = vector.load %arg9[%c0_20, %c0_21, %c0_22] : memref<4x8x8xf32, #tpu.memory_space<vmem>>, vector<1x8x8xf32>
    %32 = vector.shape_cast %31 : vector<1x8x8xf32> to vector<8x8xf32>
    %33 = vector.broadcast %18 : vector<8x1xf32> to vector<8x8xf32>
    %34 = arith.mulf %33, %32 : vector<8x8xf32>
    %35 = arith.truncf %21 : vector<8x8xf32> to vector<8x8xbf16>
    %36 = vector.extract_strided_slice %8 {offsets = [0, 0], sizes = [8, 8], strides = [1, 1]} : vector<8x32xbf16> to vector<8x8xbf16>
    %cst_23 = arith.constant dense<0.000000e+00> : vector<8x8xf32>
    %37 = tpu.matmul %35, %36, %cst_23 {dimension_numbers = #tpu.dot_dimension_numbers<[1], [0], [0], [1], [0, 0, 1, 1], [], []>} : vector<8x8xbf16>, vector<8x8xbf16>, vector<8x8xf32> -> vector<8x8xf32>
    %38 = arith.addf %34, %37 : vector<8x8xf32>
    %c0_24 = arith.constant 0 : index
    %c0_25 = arith.constant 0 : index
    %c0_26 = arith.constant 0 : index
    %39 = vector.load %arg9[%c0_24, %c0_25, %c0_26] : memref<4x8x8xf32, #tpu.memory_space<vmem>>, vector<1x8x8xf32>
    %40 = vector.shape_cast %39 : vector<1x8x8xf32> to vector<8x8xf32>
    %41 = vector.shape_cast %38 : vector<8x8xf32> to vector<1x8x8xf32>
    tpu.vector_store %arg9[%c0_24, %c0_25, %c0_26], %41 {strides = array<i32>} : memref<4x8x8xf32, #tpu.memory_space<vmem>>, vector<1x8x8xf32>,
    %c0_27 = arith.constant 0 : index
    %c0_28 = arith.constant 0 : index
    %c0_29 = arith.constant 0 : index
    %42 = vector.load %arg7[%c0_27, %c0_28, %c0_29] : memref<4x8x1xf32, #tpu.memory_space<vmem>>, vector<1x8x1xf32>
    %43 = vector.shape_cast %42 : vector<1x8x1xf32> to vector<8x1xf32>
    %44 = vector.shape_cast %16 : vector<8x1xf32> to vector<1x8x1xf32>
    tpu.vector_store %arg7[%c0_27, %c0_28, %c0_29], %44 {strides = array<i32>} : memref<4x8x1xf32, #tpu.memory_space<vmem>>, vector<1x8x1xf32>,
    %45 = vector.extract_strided_slice %4 {offsets = [0, 8], sizes = [8, 8], strides = [1, 1]} : vector<8x32xbf16> to vector<8x8xbf16>
    %46 = vector.extract_strided_slice %6 {offsets = [0, 8], sizes = [8, 8], strides = [1, 1]} : vector<8x32xbf16> to vector<8x8xbf16>
    %cst_30 = arith.constant dense<0.000000e+00> : vector<8x8xf32>
    %47 = tpu.matmul %45, %46, %cst_30 {dimension_numbers = #tpu.dot_dimension_numbers<[1], [1], [0], [0], [0, 0, 1, 0], [], []>} : vector<8x8xbf16>, vector<8x8xbf16>, vector<8x8xf32> -> vector<8x8xf32>
    %c1 = arith.constant 1 : index
    %c0_31 = arith.constant 0 : index
    %c0_32 = arith.constant 0 : index
    %48 = vector.load %arg7[%c1, %c0_31, %c0_32] : memref<4x8x1xf32, #tpu.memory_space<vmem>>, vector<1x8x1xf32>
    %49 = vector.shape_cast %48 : vector<1x8x1xf32> to vector<8x1xf32>
    %cst_33 = arith.constant dense<0xFF800000> : vector<8xf32>
    %50 = vector.multi_reduction <maximumf>, %47, %cst_33 [1] : vector<8x8xf32> to vector<8xf32>
    %51 = vector.shape_cast %50 : vector<8xf32> to vector<8x1xf32>
    %52 = arith.maximumf %49, %51 : vector<8x1xf32>
    %53 = arith.subf %49, %52 : vector<8x1xf32>
    %54 = math.exp %53 : vector<8x1xf32>
    %55 = vector.broadcast %52 : vector<8x1xf32> to vector<8x8xf32>
    %56 = arith.subf %47, %55 : vector<8x8xf32>
    %57 = math.exp %56 : vector<8x8xf32>
    %c1_34 = arith.constant 1 : index
    %c0_35 = arith.constant 0 : index
    %c0_36 = arith.constant 0 : index
    %58 = vector.load %arg8[%c1_34, %c0_35, %c0_36] : memref<4x8x1xf32, #tpu.memory_space<vmem>>, vector<1x8x1xf32>
    %59 = vector.shape_cast %58 : vector<1x8x1xf32> to vector<8x1xf32>
    %60 = arith.mulf %54, %59 : vector<8x1xf32>
    %cst_37 = arith.constant dense<0.000000e+00> : vector<8xf32>
    %61 = vector.multi_reduction <add>, %57, %cst_37 [1] : vector<8x8xf32> to vector<8xf32>
    %62 = vector.shape_cast %61 : vector<8xf32> to vector<8x1xf32>
    %63 = arith.addf %60, %62 : vector<8x1xf32>
    %c1_38 = arith.constant 1 : index
    %c0_39 = arith.constant 0 : index
    %c0_40 = arith.constant 0 : index
    %64 = vector.load %arg8[%c1_38, %c0_39, %c0_40] : memref<4x8x1xf32, #tpu.memory_space<vmem>>, vector<1x8x1xf32>
    %65 = vector.shape_cast %64 : vector<1x8x1xf32> to vector<8x1xf32>
    %66 = vector.shape_cast %63 : vector<8x1xf32> to vector<1x8x1xf32>
    tpu.vector_store %arg8[%c1_38, %c0_39, %c0_40], %66 {strides = array<i32>} : memref<4x8x1xf32, #tpu.memory_space<vmem>>, vector<1x8x1xf32>,
    %c1_41 = arith.constant 1 : index
    %c0_42 = arith.constant 0 : index
    %c0_43 = arith.constant 0 : index
    %67 = vector.load %arg9[%c1_41, %c0_42, %c0_43] : memref<4x8x8xf32, #tpu.memory_space<vmem>>, vector<1x8x8xf32>
    %68 = vector.shape_cast %67 : vector<1x8x8xf32> to vector<8x8xf32>
    %69 = vector.broadcast %54 : vector<8x1xf32> to vector<8x8xf32>
    %70 = arith.mulf %69, %68 : vector<8x8xf32>
    %71 = arith.truncf %57 : vector<8x8xf32> to vector<8x8xbf16>
    %72 = vector.extract_strided_slice %8 {offsets = [0, 8], sizes = [8, 8], strides = [1, 1]} : vector<8x32xbf16> to vector<8x8xbf16>
    %cst_44 = arith.constant dense<0.000000e+00> : vector<8x8xf32>
    %73 = tpu.matmul %71, %72, %cst_44 {dimension_numbers = #tpu.dot_dimension_numbers<[1], [0], [0], [1], [0, 0, 1, 1], [], []>} : vector<8x8xbf16>, vector<8x8xbf16>, vector<8x8xf32> -> vector<8x8xf32>
    %74 = arith.addf %70, %73 : vector<8x8xf32>
    %c1_45 = arith.constant 1 : index
    %c0_46 = arith.constant 0 : index
    %c0_47 = arith.constant 0 : index
    %75 = vector.load %arg9[%c1_45, %c0_46, %c0_47] : memref<4x8x8xf32, #tpu.memory_space<vmem>>, vector<1x8x8xf32>
    %76 = vector.shape_cast %75 : vector<1x8x8xf32> to vector<8x8xf32>
    %77 = vector.shape_cast %74 : vector<8x8xf32> to vector<1x8x8xf32>
    tpu.vector_store %arg9[%c1_45, %c0_46, %c0_47], %77 {strides = array<i32>} : memref<4x8x8xf32, #tpu.memory_space<vmem>>, vector<1x8x8xf32>,
    %c1_48 = arith.constant 1 : index
    %c0_49 = arith.constant 0 : index
    %c0_50 = arith.constant 0 : index
    %78 = vector.load %arg7[%c1_48, %c0_49, %c0_50] : memref<4x8x1xf32, #tpu.memory_space<vmem>>, vector<1x8x1xf32>
    %79 = vector.shape_cast %78 : vector<1x8x1xf32> to vector<8x1xf32>
    %80 = vector.shape_cast %52 : vector<8x1xf32> to vector<1x8x1xf32>
    tpu.vector_store %arg7[%c1_48, %c0_49, %c0_50], %80 {strides = array<i32>} : memref<4x8x1xf32, #tpu.memory_space<vmem>>, vector<1x8x1xf32>,
    %81 = vector.extract_strided_slice %4 {offsets = [0, 16], sizes = [8, 8], strides = [1, 1]} : vector<8x32xbf16> to vector<8x8xbf16>
    %82 = vector.extract_strided_slice %6 {offsets = [0, 16], sizes = [8, 8], strides = [1, 1]} : vector<8x32xbf16> to vector<8x8xbf16>
    %cst_51 = arith.constant dense<0.000000e+00> : vector<8x8xf32>
    %83 = tpu.matmul %81, %82, %cst_51 {dimension_numbers = #tpu.dot_dimension_numbers<[1], [1], [0], [0], [0, 0, 1, 0], [], []>} : vector<8x8xbf16>, vector<8x8xbf16>, vector<8x8xf32> -> vector<8x8xf32>
    %c2 = arith.constant 2 : index
    %c0_52 = arith.constant 0 : index
    %c0_53 = arith.constant 0 : index
    %84 = vector.load %arg7[%c2, %c0_52, %c0_53] : memref<4x8x1xf32, #tpu.memory_space<vmem>>, vector<1x8x1xf32>
    %85 = vector.shape_cast %84 : vector<1x8x1xf32> to vector<8x1xf32>
    %cst_54 = arith.constant dense<0xFF800000> : vector<8xf32>
    %86 = vector.multi_reduction <maximumf>, %83, %cst_54 [1] : vector<8x8xf32> to vector<8xf32>
    %87 = vector.shape_cast %86 : vector<8xf32> to vector<8x1xf32>
    %88 = arith.maximumf %85, %87 : vector<8x1xf32>
    %89 = arith.subf %85, %88 : vector<8x1xf32>
    %90 = math.exp %89 : vector<8x1xf32>
    %91 = vector.broadcast %88 : vector<8x1xf32> to vector<8x8xf32>
    %92 = arith.subf %83, %91 : vector<8x8xf32>
    %93 = math.exp %92 : vector<8x8xf32>
    %c2_55 = arith.constant 2 : index
    %c0_56 = arith.constant 0 : index
    %c0_57 = arith.constant 0 : index
    %94 = vector.load %arg8[%c2_55, %c0_56, %c0_57] : memref<4x8x1xf32, #tpu.memory_space<vmem>>, vector<1x8x1xf32>
    %95 = vector.shape_cast %94 : vector<1x8x1xf32> to vector<8x1xf32>
    %96 = arith.mulf %90, %95 : vector<8x1xf32>
    %cst_58 = arith.constant dense<0.000000e+00> : vector<8xf32>
    %97 = vector.multi_reduction <add>, %93, %cst_58 [1] : vector<8x8xf32> to vector<8xf32>
    %98 = vector.shape_cast %97 : vector<8xf32> to vector<8x1xf32>
    %99 = arith.addf %96, %98 : vector<8x1xf32>
    %c2_59 = arith.constant 2 : index
    %c0_60 = arith.constant 0 : index
    %c0_61 = arith.constant 0 : index
    %100 = vector.load %arg8[%c2_59, %c0_60, %c0_61] : memref<4x8x1xf32, #tpu.memory_space<vmem>>, vector<1x8x1xf32>
    %101 = vector.shape_cast %100 : vector<1x8x1xf32> to vector<8x1xf32>
    %102 = vector.shape_cast %99 : vector<8x1xf32> to vector<1x8x1xf32>
    tpu.vector_store %arg8[%c2_59, %c0_60, %c0_61], %102 {strides = array<i32>} : memref<4x8x1xf32, #tpu.memory_space<vmem>>, vector<1x8x1xf32>,
    %c2_62 = arith.constant 2 : index
    %c0_63 = arith.constant 0 : index
    %c0_64 = arith.constant 0 : index
    %103 = vector.load %arg9[%c2_62, %c0_63, %c0_64] : memref<4x8x8xf32, #tpu.memory_space<vmem>>, vector<1x8x8xf32>
    %104 = vector.shape_cast %103 : vector<1x8x8xf32> to vector<8x8xf32>
    %105 = vector.broadcast %90 : vector<8x1xf32> to vector<8x8xf32>
    %106 = arith.mulf %105, %104 : vector<8x8xf32>
    %107 = arith.truncf %93 : vector<8x8xf32> to vector<8x8xbf16>
    %108 = vector.extract_strided_slice %8 {offsets = [0, 16], sizes = [8, 8], strides = [1, 1]} : vector<8x32xbf16> to vector<8x8xbf16>
    %cst_65 = arith.constant dense<0.000000e+00> : vector<8x8xf32>
    %109 = tpu.matmul %107, %108, %cst_65 {dimension_numbers = #tpu.dot_dimension_numbers<[1], [0], [0], [1], [0, 0, 1, 1], [], []>} : vector<8x8xbf16>, vector<8x8xbf16>, vector<8x8xf32> -> vector<8x8xf32>
    %110 = arith.addf %106, %109 : vector<8x8xf32>
    %c2_66 = arith.constant 2 : index
    %c0_67 = arith.constant 0 : index
    %c0_68 = arith.constant 0 : index
    %111 = vector.load %arg9[%c2_66, %c0_67, %c0_68] : memref<4x8x8xf32, #tpu.memory_space<vmem>>, vector<1x8x8xf32>
    %112 = vector.shape_cast %111 : vector<1x8x8xf32> to vector<8x8xf32>
    %113 = vector.shape_cast %110 : vector<8x8xf32> to vector<1x8x8xf32>
    tpu.vector_store %arg9[%c2_66, %c0_67, %c0_68], %113 {strides = array<i32>} : memref<4x8x8xf32, #tpu.memory_space<vmem>>, vector<1x8x8xf32>,
    %c2_69 = arith.constant 2 : index
    %c0_70 = arith.constant 0 : index
    %c0_71 = arith.constant 0 : index
    %114 = vector.load %arg7[%c2_69, %c0_70, %c0_71] : memref<4x8x1xf32, #tpu.memory_space<vmem>>, vector<1x8x1xf32>
    %115 = vector.shape_cast %114 : vector<1x8x1xf32> to vector<8x1xf32>
    %116 = vector.shape_cast %88 : vector<8x1xf32> to vector<1x8x1xf32>
    tpu.vector_store %arg7[%c2_69, %c0_70, %c0_71], %116 {strides = array<i32>} : memref<4x8x1xf32, #tpu.memory_space<vmem>>, vector<1x8x1xf32>,
    %117 = vector.extract_strided_slice %4 {offsets = [0, 24], sizes = [8, 8], strides = [1, 1]} : vector<8x32xbf16> to vector<8x8xbf16>
    %118 = vector.extract_strided_slice %6 {offsets = [0, 24], sizes = [8, 8], strides = [1, 1]} : vector<8x32xbf16> to vector<8x8xbf16>
    %cst_72 = arith.constant dense<0.000000e+00> : vector<8x8xf32>
    %119 = tpu.matmul %117, %118, %cst_72 {dimension_numbers = #tpu.dot_dimension_numbers<[1], [1], [0], [0], [0, 0, 1, 0], [], []>} : vector<8x8xbf16>, vector<8x8xbf16>, vector<8x8xf32> -> vector<8x8xf32>
    %c3 = arith.constant 3 : index
    %c0_73 = arith.constant 0 : index
    %c0_74 = arith.constant 0 : index
    %120 = vector.load %arg7[%c3, %c0_73, %c0_74] : memref<4x8x1xf32, #tpu.memory_space<vmem>>, vector<1x8x1xf32>
    %121 = vector.shape_cast %120 : vector<1x8x1xf32> to vector<8x1xf32>
    %cst_75 = arith.constant dense<0xFF800000> : vector<8xf32>
    %122 = vector.multi_reduction <maximumf>, %119, %cst_75 [1] : vector<8x8xf32> to vector<8xf32>
    %123 = vector.shape_cast %122 : vector<8xf32> to vector<8x1xf32>
    %124 = arith.maximumf %121, %123 : vector<8x1xf32>
    %125 = arith.subf %121, %124 : vector<8x1xf32>
    %126 = math.exp %125 : vector<8x1xf32>
    %127 = vector.broadcast %124 : vector<8x1xf32> to vector<8x8xf32>
    %128 = arith.subf %119, %127 : vector<8x8xf32>
    %129 = math.exp %128 : vector<8x8xf32>
    %c3_76 = arith.constant 3 : index
    %c0_77 = arith.constant 0 : index
    %c0_78 = arith.constant 0 : index
    %130 = vector.load %arg8[%c3_76, %c0_77, %c0_78] : memref<4x8x1xf32, #tpu.memory_space<vmem>>, vector<1x8x1xf32>
    %131 = vector.shape_cast %130 : vector<1x8x1xf32> to vector<8x1xf32>
    %132 = arith.mulf %126, %131 : vector<8x1xf32>
    %cst_79 = arith.constant dense<0.000000e+00> : vector<8xf32>
    %133 = vector.multi_reduction <add>, %129, %cst_79 [1] : vector<8x8xf32> to vector<8xf32>
    %134 = vector.shape_cast %133 : vector<8xf32> to vector<8x1xf32>
    %135 = arith.addf %132, %134 : vector<8x1xf32>
    %c3_80 = arith.constant 3 : index
    %c0_81 = arith.constant 0 : index
    %c0_82 = arith.constant 0 : index
    %136 = vector.load %arg8[%c3_80, %c0_81, %c0_82] : memref<4x8x1xf32, #tpu.memory_space<vmem>>, vector<1x8x1xf32>
    %137 = vector.shape_cast %136 : vector<1x8x1xf32> to vector<8x1xf32>
    %138 = vector.shape_cast %135 : vector<8x1xf32> to vector<1x8x1xf32>
    tpu.vector_store %arg8[%c3_80, %c0_81, %c0_82], %138 {strides = array<i32>} : memref<4x8x1xf32, #tpu.memory_space<vmem>>, vector<1x8x1xf32>,
    %c3_83 = arith.constant 3 : index
    %c0_84 = arith.constant 0 : index
    %c0_85 = arith.constant 0 : index
    %139 = vector.load %arg9[%c3_83, %c0_84, %c0_85] : memref<4x8x8xf32, #tpu.memory_space<vmem>>, vector<1x8x8xf32>
    %140 = vector.shape_cast %139 : vector<1x8x8xf32> to vector<8x8xf32>
    %141 = vector.broadcast %126 : vector<8x1xf32> to vector<8x8xf32>
    %142 = arith.mulf %141, %140 : vector<8x8xf32>
    %143 = arith.truncf %129 : vector<8x8xf32> to vector<8x8xbf16>
    %144 = vector.extract_strided_slice %8 {offsets = [0, 24], sizes = [8, 8], strides = [1, 1]} : vector<8x32xbf16> to vector<8x8xbf16>
    %cst_86 = arith.constant dense<0.000000e+00> : vector<8x8xf32>
    %145 = tpu.matmul %143, %144, %cst_86 {dimension_numbers = #tpu.dot_dimension_numbers<[1], [0], [0], [1], [0, 0, 1, 1], [], []>} : vector<8x8xbf16>, vector<8x8xbf16>, vector<8x8xf32> -> vector<8x8xf32>
    %146 = arith.addf %142, %145 : vector<8x8xf32>
    %c3_87 = arith.constant 3 : index
    %c0_88 = arith.constant 0 : index
    %c0_89 = arith.constant 0 : index
    %147 = vector.load %arg9[%c3_87, %c0_88, %c0_89] : memref<4x8x8xf32, #tpu.memory_space<vmem>>, vector<1x8x8xf32>
    %148 = vector.shape_cast %147 : vector<1x8x8xf32> to vector<8x8xf32>
    %149 = vector.shape_cast %146 : vector<8x8xf32> to vector<1x8x8xf32>
    tpu.vector_store %arg9[%c3_87, %c0_88, %c0_89], %149 {strides = array<i32>} : memref<4x8x8xf32, #tpu.memory_space<vmem>>, vector<1x8x8xf32>,
    %c3_90 = arith.constant 3 : index
    %c0_91 = arith.constant 0 : index
    %c0_92 = arith.constant 0 : index
    %150 = vector.load %arg7[%c3_90, %c0_91, %c0_92] : memref<4x8x1xf32, #tpu.memory_space<vmem>>, vector<1x8x1xf32>
    %151 = vector.shape_cast %150 : vector<1x8x1xf32> to vector<8x1xf32>
    %152 = vector.shape_cast %124 : vector<8x1xf32> to vector<1x8x1xf32>
    tpu.vector_store %arg7[%c3_90, %c0_91, %c0_92], %152 {strides = array<i32>} : memref<4x8x1xf32, #tpu.memory_space<vmem>>, vector<1x8x1xf32>,
    %c0_i32_93 = arith.constant 0 : i32
    %153 = arith.cmpi eq, %arg2, %c0_i32_93 : i32
    %154 = arith.extui %153 : i1 to i32
    %c0_i32_94 = arith.constant 0 : i32
    %155 = arith.cmpi ne, %154, %c0_i32_94 : i32
    scf.if %155 {
      %c0_95 = arith.constant 0 : index
      %c0_96 = arith.constant 0 : index
      %c0_97 = arith.constant 0 : index
      %156 = vector.load %arg9[%c0_95, %c0_96, %c0_97] : memref<4x8x8xf32, #tpu.memory_space<vmem>>, vector<1x8x8xf32>
      %157 = vector.shape_cast %156 : vector<1x8x8xf32> to vector<8x8xf32>
      %c0_98 = arith.constant 0 : index
      %c0_99 = arith.constant 0 : index
      %c0_100 = arith.constant 0 : index
      %158 = vector.load %arg8[%c0_98, %c0_99, %c0_100] : memref<4x8x1xf32, #tpu.memory_space<vmem>>, vector<1x8x1xf32>
      %159 = vector.shape_cast %158 : vector<1x8x1xf32> to vector<8x1xf32>
      %160 = tpu.reciprocal %159 {approx = true} : vector<8x1xf32> -> vector<8x1xf32>
      %161 = vector.broadcast %160 : vector<8x1xf32> to vector<8x8xf32>
      %162 = arith.mulf %157, %161 : vector<8x8xf32>
      %c1_101 = arith.constant 1 : index
      %c0_102 = arith.constant 0 : index
      %c0_103 = arith.constant 0 : index
      %163 = vector.load %arg9[%c1_101, %c0_102, %c0_103] : memref<4x8x8xf32, #tpu.memory_space<vmem>>, vector<1x8x8xf32>
      %164 = vector.shape_cast %163 : vector<1x8x8xf32> to vector<8x8xf32>
      %c1_104 = arith.constant 1 : index
      %c0_105 = arith.constant 0 : index
      %c0_106 = arith.constant 0 : index
      %165 = vector.load %arg8[%c1_104, %c0_105, %c0_106] : memref<4x8x1xf32, #tpu.memory_space<vmem>>, vector<1x8x1xf32>
      %166 = vector.shape_cast %165 : vector<1x8x1xf32> to vector<8x1xf32>
      %167 = tpu.reciprocal %166 {approx = true} : vector<8x1xf32> -> vector<8x1xf32>
      %168 = vector.broadcast %167 : vector<8x1xf32> to vector<8x8xf32>
      %169 = arith.mulf %164, %168 : vector<8x8xf32>
      %c2_107 = arith.constant 2 : index
      %c0_108 = arith.constant 0 : index
      %c0_109 = arith.constant 0 : index
      %170 = vector.load %arg9[%c2_107, %c0_108, %c0_109] : memref<4x8x8xf32, #tpu.memory_space<vmem>>, vector<1x8x8xf32>
      %171 = vector.shape_cast %170 : vector<1x8x8xf32> to vector<8x8xf32>
      %c2_110 = arith.constant 2 : index
      %c0_111 = arith.constant 0 : index
      %c0_112 = arith.constant 0 : index
      %172 = vector.load %arg8[%c2_110, %c0_111, %c0_112] : memref<4x8x1xf32, #tpu.memory_space<vmem>>, vector<1x8x1xf32>
      %173 = vector.shape_cast %172 : vector<1x8x1xf32> to vector<8x1xf32>
      %174 = tpu.reciprocal %173 {approx = true} : vector<8x1xf32> -> vector<8x1xf32>
      %175 = vector.broadcast %174 : vector<8x1xf32> to vector<8x8xf32>
      %176 = arith.mulf %171, %175 : vector<8x8xf32>
      %c3_113 = arith.constant 3 : index
      %c0_114 = arith.constant 0 : index
      %c0_115 = arith.constant 0 : index
      %177 = vector.load %arg9[%c3_113, %c0_114, %c0_115] : memref<4x8x8xf32, #tpu.memory_space<vmem>>, vector<1x8x8xf32>
      %178 = vector.shape_cast %177 : vector<1x8x8xf32> to vector<8x8xf32>
      %c3_116 = arith.constant 3 : index
      %c0_117 = arith.constant 0 : index
      %c0_118 = arith.constant 0 : index
      %179 = vector.load %arg8[%c3_116, %c0_117, %c0_118] : memref<4x8x1xf32, #tpu.memory_space<vmem>>, vector<1x8x1xf32>
      %180 = vector.shape_cast %179 : vector<1x8x1xf32> to vector<8x1xf32>
      %181 = tpu.reciprocal %180 {approx = true} : vector<8x1xf32> -> vector<8x1xf32>
      %182 = vector.broadcast %181 : vector<8x1xf32> to vector<8x8xf32>
      %183 = arith.mulf %178, %182 : vector<8x8xf32>
      %184 = tpu.concatenate %162, %169, %176, %183 in 1 : vector<8x8xf32>, vector<8x8xf32>, vector<8x8xf32>, vector<8x8xf32> -> vector<8x32xf32>
      %185 = arith.truncf %184 : vector<8x32xf32> to vector<8x32xbf16>
      %c0_119 = arith.constant 0 : index
      %c0_120 = arith.constant 0 : index
      %c0_121 = arith.constant 0 : index
      %186 = vector.load %arg6[%c0_119, %c0_120, %c0_121] : memref<1x8x32xbf16, #tpu.memory_space<vmem>>, vector<1x8x32xbf16>
      %187 = vector.shape_cast %186 : vector<1x8x32xbf16> to vector<8x32xbf16>
      %188 = vector.shape_cast %185 : vector<8x32xbf16> to vector<1x8x32xbf16>
      tpu.vector_store %arg6[%c0_119, %c0_120, %c0_121], %188 {strides = array<i32>} : memref<1x8x32xbf16, #tpu.memory_space<vmem>>, vector<1x8x32xbf16>,
    } else {
    }
    return
  }
  func.func @transform_0(%arg0: i32, %arg1: i32, %arg2: i32) -> (i32, i32, i32) {
    %c0_i32 = arith.constant 0 : i32
    %c0_i32_0 = arith.constant 0 : i32
    return %arg0, %arg1, %c0_i32 : i32, i32, i32
  }
  func.func @transform_1(%arg0: i32, %arg1: i32, %arg2: i32) -> (i32, i32, i32) {
    %c0_i32 = arith.constant 0 : i32
    %c0_i32_0 = arith.constant 0 : i32
    return %arg0, %arg2, %c0_i32 : i32, i32, i32
  }
  func.func @transform_2(%arg0: i32, %arg1: i32, %arg2: i32) -> (i32, i32, i32) {
    %c0_i32 = arith.constant 0 : i32
    %c0_i32_0 = arith.constant 0 : i32
    return %arg0, %arg2, %c0_i32 : i32, i32, i32
  }
  func.func @transform_3(%arg0: i32, %arg1: i32, %arg2: i32) -> (i32, i32, i32) {
    %c0_i32 = arith.constant 0 : i32
    %c0_i32_0 = arith.constant 0 : i32
    return %arg0, %arg1, %c0_i32 : i32, i32, i32
  }
}

module attributes {stable_mosaic.version = 11 : i64} {
  func.func @_ln_kernel(%arg0: i32, %arg1: memref<16x32xf32, #tpu.memory_space<vmem>>, %arg2: memref<1x32xf32, #tpu.memory_space<vmem>>, %arg3: memref<1x32xf32, #tpu.memory_space<vmem>>, %arg4: memref<16x32xf32, #tpu.memory_space<vmem>>) attributes {dimension_semantics = [#tpu.dimension_semantics<parallel>], iteration_bounds = array<i64: 1>, scalar_prefetch = 0 : i64, scratch_operands = 0 : i64, tpu.core_type = #tpu.core_type<tc>, window_params = [{transform_indices = @transform_0, window_bounds = array<i64: 16, 32>}, {pipeline_mode = #tpu.pipeline_mode<synchronous>, transform_indices = @transform_1, window_bounds = array<i64: 1, 32>}, {pipeline_mode = #tpu.pipeline_mode<synchronous>, transform_indices = @transform_2, window_bounds = array<i64: 1, 32>}, {transform_indices = @transform_3, window_bounds = array<i64: 16, 32>}]} {
    %c0 = arith.constant 0 : index
    %c0_0 = arith.constant 0 : index
    %0 = vector.load %arg1[%c0, %c0_0] : memref<16x32xf32, #tpu.memory_space<vmem>>, vector<16x32xf32>
    %c0_1 = arith.constant 0 : index
    %c0_2 = arith.constant 0 : index
    %1 = vector.load %arg2[%c0_1, %c0_2] : memref<1x32xf32, #tpu.memory_space<vmem>>, vector<1x32xf32>
    %c0_3 = arith.constant 0 : index
    %c0_4 = arith.constant 0 : index
    %2 = vector.load %arg3[%c0_3, %c0_4] : memref<1x32xf32, #tpu.memory_space<vmem>>, vector<1x32xf32>
    %cst = arith.constant dense<0.000000e+00> : vector<16xf32>
    %3 = vector.multi_reduction <add>, %0, %cst [1] : vector<16x32xf32> to vector<16xf32>
    %4 = vector.shape_cast %3 : vector<16xf32> to vector<16x1xf32>
    %cst_5 = arith.constant 3.200000e+01 : f32
    %5 = vector.broadcast %cst_5 : f32 to vector<16x1xf32>
    %6 = arith.divf %4, %5 : vector<16x1xf32>
    %7 = vector.broadcast %6 : vector<16x1xf32> to vector<16x32xf32>
    %8 = arith.subf %0, %7 : vector<16x32xf32>
    %9 = arith.mulf %8, %8 : vector<16x32xf32>
    %cst_6 = arith.constant dense<0.000000e+00> : vector<16xf32>
    %10 = vector.multi_reduction <add>, %9, %cst_6 [1] : vector<16x32xf32> to vector<16xf32>
    %11 = vector.shape_cast %10 : vector<16xf32> to vector<16x1xf32>
    %cst_7 = arith.constant 3.200000e+01 : f32
    %12 = vector.broadcast %cst_7 : f32 to vector<16x1xf32>
    %13 = arith.divf %11, %12 : vector<16x1xf32>
    %cst_8 = arith.constant 9.99999974E-6 : f32
    %14 = vector.broadcast %cst_8 : f32 to vector<16x1xf32>
    %15 = arith.addf %13, %14 : vector<16x1xf32>
    %16 = math.rsqrt %15 : vector<16x1xf32>
    %17 = vector.broadcast %16 : vector<16x1xf32> to vector<16x32xf32>
    %18 = arith.mulf %8, %17 : vector<16x32xf32>
    %19 = vector.broadcast %1 : vector<1x32xf32> to vector<16x32xf32>
    %20 = arith.mulf %18, %19 : vector<16x32xf32>
    %21 = vector.broadcast %2 : vector<1x32xf32> to vector<16x32xf32>
    %22 = arith.addf %20, %21 : vector<16x32xf32>
    %c0_9 = arith.constant 0 : index
    %c0_10 = arith.constant 0 : index
    %23 = vector.load %arg4[%c0_9, %c0_10] : memref<16x32xf32, #tpu.memory_space<vmem>>, vector<16x32xf32>
    tpu.vector_store %arg4[%c0_9, %c0_10], %22 {strides = array<i32>} : memref<16x32xf32, #tpu.memory_space<vmem>>, vector<16x32xf32>,
    return
  }
  func.func @transform_0(%arg0: i32) -> (i32, i32) {
    %c0_i32 = arith.constant 0 : i32
    %c0_i32_0 = arith.constant 0 : i32
    return %arg0, %c0_i32 : i32, i32
  }
  func.func @transform_1(%arg0: i32) -> (i32, i32) {
    %c0_i32 = arith.constant 0 : i32
    %c0_i32_0 = arith.constant 0 : i32
    %c0_i32_1 = arith.constant 0 : i32
    return %c0_i32, %c0_i32_0 : i32, i32
  }
  func.func @transform_2(%arg0: i32) -> (i32, i32) {
    %c0_i32 = arith.constant 0 : i32
    %c0_i32_0 = arith.constant 0 : i32
    %c0_i32_1 = arith.constant 0 : i32
    return %c0_i32, %c0_i32_0 : i32, i32
  }
  func.func @transform_3(%arg0: i32) -> (i32, i32) {
    %c0_i32 = arith.constant 0 : i32
    %c0_i32_0 = arith.constant 0 : i32
    return %arg0, %c0_i32 : i32, i32
  }
}

module attributes {stable_mosaic.version = 11 : i64} {
  func.func @_ffn_res_ln_kernel(%arg0: i32, %arg1: i32, %arg2: memref<16x32xf32, #tpu.memory_space<vmem>>, %arg3: memref<32x1024xbf16, #tpu.memory_space<vmem>>, %arg4: memref<1x1024xf32, #tpu.memory_space<vmem>>, %arg5: memref<1024x32xbf16, #tpu.memory_space<vmem>>, %arg6: memref<1x32xf32, #tpu.memory_space<vmem>>, %arg7: memref<1x32xf32, #tpu.memory_space<vmem>>, %arg8: memref<1x32xf32, #tpu.memory_space<vmem>>, %arg9: memref<16x32xf32, #tpu.memory_space<vmem>>, %arg10: memref<16x32xf32, #tpu.memory_space<vmem>>) attributes {dimension_semantics = [#tpu.dimension_semantics<parallel>, #tpu.dimension_semantics<arbitrary>], iteration_bounds = array<i64: 1, 2>, scalar_prefetch = 0 : i64, scratch_operands = 1 : i64, tpu.core_type = #tpu.core_type<tc>, window_params = [{transform_indices = @transform_0, window_bounds = array<i64: 16, 32>}, {transform_indices = @transform_1, window_bounds = array<i64: 32, 1024>}, {transform_indices = @transform_2, window_bounds = array<i64: 1, 1024>}, {transform_indices = @transform_3, window_bounds = array<i64: 1024, 32>}, {pipeline_mode = #tpu.pipeline_mode<synchronous>, transform_indices = @transform_4, window_bounds = array<i64: 1, 32>}, {pipeline_mode = #tpu.pipeline_mode<synchronous>, transform_indices = @transform_5, window_bounds = array<i64: 1, 32>}, {pipeline_mode = #tpu.pipeline_mode<synchronous>, transform_indices = @transform_6, window_bounds = array<i64: 1, 32>}, {transform_indices = @transform_7, window_bounds = array<i64: 16, 32>}]} {
    %c0_i32 = arith.constant 0 : i32
    %0 = arith.cmpi eq, %arg1, %c0_i32 : i32
    %1 = arith.extui %0 : i1 to i32
    %c0_i32_0 = arith.constant 0 : i32
    %2 = arith.cmpi ne, %1, %c0_i32_0 : i32
    scf.if %2 {
      %cst_15 = arith.constant 0.000000e+00 : f32
      %21 = vector.broadcast %cst_15 : f32 to vector<16x32xf32>
      %c0_16 = arith.constant 0 : index
      %c0_17 = arith.constant 0 : index
      %22 = vector.load %arg10[%c0_16, %c0_17] : memref<16x32xf32, #tpu.memory_space<vmem>>, vector<16x32xf32>
      tpu.vector_store %arg10[%c0_16, %c0_17], %21 {strides = array<i32>} : memref<16x32xf32, #tpu.memory_space<vmem>>, vector<16x32xf32>,
    } else {
    }
    %c0 = arith.constant 0 : index
    %c0_1 = arith.constant 0 : index
    %3 = vector.load %arg2[%c0, %c0_1] : memref<16x32xf32, #tpu.memory_space<vmem>>, vector<16x32xf32>
    %4 = arith.truncf %3 : vector<16x32xf32> to vector<16x32xbf16>
    %c0_2 = arith.constant 0 : index
    %c0_3 = arith.constant 0 : index
    %5 = vector.load %arg3[%c0_2, %c0_3] : memref<32x1024xbf16, #tpu.memory_space<vmem>>, vector<32x1024xbf16>
    %cst = arith.constant dense<0.000000e+00> : vector<16x1024xf32>
    %6 = tpu.matmul %4, %5, %cst {dimension_numbers = #tpu.dot_dimension_numbers<[1], [0], [0], [1], [0, 0, 1, 1], [], []>} : vector<16x32xbf16>, vector<32x1024xbf16>, vector<16x1024xf32> -> vector<16x1024xf32>
    %c0_4 = arith.constant 0 : index
    %c0_5 = arith.constant 0 : index
    %7 = vector.load %arg4[%c0_4, %c0_5] : memref<1x1024xf32, #tpu.memory_space<vmem>>, vector<1x1024xf32>
    %8 = vector.broadcast %7 : vector<1x1024xf32> to vector<16x1024xf32>
    %9 = arith.addf %6, %8 : vector<16x1024xf32>
    %cst_6 = arith.constant 0.000000e+00 : f32
    %10 = vector.broadcast %cst_6 : f32 to vector<16x1024xf32>
    %11 = arith.maximumf %9, %10 : vector<16x1024xf32>
    %c0_7 = arith.constant 0 : index
    %c0_8 = arith.constant 0 : index
    %12 = vector.load %arg10[%c0_7, %c0_8] : memref<16x32xf32, #tpu.memory_space<vmem>>, vector<16x32xf32>
    %13 = arith.truncf %11 : vector<16x1024xf32> to vector<16x1024xbf16>
    %c0_9 = arith.constant 0 : index
    %c0_10 = arith.constant 0 : index
    %14 = vector.load %arg5[%c0_9, %c0_10] : memref<1024x32xbf16, #tpu.memory_space<vmem>>, vector<1024x32xbf16>
    %cst_11 = arith.constant dense<0.000000e+00> : vector<16x32xf32>
    %15 = tpu.matmul %13, %14, %cst_11 {dimension_numbers = #tpu.dot_dimension_numbers<[1], [0], [0], [1], [0, 0, 1, 1], [], []>} : vector<16x1024xbf16>, vector<1024x32xbf16>, vector<16x32xf32> -> vector<16x32xf32>
    %16 = arith.addf %12, %15 : vector<16x32xf32>
    %c0_12 = arith.constant 0 : index
    %c0_13 = arith.constant 0 : index
    %17 = vector.load %arg10[%c0_12, %c0_13] : memref<16x32xf32, #tpu.memory_space<vmem>>, vector<16x32xf32>
    tpu.vector_store %arg10[%c0_12, %c0_13], %16 {strides = array<i32>} : memref<16x32xf32, #tpu.memory_space<vmem>>, vector<16x32xf32>,
    %c1_i32 = arith.constant 1 : i32
    %18 = arith.cmpi eq, %arg1, %c1_i32 : i32
    %19 = arith.extui %18 : i1 to i32
    %c0_i32_14 = arith.constant 0 : i32
    %20 = arith.cmpi ne, %19, %c0_i32_14 : i32
    scf.if %20 {
      %c0_15 = arith.constant 0 : index
      %c0_16 = arith.constant 0 : index
      %21 = vector.load %arg10[%c0_15, %c0_16] : memref<16x32xf32, #tpu.memory_space<vmem>>, vector<16x32xf32>
      %c0_17 = arith.constant 0 : index
      %c0_18 = arith.constant 0 : index
      %22 = vector.load %arg6[%c0_17, %c0_18] : memref<1x32xf32, #tpu.memory_space<vmem>>, vector<1x32xf32>
      %23 = vector.broadcast %22 : vector<1x32xf32> to vector<16x32xf32>
      %24 = arith.addf %21, %23 : vector<16x32xf32>
      %25 = arith.addf %24, %3 : vector<16x32xf32>
      %c0_19 = arith.constant 0 : index
      %c0_20 = arith.constant 0 : index
      %26 = vector.load %arg7[%c0_19, %c0_20] : memref<1x32xf32, #tpu.memory_space<vmem>>, vector<1x32xf32>
      %c0_21 = arith.constant 0 : index
      %c0_22 = arith.constant 0 : index
      %27 = vector.load %arg8[%c0_21, %c0_22] : memref<1x32xf32, #tpu.memory_space<vmem>>, vector<1x32xf32>
      %cst_23 = arith.constant dense<0.000000e+00> : vector<16xf32>
      %28 = vector.multi_reduction <add>, %25, %cst_23 [1] : vector<16x32xf32> to vector<16xf32>
      %29 = vector.shape_cast %28 : vector<16xf32> to vector<16x1xf32>
      %cst_24 = arith.constant 3.200000e+01 : f32
      %30 = vector.broadcast %cst_24 : f32 to vector<16x1xf32>
      %31 = arith.divf %29, %30 : vector<16x1xf32>
      %32 = vector.broadcast %31 : vector<16x1xf32> to vector<16x32xf32>
      %33 = arith.subf %25, %32 : vector<16x32xf32>
      %34 = arith.mulf %33, %33 : vector<16x32xf32>
      %cst_25 = arith.constant dense<0.000000e+00> : vector<16xf32>
      %35 = vector.multi_reduction <add>, %34, %cst_25 [1] : vector<16x32xf32> to vector<16xf32>
      %36 = vector.shape_cast %35 : vector<16xf32> to vector<16x1xf32>
      %cst_26 = arith.constant 3.200000e+01 : f32
      %37 = vector.broadcast %cst_26 : f32 to vector<16x1xf32>
      %38 = arith.divf %36, %37 : vector<16x1xf32>
      %cst_27 = arith.constant 9.99999974E-6 : f32
      %39 = vector.broadcast %cst_27 : f32 to vector<16x1xf32>
      %40 = arith.addf %38, %39 : vector<16x1xf32>
      %41 = math.rsqrt %40 : vector<16x1xf32>
      %42 = vector.broadcast %41 : vector<16x1xf32> to vector<16x32xf32>
      %43 = arith.mulf %33, %42 : vector<16x32xf32>
      %44 = vector.broadcast %26 : vector<1x32xf32> to vector<16x32xf32>
      %45 = arith.mulf %43, %44 : vector<16x32xf32>
      %46 = vector.broadcast %27 : vector<1x32xf32> to vector<16x32xf32>
      %47 = arith.addf %45, %46 : vector<16x32xf32>
      %c0_28 = arith.constant 0 : index
      %c0_29 = arith.constant 0 : index
      %48 = vector.load %arg9[%c0_28, %c0_29] : memref<16x32xf32, #tpu.memory_space<vmem>>, vector<16x32xf32>
      tpu.vector_store %arg9[%c0_28, %c0_29], %47 {strides = array<i32>} : memref<16x32xf32, #tpu.memory_space<vmem>>, vector<16x32xf32>,
    } else {
    }
    return
  }
  func.func @transform_0(%arg0: i32, %arg1: i32) -> (i32, i32) {
    %c0_i32 = arith.constant 0 : i32
    %c0_i32_0 = arith.constant 0 : i32
    return %arg0, %c0_i32 : i32, i32
  }
  func.func @transform_1(%arg0: i32, %arg1: i32) -> (i32, i32) {
    %c0_i32 = arith.constant 0 : i32
    %c0_i32_0 = arith.constant 0 : i32
    return %c0_i32, %arg1 : i32, i32
  }
  func.func @transform_2(%arg0: i32, %arg1: i32) -> (i32, i32) {
    %c0_i32 = arith.constant 0 : i32
    %c0_i32_0 = arith.constant 0 : i32
    return %c0_i32, %arg1 : i32, i32
  }
  func.func @transform_3(%arg0: i32, %arg1: i32) -> (i32, i32) {
    %c0_i32 = arith.constant 0 : i32
    %c0_i32_0 = arith.constant 0 : i32
    return %arg1, %c0_i32 : i32, i32
  }
  func.func @transform_4(%arg0: i32, %arg1: i32) -> (i32, i32) {
    %c0_i32 = arith.constant 0 : i32
    %c0_i32_0 = arith.constant 0 : i32
    %c0_i32_1 = arith.constant 0 : i32
    return %c0_i32, %c0_i32_0 : i32, i32
  }
  func.func @transform_5(%arg0: i32, %arg1: i32) -> (i32, i32) {
    %c0_i32 = arith.constant 0 : i32
    %c0_i32_0 = arith.constant 0 : i32
    %c0_i32_1 = arith.constant 0 : i32
    return %c0_i32, %c0_i32_0 : i32, i32
  }
  func.func @transform_6(%arg0: i32, %arg1: i32) -> (i32, i32) {
    %c0_i32 = arith.constant 0 : i32
    %c0_i32_0 = arith.constant 0 : i32
    %c0_i32_1 = arith.constant 0 : i32
    return %c0_i32, %c0_i32_0 : i32, i32
  }
  func.func @transform_7(%arg0: i32, %arg1: i32) -> (i32, i32) {
    %c0_i32 = arith.constant 0 : i32
    %c0_i32_0 = arith.constant 0 : i32
    return %arg0, %c0_i32 : i32, i32
  }
}

module attributes {stable_mosaic.version = 11 : i64} {
  func.func @_kv_proj_kernel(%arg0: i32, %arg1: memref<16x32xf32, #tpu.memory_space<vmem>>, %arg2: memref<32x64xbf16, #tpu.memory_space<vmem>>, %arg3: memref<1x64xf32, #tpu.memory_space<vmem>>, %arg4: memref<16x32xbf16, #tpu.memory_space<vmem>>, %arg5: memref<16x32xbf16, #tpu.memory_space<vmem>>) attributes {dimension_semantics = [#tpu.dimension_semantics<parallel>], iteration_bounds = array<i64: 1>, scalar_prefetch = 0 : i64, scratch_operands = 0 : i64, tpu.core_type = #tpu.core_type<tc>, window_params = [{transform_indices = @transform_0, window_bounds = array<i64: 16, 32>}, {pipeline_mode = #tpu.pipeline_mode<synchronous>, transform_indices = @transform_1, window_bounds = array<i64: 32, 64>}, {pipeline_mode = #tpu.pipeline_mode<synchronous>, transform_indices = @transform_2, window_bounds = array<i64: 1, 64>}, {transform_indices = @transform_3, window_bounds = array<i64: 16, 32>}, {transform_indices = @transform_4, window_bounds = array<i64: 16, 32>}]} {
    %c0 = arith.constant 0 : index
    %c0_0 = arith.constant 0 : index
    %0 = vector.load %arg1[%c0, %c0_0] : memref<16x32xf32, #tpu.memory_space<vmem>>, vector<16x32xf32>
    %1 = arith.truncf %0 : vector<16x32xf32> to vector<16x32xbf16>
    %c0_1 = arith.constant 0 : index
    %c0_2 = arith.constant 0 : index
    %2 = vector.load %arg2[%c0_1, %c0_2] : memref<32x64xbf16, #tpu.memory_space<vmem>>, vector<32x64xbf16>
    %cst = arith.constant dense<0.000000e+00> : vector<16x64xf32>
    %3 = tpu.matmul %1, %2, %cst {dimension_numbers = #tpu.dot_dimension_numbers<[1], [0], [0], [1], [0, 0, 1, 1], [], []>} : vector<16x32xbf16>, vector<32x64xbf16>, vector<16x64xf32> -> vector<16x64xf32>
    %c0_3 = arith.constant 0 : index
    %c0_4 = arith.constant 0 : index
    %4 = vector.load %arg3[%c0_3, %c0_4] : memref<1x64xf32, #tpu.memory_space<vmem>>, vector<1x64xf32>
    %5 = vector.broadcast %4 : vector<1x64xf32> to vector<16x64xf32>
    %6 = arith.addf %3, %5 : vector<16x64xf32>
    %7 = vector.extract_strided_slice %6 {offsets = [0, 0], sizes = [16, 32], strides = [1, 1]} : vector<16x64xf32> to vector<16x32xf32>
    %8 = arith.truncf %7 : vector<16x32xf32> to vector<16x32xbf16>
    %c0_5 = arith.constant 0 : index
    %c0_6 = arith.constant 0 : index
    %9 = vector.load %arg4[%c0_5, %c0_6] : memref<16x32xbf16, #tpu.memory_space<vmem>>, vector<16x32xbf16>
    tpu.vector_store %arg4[%c0_5, %c0_6], %8 {strides = array<i32>} : memref<16x32xbf16, #tpu.memory_space<vmem>>, vector<16x32xbf16>,
    %10 = vector.extract_strided_slice %6 {offsets = [0, 32], sizes = [16, 32], strides = [1, 1]} : vector<16x64xf32> to vector<16x32xf32>
    %11 = arith.truncf %10 : vector<16x32xf32> to vector<16x32xbf16>
    %c0_7 = arith.constant 0 : index
    %c0_8 = arith.constant 0 : index
    %12 = vector.load %arg5[%c0_7, %c0_8] : memref<16x32xbf16, #tpu.memory_space<vmem>>, vector<16x32xbf16>
    tpu.vector_store %arg5[%c0_7, %c0_8], %11 {strides = array<i32>} : memref<16x32xbf16, #tpu.memory_space<vmem>>, vector<16x32xbf16>,
    return
  }
  func.func @transform_0(%arg0: i32) -> (i32, i32) {
    %c0_i32 = arith.constant 0 : i32
    %c0_i32_0 = arith.constant 0 : i32
    return %arg0, %c0_i32 : i32, i32
  }
  func.func @transform_1(%arg0: i32) -> (i32, i32) {
    %c0_i32 = arith.constant 0 : i32
    %c0_i32_0 = arith.constant 0 : i32
    %c0_i32_1 = arith.constant 0 : i32
    return %c0_i32, %c0_i32_0 : i32, i32
  }
  func.func @transform_2(%arg0: i32) -> (i32, i32) {
    %c0_i32 = arith.constant 0 : i32
    %c0_i32_0 = arith.constant 0 : i32
    %c0_i32_1 = arith.constant 0 : i32
    return %c0_i32, %c0_i32_0 : i32, i32
  }
  func.func @transform_3(%arg0: i32) -> (i32, i32) {
    %c0_i32 = arith.constant 0 : i32
    %c0_i32_0 = arith.constant 0 : i32
    return %arg0, %c0_i32 : i32, i32
  }
  func.func @transform_4(%arg0: i32) -> (i32, i32) {
    %c0_i32 = arith.constant 0 : i32
    %c0_i32_0 = arith.constant 0 : i32
    return %arg0, %c0_i32 : i32, i32
  }
}

module attributes {stable_mosaic.version = 11 : i64} {
  func.func @_matmul_bias_kernel(%arg0: i32, %arg1: i32, %arg2: i32, %arg3: memref<16x32xf32, #tpu.memory_space<vmem>>, %arg4: memref<32x64xbf16, #tpu.memory_space<vmem>>, %arg5: memref<1x64xf32, #tpu.memory_space<vmem>>, %arg6: memref<16x64xf32, #tpu.memory_space<vmem>>, %arg7: memref<16x64xf32, #tpu.memory_space<vmem>>) attributes {dimension_semantics = [#tpu.dimension_semantics<parallel>, #tpu.dimension_semantics<parallel>, #tpu.dimension_semantics<arbitrary>], iteration_bounds = array<i64: 1, 1, 1>, scalar_prefetch = 0 : i64, scratch_operands = 1 : i64, tpu.core_type = #tpu.core_type<tc>, window_params = [{transform_indices = @transform_0, window_bounds = array<i64: 16, 32>}, {transform_indices = @transform_1, window_bounds = array<i64: 32, 64>}, {transform_indices = @transform_2, window_bounds = array<i64: 1, 64>}, {transform_indices = @transform_3, window_bounds = array<i64: 16, 64>}]} {
    %c0_i32 = arith.constant 0 : i32
    %0 = arith.cmpi eq, %arg2, %c0_i32 : i32
    %1 = arith.extui %0 : i1 to i32
    %c0_i32_0 = arith.constant 0 : i32
    %2 = arith.cmpi ne, %1, %c0_i32_0 : i32
    scf.if %2 {
      %cst_10 = arith.constant 0.000000e+00 : f32
      %13 = vector.broadcast %cst_10 : f32 to vector<16x64xf32>
      %c0_11 = arith.constant 0 : index
      %c0_12 = arith.constant 0 : index
      %14 = vector.load %arg7[%c0_11, %c0_12] : memref<16x64xf32, #tpu.memory_space<vmem>>, vector<16x64xf32>
      tpu.vector_store %arg7[%c0_11, %c0_12], %13 {strides = array<i32>} : memref<16x64xf32, #tpu.memory_space<vmem>>, vector<16x64xf32>,
    } else {
    }
    %c0 = arith.constant 0 : index
    %c0_1 = arith.constant 0 : index
    %3 = vector.load %arg7[%c0, %c0_1] : memref<16x64xf32, #tpu.memory_space<vmem>>, vector<16x64xf32>
    %c0_2 = arith.constant 0 : index
    %c0_3 = arith.constant 0 : index
    %4 = vector.load %arg3[%c0_2, %c0_3] : memref<16x32xf32, #tpu.memory_space<vmem>>, vector<16x32xf32>
    %5 = arith.truncf %4 : vector<16x32xf32> to vector<16x32xbf16>
    %c0_4 = arith.constant 0 : index
    %c0_5 = arith.constant 0 : index
    %6 = vector.load %arg4[%c0_4, %c0_5] : memref<32x64xbf16, #tpu.memory_space<vmem>>, vector<32x64xbf16>
    %cst = arith.constant dense<0.000000e+00> : vector<16x64xf32>
    %7 = tpu.matmul %5, %6, %cst {dimension_numbers = #tpu.dot_dimension_numbers<[1], [0], [0], [1], [0, 0, 1, 1], [], []>} : vector<16x32xbf16>, vector<32x64xbf16>, vector<16x64xf32> -> vector<16x64xf32>
    %8 = arith.addf %3, %7 : vector<16x64xf32>
    %c0_6 = arith.constant 0 : index
    %c0_7 = arith.constant 0 : index
    %9 = vector.load %arg7[%c0_6, %c0_7] : memref<16x64xf32, #tpu.memory_space<vmem>>, vector<16x64xf32>
    tpu.vector_store %arg7[%c0_6, %c0_7], %8 {strides = array<i32>} : memref<16x64xf32, #tpu.memory_space<vmem>>, vector<16x64xf32>,
    %c0_i32_8 = arith.constant 0 : i32
    %10 = arith.cmpi eq, %arg2, %c0_i32_8 : i32
    %11 = arith.extui %10 : i1 to i32
    %c0_i32_9 = arith.constant 0 : i32
    %12 = arith.cmpi ne, %11, %c0_i32_9 : i32
    scf.if %12 {
      %c0_10 = arith.constant 0 : index
      %c0_11 = arith.constant 0 : index
      %13 = vector.load %arg7[%c0_10, %c0_11] : memref<16x64xf32, #tpu.memory_space<vmem>>, vector<16x64xf32>
      %c0_12 = arith.constant 0 : index
      %c0_13 = arith.constant 0 : index
      %14 = vector.load %arg5[%c0_12, %c0_13] : memref<1x64xf32, #tpu.memory_space<vmem>>, vector<1x64xf32>
      %15 = vector.broadcast %14 : vector<1x64xf32> to vector<16x64xf32>
      %16 = arith.addf %13, %15 : vector<16x64xf32>
      %c0_14 = arith.constant 0 : index
      %c0_15 = arith.constant 0 : index
      %17 = vector.load %arg6[%c0_14, %c0_15] : memref<16x64xf32, #tpu.memory_space<vmem>>, vector<16x64xf32>
      tpu.vector_store %arg6[%c0_14, %c0_15], %16 {strides = array<i32>} : memref<16x64xf32, #tpu.memory_space<vmem>>, vector<16x64xf32>,
    } else {
    }
    return
  }
  func.func @transform_0(%arg0: i32, %arg1: i32, %arg2: i32) -> (i32, i32) {
    %c0_i32 = arith.constant 0 : i32
    return %arg0, %arg2 : i32, i32
  }
  func.func @transform_1(%arg0: i32, %arg1: i32, %arg2: i32) -> (i32, i32) {
    %c0_i32 = arith.constant 0 : i32
    return %arg2, %arg1 : i32, i32
  }
  func.func @transform_2(%arg0: i32, %arg1: i32, %arg2: i32) -> (i32, i32) {
    %c0_i32 = arith.constant 0 : i32
    %c0_i32_0 = arith.constant 0 : i32
    return %c0_i32, %arg1 : i32, i32
  }
  func.func @transform_3(%arg0: i32, %arg1: i32, %arg2: i32) -> (i32, i32) {
    %c0_i32 = arith.constant 0 : i32
    return %arg0, %arg1 : i32, i32
  }
}

</mosaic_0001>

<llo_original>
// kernel: transformer_forward.36
$region0: #{transformer_forward.36}
  #allocation0 [shape = 'u32[]', space=smem, size = 0x4, offset = 0x4, fixed_abs, tag = 'smem constant byte address 0x4 - core index']
  #allocation1 [shape = 'u32[72,128]{1,0:T(1,128)}', space=vmem, size = 0x9000, scoped, tag = 'internal scratch']
  %s0 = inlined_call_operand.vmem [shape: f32[16,32], index: 0, kind: input, shape index: {}]
  %s1 = inlined_call_operand.vmem [shape: bf16[32,96], index: 1, kind: input, shape index: {}]
  %s2 = inlined_call_operand.vmem [shape: f32[1,96], index: 2, kind: input, shape index: {}]
  %s3 = inlined_call_operand.vmem [shape: bf16[16,32], index: 3, kind: output, shape index: {0}]
  %s4 = inlined_call_operand.vmem [shape: bf16[16,32], index: 4, kind: output, shape index: {1}]
  %s5 = inlined_call_operand.vmem [shape: bf16[16,32], index: 5, kind: output, shape index: {2}]
  %6 = xla_tuple %s3, %s4, %s5
  %s7 = sld [smem:[#allocation0]]
  $region38: #{transformer_forward.36} parent=0
    _
  %s9 = ssub.s32 1, %s7
  %s10 = scalar_select 0, %s9, %s7
  // Predicated region
  $region2: #{transformer_forward.36} parent=0 // pred_check
    _
  $region3: #{transformer_forward.36} parent=0 // pred_check_branch
    %12 = sbr.rel (0) target = $region5
  $region4: #{transformer_forward.36} parent=0 // pred_region
    _
  $region5: #{transformer_forward.36} parent=0 // pred_fallthru
    _
  // Predicated region
  $region6: #{transformer_forward.36} parent=0 // pred_check
    _
  $region7: #{transformer_forward.36} parent=0 // pred_check_branch
    %14 = sbr.rel (0) target = $region9
  $region8: #{transformer_forward.36} parent=0 // pred_region
    _
  $region9: #{transformer_forward.36} parent=0 // pred_fallthru
    _
  // Predicated region
  $region10: #{transformer_forward.36} parent=0 // pred_check
    _
  $region11: #{transformer_forward.36} parent=0 // pred_check_branch
    %16 = sbr.rel (0) target = $region13
  $region12: #{transformer_forward.36} parent=0 // pred_region
    _
  $region13: #{transformer_forward.36} parent=0 // pred_fallthru
    _
  %v18 = vld [vmem:[%s0] sm:$0xff]
  %v19 = vld [vmem:[%s0 + $0x8] sm:$0xff]
  %v20 = vpack.c.bf16 %v19, %v18
  %v21 = vld [vmem:[%s1] sm:$0xf]
  %v22 = vld [vmem:[%s1 + $0x4] sm:$0xf]
  %v23 = vld [vmem:[%s1 + $0x8] sm:$0xf]
  %v24 = vld [vmem:[%s1 + $0xc] sm:$0xf]
  %v25 = vld [vmem:[%s2] sm:$0x1]
  %v27 = vperm.slane %v25, 0
  %v33 = vunpack.c.l.b16 %v21
  %v34 = vunpack.c.l.b16 %v22
  %v35 = vunpack.c.l.b16 %v23
  %v36 = vunpack.c.l.b16 %v24
  %v37 = vpack.c.b16 %v34, %v33
  %v38 = vpack.c.b16 %v36, %v35
  %vm41 = vcmask 261120
  %v43 = vsel %vm41, %v20, 0
  %45 = vmatpush.bf16.msra.mxu0 0
  %46 = vmatpush.bf16.msra.mxu0 0
  %47 = vmatpush.bf16.msra.mxu0 0
  %48 = vmatpush.bf16.msra.mxu0 0
  %49 = vmatpush.bf16.msra.mxu0 0
  %50 = vmatpush.bf16.msra.mxu0 0
  %51 = vmatpush.bf16.msra.mxu0 %v38
  %52 = vmatpush.bf16.msra.mxu0 %v37
  %53 = vmatmul.bf16.gmra.mxu0 %v43
  %v54 = vpop.f32.mrf.mxu0
  %v55 = vadd.f32 %v27, %v54
  %v56 = vpop.f32.mrf.mxu0
  %v57 = vadd.f32 %v27, %v56
  %58 = vdwg.mxu0
  %v59 = vpack.c.bf16 %v55, %v55
  %v60 = vpack.c.bf16 %v57, %v57
  %vm61 = vcmask 257024
  %62 = vst.msk [vmem:[%s3] sm:$0xf] %vm61, %v59
  %63 = vst.msk [vmem:[%s3 + $0x4] sm:$0xf] %vm61, %v60
  %66 = vrot.lane.b32.xlu0 %v59, 96
  %v67 = vpop.permute.xlu0 %66
  %68 = vrot.lane.b32.xlu0 %v60, 96
  %v69 = vpop.permute.xlu0 %68
  %72 = vst.msk [vmem:[%s4] sm:$0xf] %vm61, %v67
  %73 = vst.msk [vmem:[%s4 + $0x4] sm:$0xf] %vm61, %v69
  %74 = vrot.lane.b32.xlu0 %v59, 64
  %v75 = vpop.permute.xlu0 %74
  %76 = vrot.lane.b32.xlu0 %v60, 64
  %v77 = vpop.permute.xlu0 %76
  %80 = vst.msk [vmem:[%s5] sm:$0xf] %vm61, %v75
  %81 = vst.msk [vmem:[%s5 + $0x4] sm:$0xf] %vm61, %v77
  // Predicated region
  $region14: #{transformer_forward.36} parent=0 // pred_check
    _
  $region15: #{transformer_forward.36} parent=0 // pred_check_branch
    %83 = sbr.rel (0) target = $region17
  $region16: #{transformer_forward.36} parent=0 // pred_region
    _
  $region17: #{transformer_forward.36} parent=0 // pred_fallthru
    _
  // Predicated region
  $region18: #{transformer_forward.36} parent=0 // pred_check
    _
  $region19: #{transformer_forward.36} parent=0 // pred_check_branch
    %85 = sbr.rel (0) target = $region21
  $region20: #{transformer_forward.36} parent=0 // pred_region
    _
  $region21: #{transformer_forward.36} parent=0 // pred_fallthru
    _
  // Predicated region
  $region22: #{transformer_forward.36} parent=0 // pred_check
    _
  $region23: #{transformer_forward.36} parent=0 // pred_check_branch
    %87 = sbr.rel (0) target = $region25
  $region24: #{transformer_forward.36} parent=0 // pred_region
    _
  $region25: #{transformer_forward.36} parent=0 // pred_fallthru
    _
  // Predicated region
  $region26: #{transformer_forward.36} parent=0 // pred_check
    _
  $region27: #{transformer_forward.36} parent=0 // pred_check_branch
    %89 = sbr.rel (0) target = $region29
  $region28: #{transformer_forward.36} parent=0 // pred_region
    _
  $region29: #{transformer_forward.36} parent=0 // pred_fallthru
    _
  // Predicated region
  $region30: #{transformer_forward.36} parent=0 // pred_check
    _
  $region31: #{transformer_forward.36} parent=0 // pred_check_branch
    %91 = sbr.rel (0) target = $region33
  $region32: #{transformer_forward.36} parent=0 // pred_region
    _
  $region33: #{transformer_forward.36} parent=0 // pred_fallthru
    _
  // Predicated region
  $region34: #{transformer_forward.36} parent=0 // pred_check
    _
  $region35: #{transformer_forward.36} parent=0 // pred_check_branch
    %93 = sbr.rel (0) target = $region37
  $region36: #{transformer_forward.36} parent=0 // pred_region
    _
  $region37: #{transformer_forward.36} parent=0 // pred_fallthru
    _

// kernel: transformer_forward.39
$region0: #{transformer_forward.39}
  #allocation0 [shape = 'u32[]', space=smem, size = 0x4, offset = 0x4, fixed_abs, tag = 'smem constant byte address 0x4 - core index']
  #allocation1 [shape = 'u32[72,128]{1,0:T(1,128)}', space=vmem, size = 0x9000, scoped, tag = 'internal scratch']
  #allocation2 [shape = 'f32[16,32]{1,0:T(8,128)}', space=vmem, size = 0x2000, scoped, tag = 'scratch operand']
  %s0 = inlined_call_operand.vmem [shape: f32[16,32], index: 0, kind: input, shape index: {}]
  %s1 = inlined_call_operand.vmem [shape: bf16[32,32], index: 1, kind: input, shape index: {}]
  %s2 = inlined_call_operand.vmem [shape: f32[1,32], index: 2, kind: input, shape index: {}]
  %s3 = inlined_call_operand.vmem [shape: bf16[16,32], index: 3, kind: output, shape index: {}]
  %s4 = sld [smem:[#allocation0]]
  $region30: #{transformer_forward.39} parent=0
    _
  %s6 = ssub.s32 1, %s4
  %s7 = scalar_select 0, %s6, %s4
  // Predicated region
  $region2: #{transformer_forward.39} parent=0 // pred_check
    _
  $region3: #{transformer_forward.39} parent=0 // pred_check_branch
    %9 = sbr.rel (0) target = $region5
  $region4: #{transformer_forward.39} parent=0 // pred_region
    _
  $region5: #{transformer_forward.39} parent=0 // pred_fallthru
    _
  // Predicated region
  $region6: #{transformer_forward.39} parent=0 // pred_check
    _
  $region7: #{transformer_forward.39} parent=0 // pred_check_branch
    %11 = sbr.rel (0) target = $region9
  $region8: #{transformer_forward.39} parent=0 // pred_region
    _
  $region9: #{transformer_forward.39} parent=0 // pred_fallthru
    _
  // Predicated region
  $region10: #{transformer_forward.39} parent=0 // pred_check
    _
  $region11: #{transformer_forward.39} parent=0 // pred_check_branch
    %13 = sbr.rel (0) target = $region13
  $region12: #{transformer_forward.39} parent=0 // pred_region
    _
  $region13: #{transformer_forward.39} parent=0 // pred_fallthru
    _
  %p15 = scmp.eq.s32.totalorder 0, 0
  // Predicated region
  $region14: #{transformer_forward.39} parent=0 // pred_check
    %p16 = pneg %p15
  $region15: #{transformer_forward.39} parent=0 // pred_check_branch
    %18 = sbr.rel (%p16) target = $region17
  $region16: #{transformer_forward.39} parent=0 // pred_region
    %vm19 = vcmask 261120
    %20 = vst.msk [vmem:[#allocation2] sm:$0xff] %vm19, 0.0
    %21 = vst.msk [vmem:[#allocation2 + $0x8] sm:$0xff] %vm19, 0.0
  $region17: #{transformer_forward.39} parent=0 // pred_fallthru
    _
  %v22 = vld [vmem:[#allocation2] sm:$0xff]
  %v23 = vld [vmem:[#allocation2 + $0x8] sm:$0xff]
  %v24 = vld [vmem:[%s0] sm:$0xff]
  %v25 = vld [vmem:[%s0 + $0x8] sm:$0xff]
  %v26 = vpack.c.bf16 %v25, %v24
  %v27 = vld [vmem:[%s1] sm:$0xf]
  %v28 = vld [vmem:[%s1 + $0x4] sm:$0xf]
  %v29 = vld [vmem:[%s1 + $0x8] sm:$0xf]
  %v30 = vld [vmem:[%s1 + $0xc] sm:$0xf]
  %v35 = vunpack.c.l.b16 %v27
  %v36 = vunpack.c.l.b16 %v28
  %v37 = vunpack.c.l.b16 %v29
  %v38 = vunpack.c.l.b16 %v30
  %v39 = vpack.c.b16 %v36, %v35
  %v40 = vpack.c.b16 %v38, %v37
  %vm43 = vcmask 261120
  %v45 = vsel %vm43, %v26, 0
  %47 = vmatpush.bf16.msra.mxu0 0
  %48 = vmatpush.bf16.msra.mxu0 0
  %49 = vmatpush.bf16.msra.mxu0 0
  %50 = vmatpush.bf16.msra.mxu0 0
  %51 = vmatpush.bf16.msra.mxu0 0
  %52 = vmatpush.bf16.msra.mxu0 0
  %53 = vmatpush.bf16.msra.mxu0 %v40
  %54 = vmatpush.bf16.msra.mxu0 %v39
  %55 = vmatmul.bf16.gmra.mxu0 %v45
  %v56 = vpop.f32.mrf.mxu0
  %v57 = vadd.f32 0.0, %v56
  %v58 = vpop.f32.mrf.mxu0
  %v59 = vadd.f32 0.0, %v58
  %60 = vdwg.mxu0
  %v61 = vadd.f32 %v22, %v57
  %v62 = vadd.f32 %v23, %v59
  %63 = vst.msk [vmem:[#allocation2] sm:$0xff] %vm43, %v61
  %64 = vst.msk [vmem:[#allocation2 + $0x8] sm:$0xff] %vm43, %v62
  // Predicated region
  $region18: #{transformer_forward.39} parent=0 // pred_check
    %p65 = pneg %p15
  $region19: #{transformer_forward.39} parent=0 // pred_check_branch
    %67 = sbr.rel (%p65) target = $region21
  $region20: #{transformer_forward.39} parent=0 // pred_region
    %v68 = vld [vmem:[#allocation2] sm:$0xff]
    %v69 = vld [vmem:[#allocation2 + $0x8] sm:$0xff]
    %v70 = vld [vmem:[%s2] sm:$0x1]
    %v72 = vperm.slane %v70, 0
    %v74 = vadd.f32 %v68, %v72
    %v75 = vadd.f32 %v69, %v72
    %v76 = vpack.c.bf16 %v74, %v74
    %v77 = vpack.c.bf16 %v75, %v75
    %vm78 = vcmask 257024
    %79 = vst.msk [vmem:[%s3] sm:$0xf] %vm78, %v76
    %80 = vst.msk [vmem:[%s3 + $0x4] sm:$0xf] %vm78, %v77
  $region21: #{transformer_forward.39} parent=0 // pred_fallthru
    _
  // Predicated region
  $region22: #{transformer_forward.39} parent=0 // pred_check
    _
  $region23: #{transformer_forward.39} parent=0 // pred_check_branch
    %82 = sbr.rel (0) target = $region25
  $region24: #{transformer_forward.39} parent=0 // pred_region
    _
  $region25: #{transformer_forward.39} parent=0 // pred_fallthru
    _
  // Predicated region
  $region26: #{transformer_forward.39} parent=0 // pred_check
    _
  $region27: #{transformer_forward.39} parent=0 // pred_check_branch
    %84 = sbr.rel (0) target = $region29
  $region28: #{transformer_forward.39} parent=0 // pred_region
    _
  $region29: #{transformer_forward.39} parent=0 // pred_fallthru
    _

// kernel: transformer_forward.38
$region0: #{transformer_forward.38}
  #allocation0 [shape = 'u32[]', space=smem, size = 0x4, offset = 0x4, fixed_abs, tag = 'smem constant byte address 0x4 - core index']
  #allocation1 [shape = 'u32[72,128]{1,0:T(1,128)}', space=vmem, size = 0x9000, scoped, tag = 'internal scratch']
  %s0 = inlined_call_operand.vmem [shape: bf16[16,32], index: 0, kind: input, shape index: {}]
  %s1 = inlined_call_operand.vmem [shape: bf16[32,32], index: 1, kind: input, shape index: {}]
  %s2 = inlined_call_operand.vmem [shape: f32[1,32], index: 2, kind: input, shape index: {}]
  %s3 = inlined_call_operand.vmem [shape: f32[16,32], index: 3, kind: input, shape index: {}]
  %s4 = inlined_call_operand.vmem [shape: f32[1,32], index: 4, kind: input, shape index: {}]
  %s5 = inlined_call_operand.vmem [shape: f32[1,32], index: 5, kind: input, shape index: {}]
  %s6 = inlined_call_operand.vmem [shape: f32[16,32], index: 6, kind: output, shape index: {}]
  %s7 = sld [smem:[#allocation0]]
  $region34: #{transformer_forward.38} parent=0
    _
  %s9 = ssub.s32 1, %s7
  %s10 = scalar_select 0, %s9, %s7
  // Predicated region
  $region2: #{transformer_forward.38} parent=0 // pred_check
    _
  $region3: #{transformer_forward.38} parent=0 // pred_check_branch
    %12 = sbr.rel (0) target = $region5
  $region4: #{transformer_forward.38} parent=0 // pred_region
    _
  $region5: #{transformer_forward.38} parent=0 // pred_fallthru
    _
  // Predicated region
  $region6: #{transformer_forward.38} parent=0 // pred_check
    _
  $region7: #{transformer_forward.38} parent=0 // pred_check_branch
    %14 = sbr.rel (0) target = $region9
  $region8: #{transformer_forward.38} parent=0 // pred_region
    _
  $region9: #{transformer_forward.38} parent=0 // pred_fallthru
    _
  // Predicated region
  $region10: #{transformer_forward.38} parent=0 // pred_check
    _
  $region11: #{transformer_forward.38} parent=0 // pred_check_branch
    %16 = sbr.rel (0) target = $region13
  $region12: #{transformer_forward.38} parent=0 // pred_region
    _
  $region13: #{transformer_forward.38} parent=0 // pred_fallthru
    _
  // Predicated region
  $region14: #{transformer_forward.38} parent=0 // pred_check
    _
  $region15: #{transformer_forward.38} parent=0 // pred_check_branch
    %18 = sbr.rel (0) target = $region17
  $region16: #{transformer_forward.38} parent=0 // pred_region
    _
  $region17: #{transformer_forward.38} parent=0 // pred_fallthru
    _
  // Predicated region
  $region18: #{transformer_forward.38} parent=0 // pred_check
    _
  $region19: #{transformer_forward.38} parent=0 // pred_check_branch
    %20 = sbr.rel (0) target = $region21
  $region20: #{transformer_forward.38} parent=0 // pred_region
    _
  $region21: #{transformer_forward.38} parent=0 // pred_fallthru
    _
  // Predicated region
  $region22: #{transformer_forward.38} parent=0 // pred_check
    _
  $region23: #{transformer_forward.38} parent=0 // pred_check_branch
    %22 = sbr.rel (0) target = $region25
  $region24: #{transformer_forward.38} parent=0 // pred_region
    _
  $region25: #{transformer_forward.38} parent=0 // pred_fallthru
    _
  %v24 = vld [vmem:[%s0] sm:$0xf]
  %v25 = vld [vmem:[%s0 + $0x4] sm:$0xf]
  %v26 = vld [vmem:[%s1] sm:$0xf]
  %v27 = vld [vmem:[%s1 + $0x4] sm:$0xf]
  %v28 = vld [vmem:[%s1 + $0x8] sm:$0xf]
  %v29 = vld [vmem:[%s1 + $0xc] sm:$0xf]
  %v30 = vld [vmem:[%s2] sm:$0x1]
  %v32 = vperm.slane %v30, 0
  %v36 = vunpack.c.l.b16 %v24
  %v37 = vunpack.c.l.b16 %v25
  %v38 = vpack.c.b16 %v37, %v36
  %v43 = vunpack.c.l.b16 %v26
  %v44 = vunpack.c.l.b16 %v27
  %v45 = vunpack.c.l.b16 %v28
  %v46 = vunpack.c.l.b16 %v29
  %v47 = vpack.c.b16 %v44, %v43
  %v48 = vpack.c.b16 %v46, %v45
  %vm51 = vcmask 261120
  %v53 = vsel %vm51, %v38, 0
  %55 = vmatpush.bf16.msra.mxu0 0
  %56 = vmatpush.bf16.msra.mxu0 0
  %57 = vmatpush.bf16.msra.mxu0 0
  %58 = vmatpush.bf16.msra.mxu0 0
  %59 = vmatpush.bf16.msra.mxu0 0
  %60 = vmatpush.bf16.msra.mxu0 0
  %61 = vmatpush.bf16.msra.mxu0 %v48
  %62 = vmatpush.bf16.msra.mxu0 %v47
  %63 = vmatmul.bf16.gmra.mxu0 %v53
  %v64 = vpop.f32.mrf.mxu0
  %v65 = vadd.f32 %v32, %v64
  %v66 = vpop.f32.mrf.mxu0
  %v67 = vadd.f32 %v32, %v66
  %68 = vdwg.mxu0
  %v69 = vld [vmem:[%s3] sm:$0xff]
  %v70 = vld [vmem:[%s3 + $0x8] sm:$0xff]
  %v71 = vadd.f32 %v65, %v69
  %v72 = vadd.f32 %v67, %v70
  %v73 = vld [vmem:[%s4] sm:$0x1]
  %v74 = vld [vmem:[%s5] sm:$0x1]
  %v75 = vsel %vm51, %v71, 0.0
  %76 = vadd.xlane.f32.xlu0 %v75
  %v77 = vpop.xlane.xlu0 %76
  %v78 = vsel %vm51, %v72, 0.0
  %79 = vadd.xlane.f32.xlu0 %v78
  %v80 = vpop.xlane.xlu0 %79
  %v81 = vrcp.pop 32.0
  %v82 = vmul.f32 32.0, %v81
  %v83 = vsub.f32 1.0, %v82
  %v84 = vmul.f32 %v81, %v83
  %v85 = vadd.f32 %v81, %v84
  %vm86 = vweird.f32 %v81
  %v87 = vsel %vm86, %v81, %v85
  %v88 = vmul.f32 %v77, %v87
  %v89 = vmul.f32 %v80, %v87
  %v90 = vsub.f32 %v71, %v88
  %v91 = vsub.f32 %v72, %v89
  %v92 = vmul.f32 %v90, %v90
  %v93 = vmul.f32 %v91, %v91
  %v94 = vsel %vm51, %v92, 0.0
  %95 = vadd.xlane.f32.xlu0 %v94
  %v96 = vpop.xlane.xlu0 %95
  %v97 = vsel %vm51, %v93, 0.0
  %98 = vadd.xlane.f32.xlu0 %v97
  %v99 = vpop.xlane.xlu0 %98
  %v100 = vmul.f32 %v96, %v87
  %v101 = vmul.f32 %v99, %v87
  %v102 = vadd.f32 %v100, 1e-05
  %v103 = vadd.f32 %v101, 1e-05
  %v104 = vrsqrt.pop %v102
  %v105 = vmul.f32 %v104, %v102
  %v106 = vmul.f32 %v105, %v104
  %v107 = vmul.f32 0.5, %v106
  %v108 = vsub.f32 1.5, %v107
  %v109 = vmul.f32 %v104, %v108
  %vm110 = vweird.f32 %v102
  %vm111 = vweird.f32 %v104
  %vm112 = vmor %vm110, %vm111
  %v113 = vsel %vm112, %v104, %v109
  %v114 = vrsqrt.pop %v103
  %v115 = vmul.f32 %v114, %v103
  %v116 = vmul.f32 %v115, %v114
  %v117 = vmul.f32 0.5, %v116
  %v118 = vsub.f32 1.5, %v117
  %v119 = vmul.f32 %v114, %v118
  %vm120 = vweird.f32 %v103
  %vm121 = vweird.f32 %v114
  %vm122 = vmor %vm120, %vm121
  %v123 = vsel %vm122, %v114, %v119
  %v124 = vmul.f32 %v90, %v113
  %v125 = vmul.f32 %v91, %v123
  %v127 = vperm.slane %v73, 0
  %v129 = vmul.f32 %v124, %v127
  %v130 = vmul.f32 %v125, %v127
  %v132 = vperm.slane %v74, 0
  %v134 = vadd.f32 %v129, %v132
  %v135 = vadd.f32 %v130, %v132
  %136 = vst.msk [vmem:[%s6] sm:$0xff] %vm51, %v134
  %137 = vst.msk [vmem:[%s6 + $0x8] sm:$0xff] %vm51, %v135
  // Predicated region
  $region26: #{transformer_forward.38} parent=0 // pred_check
    _
  $region27: #{transformer_forward.38} parent=0 // pred_check_branch
    %139 = sbr.rel (0) target = $region29
  $region28: #{transformer_forward.38} parent=0 // pred_region
    _
  $region29: #{transformer_forward.38} parent=0 // pred_fallthru
    _
  // Predicated region
  $region30: #{transformer_forward.38} parent=0 // pred_check
    _
  $region31: #{transformer_forward.38} parent=0 // pred_check_branch
    %141 = sbr.rel (0) target = $region33
  $region32: #{transformer_forward.38} parent=0 // pred_region
    _
  $region33: #{transformer_forward.38} parent=0 // pred_fallthru
    _

// kernel: transformer_forward.37
$region0: #{transformer_forward.37}
  #allocation0 [shape = 'u32[]', space=smem, size = 0x4, offset = 0x4, fixed_abs, tag = 'smem constant byte address 0x4 - core index']
  #allocation1 [shape = 'u32[72,128]{1,0:T(1,128)}', space=vmem, size = 0x9000, scoped, tag = 'internal scratch']
  #allocation2 [shape = 'f32[4,8,1]{2,1,0:T(8,128)}', space=vmem, size = 0x4000, scoped, tag = 'scratch operand']
  #allocation3 [shape = 'f32[4,8,1]{2,1,0:T(8,128)}', space=vmem, size = 0x4000, scoped, tag = 'scratch operand']
  #allocation4 [shape = 'f32[4,8,8]{2,1,0:T(8,128)}', space=vmem, size = 0x4000, scoped, tag = 'scratch operand']
  %s0 = inlined_call_operand.vmem [shape: bf16[2,8,32], index: 0, kind: input, shape index: {}]
  %s1 = inlined_call_operand.vmem [shape: bf16[2,8,32], index: 1, kind: input, shape index: {}]
  %s2 = inlined_call_operand.vmem [shape: bf16[2,8,32], index: 2, kind: input, shape index: {}]
  %s3 = inlined_call_operand.vmem [shape: bf16[2,8,32], index: 3, kind: output, shape index: {}]
  %s4 = sld [smem:[#allocation0]]
  $region53: #{transformer_forward.37} parent=0
    _
  %s6 = ssub.s32 1, %s4
  %s7 = scalar_select 0, %s6, %s4
  loop: start=0, step=1, limit=4
  $region2: #{transformer_forward.37} parent=0 // loop_pre_header
    _
  $region3: #{transformer_forward.37} parent=0 // loop_header
    %s9 = sphi 0, %s13
    %p10 = scmp.ge.s32.totalorder %s9, 4
    %s16 = sphi 0, %s35
    %s17 = sphi 0, %s31
    %s18 = sphi 0, %s27
    %s19 = sphi 0, %s16
    %s20 = sphi 0, %s17
    %s21 = sphi 0, %s18
    %s22 = sphi 0, %s19
    %s23 = sphi 0, %s20
    %s24 = sphi 0, %s21
    %s40 = sphi 0, %s42
    %s43 = sphi 0, %s40
    %s44 = sphi 0, %s43
    %s60 = sphi 0, %s44
    %s68 = sphi 0, %s70
    %s71 = sphi 0, %s68
    %s72 = sphi 0, %s71
    %s88 = sphi 0, %s72
    %s96 = sphi 0, %s98
    %s99 = sphi 0, %s96
    %s100 = sphi 0, %s99
    %s116 = sphi 0, %s100
    %s124 = sphi 0, %s126
    %s127 = sphi 0, %s124
    %s128 = sphi 0, %s127
    %s144 = sphi 0, %s128
  $region4: #{transformer_forward.37} parent=0 // loop_header_branch
    %12 = sbr.rel (%p10) target = $region8
  $region5: #{transformer_forward.37} parent=0 // loop_body
    %s14 = ssub.s32 %s9, 1
    %s15 = ssub.s32 %s9, 2
    %s25 = sadd.s32 1, %s18
    %p26 = scmp.ge.s32.totalorder %s25, 1
    %s27 = scalar_select %p26, 0, %s25
    %s28 = sadd.s32 1, %s17
    %s29 = scalar_select %p26, %s28, %s17
    %p30 = scmp.ge.s32.totalorder %s29, 1
    %s31 = scalar_select %p30, 0, %s29
    %s32 = sadd.s32 1, %s16
    %s33 = scalar_select %p30, %s32, %s16
    %p34 = scmp.ge.s32.totalorder %s33, 2
    %s35 = scalar_select %p34, 0, %s33
    %s36 = ssub.s32 %s16, %s35
    %s37 = ssub.s32 %s17, %s31
    %s38 = sor.u32 %s36, %s37
    %p39 = scmp.eq.s32.totalorder %s38, 0
    %s41 = sadd.s32 %s40, 1
    %s42 = scalar_select %p39, %s40, %s41
    %p45 = pneg %p39
    %p46 = scmp.eq.s32.totalorder %s9, 1
    %p47 = por %p45, %p46
    %p48 = scmp.ne.s32.totalorder %s40, %s43
    %p49 = scmp.eq.s32.totalorder %s9, 0
    %p50 = por %p48, %p49
    %p51 = scmp.ne.s32.totalorder %s40, %s43
    %p52 = scmp.eq.s32.totalorder %s14, 1
    %p53 = por %p51, %p52
    %p54 = scmp.ne.s32.totalorder %s43, %s44
    %p55 = scmp.eq.s32.totalorder %s14, 0
    %p56 = por %p54, %p55
    %p57 = scmp.ne.s32.totalorder %s43, %s44
    %p58 = scmp.eq.s32.totalorder %s15, 1
    %p59 = por %p57, %p58
    %p61 = scmp.ne.s32.totalorder %s44, %s60
    %p62 = scmp.eq.s32.totalorder %s15, 0
    %p63 = por %p61, %p62
    %s64 = ssub.s32 %s16, %s35
    %s65 = ssub.s32 %s18, %s27
    %s66 = sor.u32 %s64, %s65
    %p67 = scmp.eq.s32.totalorder %s66, 0
    %s69 = sadd.s32 %s68, 1
    %s70 = scalar_select %p67, %s68, %s69
    %p73 = pneg %p67
    %p74 = scmp.eq.s32.totalorder %s9, 1
    %p75 = por %p73, %p74
    %p76 = scmp.ne.s32.totalorder %s68, %s71
    %p77 = scmp.eq.s32.totalorder %s9, 0
    %p78 = por %p76, %p77
    %p79 = scmp.ne.s32.totalorder %s68, %s71
    %p80 = scmp.eq.s32.totalorder %s14, 1
    %p81 = por %p79, %p80
    %p82 = scmp.ne.s32.totalorder %s71, %s72
    %p83 = scmp.eq.s32.totalorder %s14, 0
    %p84 = por %p82, %p83
    %p85 = scmp.ne.s32.totalorder %s71, %s72
    %p86 = scmp.eq.s32.totalorder %s15, 1
    %p87 = por %p85, %p86
    %p89 = scmp.ne.s32.totalorder %s72, %s88
    %p90 = scmp.eq.s32.totalorder %s15, 0
    %p91 = por %p89, %p90
    %s92 = ssub.s32 %s16, %s35
    %s93 = ssub.s32 %s18, %s27
    %s94 = sor.u32 %s92, %s93
    %p95 = scmp.eq.s32.totalorder %s94, 0
    %s97 = sadd.s32 %s96, 1
    %s98 = scalar_select %p95, %s96, %s97
    %p101 = pneg %p95
    %p102 = scmp.eq.s32.totalorder %s9, 1
    %p103 = por %p101, %p102
    %p104 = scmp.ne.s32.totalorder %s96, %s99
    %p105 = scmp.eq.s32.totalorder %s9, 0
    %p106 = por %p104, %p105
    %p107 = scmp.ne.s32.totalorder %s96, %s99
    %p108 = scmp.eq.s32.totalorder %s14, 1
    %p109 = por %p107, %p108
    %p110 = scmp.ne.s32.totalorder %s99, %s100
    %p111 = scmp.eq.s32.totalorder %s14, 0
    %p112 = por %p110, %p111
    %p113 = scmp.ne.s32.totalorder %s99, %s100
    %p114 = scmp.eq.s32.totalorder %s15, 1
    %p115 = por %p113, %p114
    %p117 = scmp.ne.s32.totalorder %s100, %s116
    %p118 = scmp.eq.s32.totalorder %s15, 0
    %p119 = por %p117, %p118
    %s120 = ssub.s32 %s16, %s35
    %s121 = ssub.s32 %s17, %s31
    %s122 = sor.u32 %s120, %s121
    %p123 = scmp.eq.s32.totalorder %s122, 0
    %s125 = sadd.s32 %s124, 1
    %s126 = scalar_select %p123, %s124, %s125
    %p129 = pneg %p123
    %p130 = scmp.eq.s32.totalorder %s9, 1
    %p131 = por %p129, %p130
    %p132 = scmp.ne.s32.totalorder %s124, %s127
    %p133 = scmp.eq.s32.totalorder %s9, 0
    %p134 = por %p132, %p133
    %p135 = scmp.ne.s32.totalorder %s124, %s127
    %p136 = scmp.eq.s32.totalorder %s14, 1
    %p137 = por %p135, %p136
    %p138 = scmp.ne.s32.totalorder %s127, %s128
    %p139 = scmp.eq.s32.totalorder %s14, 0
    %p140 = por %p138, %p139
    %p141 = scmp.ne.s32.totalorder %s127, %s128
    %p142 = scmp.eq.s32.totalorder %s15, 1
    %p143 = por %p141, %p142
    %p145 = scmp.ne.s32.totalorder %s128, %s144
    %p146 = scmp.eq.s32.totalorder %s15, 0
    %p147 = por %p145, %p146
    %p148 = scmp.le.s32.totalorder 1, %s9
    %p149 = scmp.lt.s32.totalorder %s9, 3
    %p150 = pnand %p148, %p149
    %p151 = pneg %p150
    // Predicated region
    $region9: #{transformer_forward.37} parent=5 // pred_check
      _
    $region10: #{transformer_forward.37} parent=5 // pred_check_branch
      %153 = sbr.rel (%p150) target = $region12
    $region11: #{transformer_forward.37} parent=5 // pred_region
      %s154 = ssub.s32 %s9, 1
    $region12: #{transformer_forward.37} parent=5 // pred_fallthru
      _
    %p155 = scmp.lt.s32.totalorder %s9, 2
    // Predicated region
    $region13: #{transformer_forward.37} parent=5 // pred_check
      %p156 = pneg %p155
    $region14: #{transformer_forward.37} parent=5 // pred_check_branch
      %158 = sbr.rel (%p156) target = $region16
    $region15: #{transformer_forward.37} parent=5 // pred_region
      // Predicated region
      $region17: #{transformer_forward.37} parent=15 // pred_check
        %p159 = pneg %p50
      $region18: #{transformer_forward.37} parent=15 // pred_check_branch
        %161 = sbr.rel (%p159) target = $region20
      $region19: #{transformer_forward.37} parent=15 // pred_region
        %p162 = scmp.lt.s32.totalorder %s16, 1
        %s163 = scalar_select %p162, %s16, 1
        %p164 = scmp.lt.s32.totalorder %s17, 0
        %s165 = scalar_select %p164, %s17, 0
        %s166 = sadd.s32 %s165, %s163
        %s167 = smul.addr %s166, 4
        %s168 = scalar_lea.vmem %s0, %s167
      $region20: #{transformer_forward.37} parent=15 // pred_fallthru
        _
      // Predicated region
      $region21: #{transformer_forward.37} parent=15 // pred_check
        %p169 = pneg %p78
      $region22: #{transformer_forward.37} parent=15 // pred_check_branch
        %171 = sbr.rel (%p169) target = $region24
      $region23: #{transformer_forward.37} parent=15 // pred_region
        %p172 = scmp.lt.s32.totalorder %s16, 1
        %s173 = scalar_select %p172, %s16, 1
        %p174 = scmp.lt.s32.totalorder %s18, 0
        %s175 = scalar_select %p174, %s18, 0
        %s176 = sadd.s32 %s175, %s173
        %s177 = smul.addr %s176, 4
        %s178 = scalar_lea.vmem %s1, %s177
      $region24: #{transformer_forward.37} parent=15 // pred_fallthru
        _
      // Predicated region
      $region25: #{transformer_forward.37} parent=15 // pred_check
        %p179 = pneg %p106
      $region26: #{transformer_forward.37} parent=15 // pred_check_branch
        %181 = sbr.rel (%p179) target = $region28
      $region27: #{transformer_forward.37} parent=15 // pred_region
        %p182 = scmp.lt.s32.totalorder %s16, 1
        %s183 = scalar_select %p182, %s16, 1
        %p184 = scmp.lt.s32.totalorder %s18, 0
        %s185 = scalar_select %p184, %s18, 0
        %s186 = sadd.s32 %s185, %s183
        %s187 = smul.addr %s186, 4
        %s188 = scalar_lea.vmem %s2, %s187
      $region28: #{transformer_forward.37} parent=15 // pred_fallthru
        _
    $region16: #{transformer_forward.37} parent=5 // pred_fallthru
      _
    %p189 = scmp.le.s32.totalorder 1, %s9
    %p190 = scmp.lt.s32.totalorder %s9, 3
    %p191 = pnand %p189, %p190
    %p192 = pneg %p191
    // Predicated region
    $region29: #{transformer_forward.37} parent=5 // pred_check
      _
    $region30: #{transformer_forward.37} parent=5 // pred_check_branch
      %194 = sbr.rel (%p191) target = $region32
    $region31: #{transformer_forward.37} parent=5 // pred_region
      %s195 = ssub.s32 %s9, 1
      %p196 = scmp.lt.s32.totalorder %s19, 1
      %s197 = scalar_select %p196, %s19, 1
      %p198 = scmp.lt.s32.totalorder %s20, 0
      %s199 = scalar_select %p198, %s20, 0
      %s200 = sadd.s32 %s199, %s197
      %s201 = smul.addr %s200, 4
      %s202 = scalar_lea.vmem %s0, %s201
      %p203 = pneg %p56
      %p204 = pneg %p53
      %p205 = scmp.lt.s32.totalorder %s19, 1
      %s206 = scalar_select %p205, %s19, 1
      %p207 = scmp.lt.s32.totalorder %s21, 0
      %s208 = scalar_select %p207, %s21, 0
      %s209 = sadd.s32 %s208, %s206
      %s210 = smul.addr %s209, 4
      %s211 = scalar_lea.vmem %s1, %s210
      %p212 = pneg %p84
      %p213 = pneg %p81
      %p214 = scmp.lt.s32.totalorder %s19, 1
      %s215 = scalar_select %p214, %s19, 1
      %p216 = scmp.lt.s32.totalorder %s21, 0
      %s217 = scalar_select %p216, %s21, 0
      %s218 = sadd.s32 %s217, %s215
      %s219 = smul.addr %s218, 4
      %s220 = scalar_lea.vmem %s2, %s219
      %p221 = pneg %p112
      %p222 = pneg %p109
      %p223 = pneg %p140
      %p224 = pneg %p137
      %p225 = scmp.lt.s32.totalorder %s19, 1
      %s226 = scalar_select %p225, %s19, 1
      %p227 = scmp.lt.s32.totalorder %s20, 0
      %s228 = scalar_select %p227, %s20, 0
      %s229 = sadd.s32 %s228, %s226
      %s230 = smul.addr %s229, 4
      %s231 = scalar_lea.vmem %s3, %s230
      %p232 = scmp.lt.s32.totalorder %s19, 1
      %s233 = scalar_select %p232, %s19, 1
      %p234 = scmp.lt.s32.totalorder %s20, 0
      %s235 = scalar_select %p234, %s20, 0
      %s236 = sadd.s32 %s235, %s233
      %s237 = smul.addr %s236, 4
      %s238 = scalar_lea.vmem %s0, %s237
      %p239 = scmp.lt.s32.totalorder %s19, 1
      %s240 = scalar_select %p239, %s19, 1
      %p241 = scmp.lt.s32.totalorder %s21, 0
      %s242 = scalar_select %p241, %s21, 0
      %s243 = sadd.s32 %s242, %s240
      %s244 = smul.addr %s243, 4
      %s245 = scalar_lea.vmem %s1, %s244
      %p246 = scmp.lt.s32.totalorder %s19, 1
      %s247 = scalar_select %p246, %s19, 1
      %p248 = scmp.lt.s32.totalorder %s21, 0
      %s249 = scalar_select %p248, %s21, 0
      %s250 = sadd.s32 %s249, %s247
      %s251 = smul.addr %s250, 4
      %s252 = scalar_lea.vmem %s2, %s251
      %p253 = scmp.lt.s32.totalorder %s19, 1
      %s254 = scalar_select %p253, %s19, 1
      %p255 = scmp.lt.s32.totalorder %s20, 0
      %s256 = scalar_select %p255, %s20, 0
      %s257 = sadd.s32 %s256, %s254
      %s258 = smul.addr %s257, 4
      %s259 = scalar_lea.vmem %s3, %s258
      %p261 = scmp.eq.s32.totalorder %s21, 0
      // Predicated region
      $region33: #{transformer_forward.37} parent=31 // pred_check
        %p262 = pneg %p261
      $region34: #{transformer_forward.37} parent=31 // pred_check_branch
        %264 = sbr.rel (%p262) target = $region36
      $region35: #{transformer_forward.37} parent=31 // pred_region
        %vm265 = vcmask 7168
        %266 = vst.msk [vmem:[#allocation2] sm:$0xff] %vm265, -inf
        %267 = vst.msk [vmem:[#allocation2 + $0x8] sm:$0xff] %vm265, -inf
        %268 = vst.msk [vmem:[#allocation2 + $0x10] sm:$0xff] %vm265, -inf
        %269 = vst.msk [vmem:[#allocation2 + $0x18] sm:$0xff] %vm265, -inf
        %270 = vst.msk [vmem:[#allocation3] sm:$0xff] %vm265, 0.0
        %271 = vst.msk [vmem:[#allocation3 + $0x8] sm:$0xff] %vm265, 0.0
        %272 = vst.msk [vmem:[#allocation3 + $0x10] sm:$0xff] %vm265, 0.0
        %273 = vst.msk [vmem:[#allocation3 + $0x18] sm:$0xff] %vm265, 0.0
        %vm274 = vcmask 64512
        %275 = vst.msk [vmem:[#allocation4] sm:$0xff] %vm274, 0.0
        %276 = vst.msk [vmem:[#allocation4 + $0x8] sm:$0xff] %vm274, 0.0
        %277 = vst.msk [vmem:[#allocation4 + $0x10] sm:$0xff] %vm274, 0.0
        %278 = vst.msk [vmem:[#allocation4 + $0x18] sm:$0xff] %vm274, 0.0
      $region36: #{transformer_forward.37} parent=31 // pred_fallthru
        _
      %v279 = vld [vmem:[%s238] sm:$0xf]
      %v280 = vld [vmem:[%s245] sm:$0xf]
      %v281 = vld [vmem:[%s252] sm:$0xf]
      %vm282 = vcmask 64512
      %v284 = vsel %vm282, %v279, 0
      %v287 = vsel %vm282, %v280, 0
      %289 = vmatpush.bf16.xpose.msra.mxu0 0
      %290 = vmatpush.bf16.xpose.msra.mxu0 0
      %291 = vmatpush.bf16.xpose.msra.mxu0 0
      %292 = vmatpush.bf16.xpose.msra.mxu0 0
      %293 = vmatpush.bf16.xpose.msra.mxu0 0
      %294 = vmatpush.bf16.xpose.msra.mxu0 0
      %295 = vmatpush.bf16.xpose.msra.mxu0 0
      %296 = vmatpush.bf16.xpose.msra.mxu0 %v287
      %297 = vmatmul.bf16.gmra.mxu0 %v284
      %v298 = vpop.f32.mrf.mxu0
      %v299 = vadd.f32 0.0, %v298
      %v300 = vpop.f32.mrf.mxu0
      %301 = vdwg.mxu0
      %v302 = vld [vmem:[#allocation2] sm:$0xff]
      %v303 = vsel %vm282, %v299, -inf
      %304 = vmax.xlane.f32.xlu0 %v303
      %v305 = vpop.xlane.xlu0 %304
      %v306 = vmax.f32 %v302, %v305
      %v307 = vsub.f32 %v302, %v306
      %v308 = vmul.f32 %v307, 1.442695
      %v309 = vpow.pop %v308
      %311 = vset.pattern.permute.xlu0 0
      %312 = vperm.xlu0 %311, %v306
      %v313 = vpop.permute.xlu0 %312
      %v315 = vsub.f32 %v299, %v313
      %v316 = vmul.f32 %v315, 1.442695
      %v317 = vpow.pop %v316
      %v318 = vld [vmem:[#allocation3] sm:$0xff]
      %v319 = vmul.f32 %v309, %v318
      %v320 = vsel %vm282, %v317, 0.0
      %321 = vadd.xlane.f32.xlu0 %v320
      %v322 = vpop.xlane.xlu0 %321
      %v323 = vadd.f32 %v319, %v322
      %vm324 = vcmask 7168
      %325 = vst.msk [vmem:[#allocation3] sm:$0xff] %vm324, %v323
      %v326 = vld [vmem:[#allocation4] sm:$0xff]
      %328 = vset.pattern.permute.xlu0 0
      %329 = vperm.xlu0 %328, %v309
      %v330 = vpop.permute.xlu0 %329
      %v332 = vmul.f32 %v330, %v326
      %v333 = vpack.c.bf16 %v317, %v317
      %v335 = vsel %vm282, %v333, 0
      %vm337 = vcmask 1043456
      %v339 = vsel %vm337, %v281, 0
      %341 = vmatpush.bf16.msra.mxu0 0
      %342 = vmatpush.bf16.msra.mxu0 0
      %343 = vmatpush.bf16.msra.mxu0 0
      %344 = vmatpush.bf16.msra.mxu0 0
      %345 = vmatpush.bf16.msra.mxu0 0
      %346 = vmatpush.bf16.msra.mxu0 0
      %347 = vmatpush.bf16.msra.mxu0 0
      %348 = vmatpush.bf16.msra.mxu0 %v339
      %349 = vmatmul.bf16.gmra.mxu0 %v335
      %v350 = vpop.f32.mrf.mxu0
      %v351 = vadd.f32 0.0, %v350
      %v352 = vpop.f32.mrf.mxu0
      %353 = vdwg.mxu0
      %v354 = vadd.f32 %v332, %v351
      %355 = vst.msk [vmem:[#allocation4] sm:$0xff] %vm282, %v354
      %356 = vst.msk [vmem:[#allocation2] sm:$0xff] %vm324, %v306
      %v358 = vunpack.c.l.b16 %v279
      %v359 = vpack.c.b16 %v358, %v358
      %360 = vrot.lane.b32.xlu0 %v359, 120
      %v361 = vpop.permute.xlu0 %360
      %v363 = vunpack.c.l.b16 %v280
      %v364 = vpack.c.b16 %v363, %v363
      %365 = vrot.lane.b32.xlu0 %v364, 120
      %v366 = vpop.permute.xlu0 %365
      %v368 = vsel %vm282, %v361, 0
      %v371 = vsel %vm282, %v366, 0
      %373 = vmatpush.bf16.xpose.msra.mxu0 0
      %374 = vmatpush.bf16.xpose.msra.mxu0 0
      %375 = vmatpush.bf16.xpose.msra.mxu0 0
      %376 = vmatpush.bf16.xpose.msra.mxu0 0
      %377 = vmatpush.bf16.xpose.msra.mxu0 0
      %378 = vmatpush.bf16.xpose.msra.mxu0 0
      %379 = vmatpush.bf16.xpose.msra.mxu0 0
      %380 = vmatpush.bf16.xpose.msra.mxu0 %v371
      %381 = vmatmul.bf16.gmra.mxu0 %v368
      %v382 = vpop.f32.mrf.mxu0
      %v383 = vadd.f32 0.0, %v382
      %v384 = vpop.f32.mrf.mxu0
      %385 = vdwg.mxu0
      %s386 = scalar_lea.vmem [#allocation2], 8
      %v387 = vld [vmem:[%s386] sm:$0xff]
      %v388 = vsel %vm282, %v383, -inf
      %389 = vmax.xlane.f32.xlu0 %v388
      %v390 = vpop.xlane.xlu0 %389
      %v391 = vmax.f32 %v387, %v390
      %v392 = vsub.f32 %v387, %v391
      %v393 = vmul.f32 %v392, 1.442695
      %v394 = vpow.pop %v393
      %396 = vset.pattern.permute.xlu0 0
      %397 = vperm.xlu0 %396, %v391
      %v398 = vpop.permute.xlu0 %397
      %v400 = vsub.f32 %v383, %v398
      %v401 = vmul.f32 %v400, 1.442695
      %v402 = vpow.pop %v401
      %s403 = scalar_lea.vmem [#allocation3], 8
      %v404 = vld [vmem:[%s403] sm:$0xff]
      %v405 = vmul.f32 %v394, %v404
      %v406 = vsel %vm282, %v402, 0.0
      %407 = vadd.xlane.f32.xlu0 %v406
      %v408 = vpop.xlane.xlu0 %407
      %v409 = vadd.f32 %v405, %v408
      %410 = vst.msk [vmem:[%s403] sm:$0xff] %vm324, %v409
      %s411 = scalar_lea.vmem [#allocation4], 8
      %v412 = vld [vmem:[%s411] sm:$0xff]
      %414 = vset.pattern.permute.xlu0 0
      %415 = vperm.xlu0 %414, %v394
      %v416 = vpop.permute.xlu0 %415
      %v418 = vmul.f32 %v416, %v412
      %v419 = vpack.c.bf16 %v402, %v402
      %v421 = vunpack.c.l.b16 %v281
      %v422 = vpack.c.b16 %v421, %v421
      %423 = vrot.lane.b32.xlu0 %v422, 120
      %v424 = vpop.permute.xlu0 %423
      %v426 = vsel %vm282, %v419, 0
      %v429 = vsel %vm337, %v424, 0
      %431 = vmatpush.bf16.msra.mxu0 0
      %432 = vmatpush.bf16.msra.mxu0 0
      %433 = vmatpush.bf16.msra.mxu0 0
      %434 = vmatpush.bf16.msra.mxu0 0
      %435 = vmatpush.bf16.msra.mxu0 0
      %436 = vmatpush.bf16.msra.mxu0 0
      %437 = vmatpush.bf16.msra.mxu0 0
      %438 = vmatpush.bf16.msra.mxu0 %v429
      %439 = vmatmul.bf16.gmra.mxu0 %v426
      %v440 = vpop.f32.mrf.mxu0
      %v441 = vadd.f32 0.0, %v440
      %v442 = vpop.f32.mrf.mxu0
      %443 = vdwg.mxu0
      %v444 = vadd.f32 %v418, %v441
      %445 = vst.msk [vmem:[%s411] sm:$0xff] %vm282, %v444
      %446 = vst.msk [vmem:[%s386] sm:$0xff] %vm324, %v391
      %447 = vrot.lane.b32.xlu0 %v359, 112
      %v448 = vpop.permute.xlu0 %447
      %449 = vrot.lane.b32.xlu0 %v364, 112
      %v450 = vpop.permute.xlu0 %449
      %v452 = vsel %vm282, %v448, 0
      %v455 = vsel %vm282, %v450, 0
      %457 = vmatpush.bf16.xpose.msra.mxu0 0
      %458 = vmatpush.bf16.xpose.msra.mxu0 0
      %459 = vmatpush.bf16.xpose.msra.mxu0 0
      %460 = vmatpush.bf16.xpose.msra.mxu0 0
      %461 = vmatpush.bf16.xpose.msra.mxu0 0
      %462 = vmatpush.bf16.xpose.msra.mxu0 0
      %463 = vmatpush.bf16.xpose.msra.mxu0 0
      %464 = vmatpush.bf16.xpose.msra.mxu0 %v455
      %465 = vmatmul.bf16.gmra.mxu0 %v452
      %v466 = vpop.f32.mrf.mxu0
      %v467 = vadd.f32 0.0, %v466
      %v468 = vpop.f32.mrf.mxu0
      %469 = vdwg.mxu0
      %s470 = scalar_lea.vmem [#allocation2], 16
      %v471 = vld [vmem:[%s470] sm:$0xff]
      %v472 = vsel %vm282, %v467, -inf
      %473 = vmax.xlane.f32.xlu0 %v472
      %v474 = vpop.xlane.xlu0 %473
      %v475 = vmax.f32 %v471, %v474
      %v476 = vsub.f32 %v471, %v475
      %v477 = vmul.f32 %v476, 1.442695
      %v478 = vpow.pop %v477
      %480 = vset.pattern.permute.xlu0 0
      %481 = vperm.xlu0 %480, %v475
      %v482 = vpop.permute.xlu0 %481
      %v484 = vsub.f32 %v467, %v482
      %v485 = vmul.f32 %v484, 1.442695
      %v486 = vpow.pop %v485
      %s487 = scalar_lea.vmem [#allocation3], 16
      %v488 = vld [vmem:[%s487] sm:$0xff]
      %v489 = vmul.f32 %v478, %v488
      %v490 = vsel %vm282, %v486, 0.0
      %491 = vadd.xlane.f32.xlu0 %v490
      %v492 = vpop.xlane.xlu0 %491
      %v493 = vadd.f32 %v489, %v492
      %494 = vst.msk [vmem:[%s487] sm:$0xff] %vm324, %v493
      %s495 = scalar_lea.vmem [#allocation4], 16
      %v496 = vld [vmem:[%s495] sm:$0xff]
      %498 = vset.pattern.permute.xlu0 0
      %499 = vperm.xlu0 %498, %v478
      %v500 = vpop.permute.xlu0 %499
      %v502 = vmul.f32 %v500, %v496
      %v503 = vpack.c.bf16 %v486, %v486
      %504 = vrot.lane.b32.xlu0 %v422, 112
      %v505 = vpop.permute.xlu0 %504
      %v507 = vsel %vm282, %v503, 0
      %v510 = vsel %vm337, %v505, 0
      %512 = vmatpush.bf16.msra.mxu0 0
      %513 = vmatpush.bf16.msra.mxu0 0
      %514 = vmatpush.bf16.msra.mxu0 0
      %515 = vmatpush.bf16.msra.mxu0 0
      %516 = vmatpush.bf16.msra.mxu0 0
      %517 = vmatpush.bf16.msra.mxu0 0
      %518 = vmatpush.bf16.msra.mxu0 0
      %519 = vmatpush.bf16.msra.mxu0 %v510
      %520 = vmatmul.bf16.gmra.mxu0 %v507
      %v521 = vpop.f32.mrf.mxu0
      %v522 = vadd.f32 0.0, %v521
      %v523 = vpop.f32.mrf.mxu0
      %524 = vdwg.mxu0
      %v525 = vadd.f32 %v502, %v522
      %526 = vst.msk [vmem:[%s495] sm:$0xff] %vm282, %v525
      %527 = vst.msk [vmem:[%s470] sm:$0xff] %vm324, %v475
      %528 = vrot.lane.b32.xlu0 %v359, 104
      %v529 = vpop.permute.xlu0 %528
      %530 = vrot.lane.b32.xlu0 %v364, 104
      %v531 = vpop.permute.xlu0 %530
      %v533 = vsel %vm282, %v529, 0
      %v536 = vsel %vm282, %v531, 0
      %538 = vmatpush.bf16.xpose.msra.mxu0 0
      %539 = vmatpush.bf16.xpose.msra.mxu0 0
      %540 = vmatpush.bf16.xpose.msra.mxu0 0
      %541 = vmatpush.bf16.xpose.msra.mxu0 0
      %542 = vmatpush.bf16.xpose.msra.mxu0 0
      %543 = vmatpush.bf16.xpose.msra.mxu0 0
      %544 = vmatpush.bf16.xpose.msra.mxu0 0
      %545 = vmatpush.bf16.xpose.msra.mxu0 %v536
      %546 = vmatmul.bf16.gmra.mxu0 %v533
      %v547 = vpop.f32.mrf.mxu0
      %v548 = vadd.f32 0.0, %v547
      %v549 = vpop.f32.mrf.mxu0
      %550 = vdwg.mxu0
      %s551 = scalar_lea.vmem [#allocation2], 24
      %v552 = vld [vmem:[%s551] sm:$0xff]
      %v553 = vsel %vm282, %v548, -inf
      %554 = vmax.xlane.f32.xlu0 %v553
      %v555 = vpop.xlane.xlu0 %554
      %v556 = vmax.f32 %v552, %v555
      %v557 = vsub.f32 %v552, %v556
      %v558 = vmul.f32 %v557, 1.442695
      %v559 = vpow.pop %v558
      %561 = vset.pattern.permute.xlu0 0
      %562 = vperm.xlu0 %561, %v556
      %v563 = vpop.permute.xlu0 %562
      %v565 = vsub.f32 %v548, %v563
      %v566 = vmul.f32 %v565, 1.442695
      %v567 = vpow.pop %v566
      %s568 = scalar_lea.vmem [#allocation3], 24
      %v569 = vld [vmem:[%s568] sm:$0xff]
      %v570 = vmul.f32 %v559, %v569
      %v571 = vsel %vm282, %v567, 0.0
      %572 = vadd.xlane.f32.xlu0 %v571
      %v573 = vpop.xlane.xlu0 %572
      %v574 = vadd.f32 %v570, %v573
      %575 = vst.msk [vmem:[%s568] sm:$0xff] %vm324, %v574
      %s576 = scalar_lea.vmem [#allocation4], 24
      %v577 = vld [vmem:[%s576] sm:$0xff]
      %579 = vset.pattern.permute.xlu0 0
      %580 = vperm.xlu0 %579, %v559
      %v581 = vpop.permute.xlu0 %580
      %v583 = vmul.f32 %v581, %v577
      %v584 = vpack.c.bf16 %v567, %v567
      %585 = vrot.lane.b32.xlu0 %v422, 104
      %v586 = vpop.permute.xlu0 %585
      %v588 = vsel %vm282, %v584, 0
      %v591 = vsel %vm337, %v586, 0
      %593 = vmatpush.bf16.msra.mxu0 0
      %594 = vmatpush.bf16.msra.mxu0 0
      %595 = vmatpush.bf16.msra.mxu0 0
      %596 = vmatpush.bf16.msra.mxu0 0
      %597 = vmatpush.bf16.msra.mxu0 0
      %598 = vmatpush.bf16.msra.mxu0 0
      %599 = vmatpush.bf16.msra.mxu0 0
      %600 = vmatpush.bf16.msra.mxu0 %v591
      %601 = vmatmul.bf16.gmra.mxu0 %v588
      %v602 = vpop.f32.mrf.mxu0
      %v603 = vadd.f32 0.0, %v602
      %v604 = vpop.f32.mrf.mxu0
      %605 = vdwg.mxu0
      %v606 = vadd.f32 %v583, %v603
      %607 = vst.msk [vmem:[%s576] sm:$0xff] %vm282, %v606
      %608 = vst.msk [vmem:[%s551] sm:$0xff] %vm324, %v556
      // Predicated region
      $region37: #{transformer_forward.37} parent=31 // pred_check
        %p609 = pneg %p261
      $region38: #{transformer_forward.37} parent=31 // pred_check_branch
        %611 = sbr.rel (%p609) target = $region40
      $region39: #{transformer_forward.37} parent=31 // pred_region
        %v612 = vld [vmem:[#allocation4] sm:$0xff]
        %v613 = vld [vmem:[#allocation3] sm:$0xff]
        %v614 = vrcp.pop %v613
        %616 = vset.pattern.permute.xlu0 0
        %617 = vperm.xlu0 %616, %v614
        %v618 = vpop.permute.xlu0 %617
        %v620 = vmul.f32 %v612, %v618
        %v621 = vld [vmem:[%s411] sm:$0xff]
        %v622 = vld [vmem:[%s403] sm:$0xff]
        %v623 = vrcp.pop %v622
        %625 = vset.pattern.permute.xlu0 0
        %626 = vperm.xlu0 %625, %v623
        %v627 = vpop.permute.xlu0 %626
        %v629 = vmul.f32 %v621, %v627
        %v630 = vld [vmem:[%s495] sm:$0xff]
        %v631 = vld [vmem:[%s487] sm:$0xff]
        %v632 = vrcp.pop %v631
        %634 = vset.pattern.permute.xlu0 0
        %635 = vperm.xlu0 %634, %v632
        %v636 = vpop.permute.xlu0 %635
        %v638 = vmul.f32 %v630, %v636
        %v639 = vld [vmem:[%s576] sm:$0xff]
        %v640 = vld [vmem:[%s568] sm:$0xff]
        %v641 = vrcp.pop %v640
        %643 = vset.pattern.permute.xlu0 0
        %644 = vperm.xlu0 %643, %v641
        %v645 = vpop.permute.xlu0 %644
        %v647 = vmul.f32 %v639, %v645
        %649 = vrot.lane.b32.xlu0 %v629, 8
        %v650 = vpop.permute.xlu0 %649
        %653 = vrot.lane.b32.xlu0 %v638, 16
        %v654 = vpop.permute.xlu0 %653
        %657 = vrot.lane.b32.xlu0 %v647, 24
        %v658 = vpop.permute.xlu0 %657
        %v660 = vsel %vm282, %v620, %v650
        %vm661 = vcmask 130048
        %v662 = vsel %vm661, %v660, %v654
        %vm663 = vcmask 195584
        %v664 = vsel %vm663, %v662, %v658
        %v665 = vpack.c.bf16 %v664, %v664
        %vm666 = vcmask 257024
        %667 = vst.msk [vmem:[%s259] sm:$0xf] %vm666, %v665
      $region40: #{transformer_forward.37} parent=31 // pred_fallthru
        _
      %p668 = scmp.lt.s32.totalorder %s19, 1
      %s669 = scalar_select %p668, %s19, 1
      %p670 = scmp.lt.s32.totalorder %s20, 0
      %s671 = scalar_select %p670, %s20, 0
      %s672 = sadd.s32 %s671, %s669
      %s673 = smul.addr %s672, 4
      %s674 = scalar_lea.vmem %s3, %s673
      // Predicated region
      $region41: #{transformer_forward.37} parent=31 // pred_check
        %p675 = pneg %p137
      $region42: #{transformer_forward.37} parent=31 // pred_check_branch
        %677 = sbr.rel (%p675) target = $region44
      $region43: #{transformer_forward.37} parent=31 // pred_region
        _
      $region44: #{transformer_forward.37} parent=31 // pred_fallthru
        _
    $region32: #{transformer_forward.37} parent=5 // pred_fallthru
      _
    %p678 = scmp.le.s32.totalorder 2, %s9
    // Predicated region
    $region45: #{transformer_forward.37} parent=5 // pred_check
      %p679 = pneg %p678
    $region46: #{transformer_forward.37} parent=5 // pred_check_branch
      %681 = sbr.rel (%p679) target = $region48
    $region47: #{transformer_forward.37} parent=5 // pred_region
      %s682 = ssub.s32 %s9, 2
      // Predicated region
      $region49: #{transformer_forward.37} parent=47 // pred_check
        %p683 = pneg %p143
      $region50: #{transformer_forward.37} parent=47 // pred_check_branch
        %685 = sbr.rel (%p683) target = $region52
      $region51: #{transformer_forward.37} parent=47 // pred_region
        %p686 = scmp.lt.s32.totalorder %s22, 1
        %s687 = scalar_select %p686, %s22, 1
        %p688 = scmp.lt.s32.totalorder %s23, 0
        %s689 = scalar_select %p688, %s23, 0
        %s690 = sadd.s32 %s689, %s687
        %s691 = smul.addr %s690, 4
        %s692 = scalar_lea.vmem %s3, %s691
      $region52: #{transformer_forward.37} parent=47 // pred_fallthru
        _
    $region48: #{transformer_forward.37} parent=5 // pred_fallthru
      _
  $region6: #{transformer_forward.37} parent=0 // loop_footer
    %s13 = sadd.s32 1, %s9
  $region7: #{transformer_forward.37} parent=0 // loop_footer_branch
    %8 = sbr.rel target = $region3
  $region8: #{transformer_forward.37} parent=0 // loop_exit
    _

// kernel: transformer_forward.35
$region0: #{transformer_forward.35}
  #allocation0 [shape = 'u32[]', space=smem, size = 0x4, offset = 0x4, fixed_abs, tag = 'smem constant byte address 0x4 - core index']
  #allocation1 [shape = 'u32[72,128]{1,0:T(1,128)}', space=vmem, size = 0x9000, scoped, tag = 'internal scratch']
  %s0 = inlined_call_operand.vmem [shape: f32[16,32], index: 0, kind: input, shape index: {}]
  %s1 = inlined_call_operand.vmem [shape: f32[1,32], index: 1, kind: input, shape index: {}]
  %s2 = inlined_call_operand.vmem [shape: f32[1,32], index: 2, kind: input, shape index: {}]
  %s3 = inlined_call_operand.vmem [shape: f32[16,32], index: 3, kind: output, shape index: {}]
  %s4 = sld [smem:[#allocation0]]
  $region22: #{transformer_forward.35} parent=0
    _
  %s6 = ssub.s32 1, %s4
  %s7 = scalar_select 0, %s6, %s4
  // Predicated region
  $region2: #{transformer_forward.35} parent=0 // pred_check
    _
  $region3: #{transformer_forward.35} parent=0 // pred_check_branch
    %9 = sbr.rel (0) target = $region5
  $region4: #{transformer_forward.35} parent=0 // pred_region
    _
  $region5: #{transformer_forward.35} parent=0 // pred_fallthru
    _
  // Predicated region
  $region6: #{transformer_forward.35} parent=0 // pred_check
    _
  $region7: #{transformer_forward.35} parent=0 // pred_check_branch
    %11 = sbr.rel (0) target = $region9
  $region8: #{transformer_forward.35} parent=0 // pred_region
    _
  $region9: #{transformer_forward.35} parent=0 // pred_fallthru
    _
  // Predicated region
  $region10: #{transformer_forward.35} parent=0 // pred_check
    _
  $region11: #{transformer_forward.35} parent=0 // pred_check_branch
    %13 = sbr.rel (0) target = $region13
  $region12: #{transformer_forward.35} parent=0 // pred_region
    _
  $region13: #{transformer_forward.35} parent=0 // pred_fallthru
    _
  %v14 = vld [vmem:[%s0] sm:$0xff]
  %v15 = vld [vmem:[%s0 + $0x8] sm:$0xff]
  %v16 = vld [vmem:[%s1] sm:$0x1]
  %v17 = vld [vmem:[%s2] sm:$0x1]
  %vm18 = vcmask 261120
  %v19 = vsel %vm18, %v14, 0.0
  %20 = vadd.xlane.f32.xlu0 %v19
  %v21 = vpop.xlane.xlu0 %20
  %v22 = vsel %vm18, %v15, 0.0
  %23 = vadd.xlane.f32.xlu0 %v22
  %v24 = vpop.xlane.xlu0 %23
  %v25 = vrcp.pop 32.0
  %v26 = vmul.f32 32.0, %v25
  %v27 = vsub.f32 1.0, %v26
  %v28 = vmul.f32 %v25, %v27
  %v29 = vadd.f32 %v25, %v28
  %vm30 = vweird.f32 %v25
  %v31 = vsel %vm30, %v25, %v29
  %v32 = vmul.f32 %v21, %v31
  %v33 = vmul.f32 %v24, %v31
  %v34 = vsub.f32 %v14, %v32
  %v35 = vsub.f32 %v15, %v33
  %v36 = vmul.f32 %v34, %v34
  %v37 = vmul.f32 %v35, %v35
  %v38 = vsel %vm18, %v36, 0.0
  %39 = vadd.xlane.f32.xlu0 %v38
  %v40 = vpop.xlane.xlu0 %39
  %v41 = vsel %vm18, %v37, 0.0
  %42 = vadd.xlane.f32.xlu0 %v41
  %v43 = vpop.xlane.xlu0 %42
  %v44 = vmul.f32 %v40, %v31
  %v45 = vmul.f32 %v43, %v31
  %v46 = vadd.f32 %v44, 1e-05
  %v47 = vadd.f32 %v45, 1e-05
  %v48 = vrsqrt.pop %v46
  %v49 = vmul.f32 %v48, %v46
  %v50 = vmul.f32 %v49, %v48
  %v51 = vmul.f32 0.5, %v50
  %v52 = vsub.f32 1.5, %v51
  %v53 = vmul.f32 %v48, %v52
  %vm54 = vweird.f32 %v46
  %vm55 = vweird.f32 %v48
  %vm56 = vmor %vm54, %vm55
  %v57 = vsel %vm56, %v48, %v53
  %v58 = vrsqrt.pop %v47
  %v59 = vmul.f32 %v58, %v47
  %v60 = vmul.f32 %v59, %v58
  %v61 = vmul.f32 0.5, %v60
  %v62 = vsub.f32 1.5, %v61
  %v63 = vmul.f32 %v58, %v62
  %vm64 = vweird.f32 %v47
  %vm65 = vweird.f32 %v58
  %vm66 = vmor %vm64, %vm65
  %v67 = vsel %vm66, %v58, %v63
  %v68 = vmul.f32 %v34, %v57
  %v69 = vmul.f32 %v35, %v67
  %v71 = vperm.slane %v16, 0
  %v73 = vmul.f32 %v68, %v71
  %v74 = vmul.f32 %v69, %v71
  %v76 = vperm.slane %v17, 0
  %v78 = vadd.f32 %v73, %v76
  %v79 = vadd.f32 %v74, %v76
  %80 = vst.msk [vmem:[%s3] sm:$0xff] %vm18, %v78
  %81 = vst.msk [vmem:[%s3 + $0x8] sm:$0xff] %vm18, %v79
  // Predicated region
  $region14: #{transformer_forward.35} parent=0 // pred_check
    _
  $region15: #{transformer_forward.35} parent=0 // pred_check_branch
    %83 = sbr.rel (0) target = $region17
  $region16: #{transformer_forward.35} parent=0 // pred_region
    _
  $region17: #{transformer_forward.35} parent=0 // pred_fallthru
    _
  // Predicated region
  $region18: #{transformer_forward.35} parent=0 // pred_check
    _
  $region19: #{transformer_forward.35} parent=0 // pred_check_branch
    %85 = sbr.rel (0) target = $region21
  $region20: #{transformer_forward.35} parent=0 // pred_region
    _
  $region21: #{transformer_forward.35} parent=0 // pred_fallthru
    _

// kernel: transformer_forward.40
$region0: #{transformer_forward.40}
  #allocation0 [shape = 'u32[]', space=smem, size = 0x4, offset = 0x4, fixed_abs, tag = 'smem constant byte address 0x4 - core index']
  #allocation1 [shape = 'u32[72,128]{1,0:T(1,128)}', space=vmem, size = 0x9000, scoped, tag = 'internal scratch']
  %s0 = inlined_call_operand.vmem [shape: f32[16,32], index: 0, kind: input, shape index: {}]
  %s1 = inlined_call_operand.vmem [shape: bf16[32,64], index: 1, kind: input, shape index: {}]
  %s2 = inlined_call_operand.vmem [shape: f32[1,64], index: 2, kind: input, shape index: {}]
  %s3 = inlined_call_operand.vmem [shape: bf16[16,32], index: 3, kind: output, shape index: {0}]
  %s4 = inlined_call_operand.vmem [shape: bf16[16,32], index: 4, kind: output, shape index: {1}]
  %5 = xla_tuple %s3, %s4
  %s6 = sld [smem:[#allocation0]]
  $region30: #{transformer_forward.40} parent=0
    _
  %s8 = ssub.s32 1, %s6
  %s9 = scalar_select 0, %s8, %s6
  // Predicated region
  $region2: #{transformer_forward.40} parent=0 // pred_check
    _
  $region3: #{transformer_forward.40} parent=0 // pred_check_branch
    %11 = sbr.rel (0) target = $region5
  $region4: #{transformer_forward.40} parent=0 // pred_region
    _
  $region5: #{transformer_forward.40} parent=0 // pred_fallthru
    _
  // Predicated region
  $region6: #{transformer_forward.40} parent=0 // pred_check
    _
  $region7: #{transformer_forward.40} parent=0 // pred_check_branch
    %13 = sbr.rel (0) target = $region9
  $region8: #{transformer_forward.40} parent=0 // pred_region
    _
  $region9: #{transformer_forward.40} parent=0 // pred_fallthru
    _
  // Predicated region
  $region10: #{transformer_forward.40} parent=0 // pred_check
    _
  $region11: #{transformer_forward.40} parent=0 // pred_check_branch
    %15 = sbr.rel (0) target = $region13
  $region12: #{transformer_forward.40} parent=0 // pred_region
    _
  $region13: #{transformer_forward.40} parent=0 // pred_fallthru
    _
  %v17 = vld [vmem:[%s0] sm:$0xff]
  %v18 = vld [vmem:[%s0 + $0x8] sm:$0xff]
  %v19 = vpack.c.bf16 %v18, %v17
  %v20 = vld [vmem:[%s1] sm:$0xf]
  %v21 = vld [vmem:[%s1 + $0x4] sm:$0xf]
  %v22 = vld [vmem:[%s1 + $0x8] sm:$0xf]
  %v23 = vld [vmem:[%s1 + $0xc] sm:$0xf]
  %v24 = vld [vmem:[%s2] sm:$0x1]
  %v26 = vperm.slane %v24, 0
  %v32 = vunpack.c.l.b16 %v20
  %v33 = vunpack.c.l.b16 %v21
  %v34 = vunpack.c.l.b16 %v22
  %v35 = vunpack.c.l.b16 %v23
  %v36 = vpack.c.b16 %v33, %v32
  %v37 = vpack.c.b16 %v35, %v34
  %vm40 = vcmask 261120
  %v42 = vsel %vm40, %v19, 0
  %44 = vmatpush.bf16.msra.mxu0 0
  %45 = vmatpush.bf16.msra.mxu0 0
  %46 = vmatpush.bf16.msra.mxu0 0
  %47 = vmatpush.bf16.msra.mxu0 0
  %48 = vmatpush.bf16.msra.mxu0 0
  %49 = vmatpush.bf16.msra.mxu0 0
  %50 = vmatpush.bf16.msra.mxu0 %v37
  %51 = vmatpush.bf16.msra.mxu0 %v36
  %52 = vmatmul.bf16.gmra.mxu0 %v42
  %v53 = vpop.f32.mrf.mxu0
  %v54 = vadd.f32 %v26, %v53
  %v55 = vpop.f32.mrf.mxu0
  %v56 = vadd.f32 %v26, %v55
  %57 = vdwg.mxu0
  %v58 = vpack.c.bf16 %v54, %v54
  %v59 = vpack.c.bf16 %v56, %v56
  %vm60 = vcmask 257024
  %61 = vst.msk [vmem:[%s3] sm:$0xf] %vm60, %v58
  %62 = vst.msk [vmem:[%s3 + $0x4] sm:$0xf] %vm60, %v59
  %65 = vrot.lane.b32.xlu0 %v58, 96
  %v66 = vpop.permute.xlu0 %65
  %67 = vrot.lane.b32.xlu0 %v59, 96
  %v68 = vpop.permute.xlu0 %67
  %71 = vst.msk [vmem:[%s4] sm:$0xf] %vm60, %v66
  %72 = vst.msk [vmem:[%s4 + $0x4] sm:$0xf] %vm60, %v68
  // Predicated region
  $region14: #{transformer_forward.40} parent=0 // pred_check
    _
  $region15: #{transformer_forward.40} parent=0 // pred_check_branch
    %74 = sbr.rel (0) target = $region17
  $region16: #{transformer_forward.40} parent=0 // pred_region
    _
  $region17: #{transformer_forward.40} parent=0 // pred_fallthru
    _
  // Predicated region
  $region18: #{transformer_forward.40} parent=0 // pred_check
    _
  $region19: #{transformer_forward.40} parent=0 // pred_check_branch
    %76 = sbr.rel (0) target = $region21
  $region20: #{transformer_forward.40} parent=0 // pred_region
    _
  $region21: #{transformer_forward.40} parent=0 // pred_fallthru
    _
  // Predicated region
  $region22: #{transformer_forward.40} parent=0 // pred_check
    _
  $region23: #{transformer_forward.40} parent=0 // pred_check_branch
    %78 = sbr.rel (0) target = $region25
  $region24: #{transformer_forward.40} parent=0 // pred_region
    _
  $region25: #{transformer_forward.40} parent=0 // pred_fallthru
    _
  // Predicated region
  $region26: #{transformer_forward.40} parent=0 // pred_check
    _
  $region27: #{transformer_forward.40} parent=0 // pred_check_branch
    %80 = sbr.rel (0) target = $region29
  $region28: #{transformer_forward.40} parent=0 // pred_region
    _
  $region29: #{transformer_forward.40} parent=0 // pred_fallthru
    _

// kernel: transformer_forward.30
$region0: #{transformer_forward.30}
  #allocation0 [shape = 'u32[]', space=smem, size = 0x4, offset = 0x4, fixed_abs, tag = 'smem constant byte address 0x4 - core index']
  #allocation1 [shape = 'u32[72,128]{1,0:T(1,128)}', space=vmem, size = 0x9000, scoped, tag = 'internal scratch']
  #allocation2 [shape = 'f32[16,32]{1,0:T(8,128)}', space=vmem, size = 0x2000, scoped, tag = 'scratch operand']
  %s0 = inlined_call_operand.vmem [shape: f32[16,32], index: 0, kind: input, shape index: {}]
  %s1 = inlined_call_operand.vmem [shape: bf16[32,2048], index: 1, kind: input, shape index: {}]
  %s2 = inlined_call_operand.vmem [shape: f32[1,2048], index: 2, kind: input, shape index: {}]
  %s3 = inlined_call_operand.vmem [shape: bf16[2048,32], index: 3, kind: input, shape index: {}]
  %s4 = inlined_call_operand.vmem [shape: f32[1,32], index: 4, kind: input, shape index: {}]
  %s5 = inlined_call_operand.vmem [shape: f32[1,32], index: 5, kind: input, shape index: {}]
  %s6 = inlined_call_operand.vmem [shape: f32[1,32], index: 6, kind: input, shape index: {}]
  %s7 = inlined_call_operand.vmem [shape: f32[16,32], index: 7, kind: output, shape index: {}]
  %s8 = sld [smem:[#allocation0]]
  $region92: #{transformer_forward.30} parent=0
    _
  %s10 = ssub.s32 1, %s8
  %s11 = scalar_select 0, %s10, %s8
  $region1: #{transformer_forward.30} parent=0
    #allocation3 [shape = 'u8[131072]{0}', space=vmem, size = 0x20000, scoped, tag = 'input window, operand 1']
    loop: start=0, step=1, limit=4
    $region2: #{transformer_forward.30} parent=1 // loop_pre_header
      _
    $region3: #{transformer_forward.30} parent=1 // loop_header
      %s13 = sphi 0, %s17
      %p14 = scmp.ge.s32.totalorder %s13, 4
      %s20 = sphi 0, %s32
      %s21 = sphi 0, %s28
      %s22 = sphi 0, %s20
      %s23 = sphi 0, %s21
      %s24 = sphi 0, %s22
      %s25 = sphi 0, %s23
      %s35 = sphi 0, %s37
      %s38 = sphi 0, %s35
      %s39 = sphi 0, %s38
      %s55 = sphi 0, %s39
      %s61 = sphi 0, %s63
      %s64 = sphi 0, %s61
      %s65 = sphi 0, %s64
      %s81 = sphi 0, %s65
      %s87 = sphi 0, %s89
      %s90 = sphi 0, %s87
      %s91 = sphi 0, %s90
      %s107 = sphi 0, %s91
      %s113 = sphi 0, %s115
      %s116 = sphi 0, %s113
      %s117 = sphi 0, %s116
      %s133 = sphi 0, %s117
      %s137 = sphi 0, %s137
      %s139 = sphi 0, %s137
      %s140 = sphi 0, %s139
      %s154 = sphi 0, %s140
      %s158 = sphi 0, %s158
      %s160 = sphi 0, %s158
      %s161 = sphi 0, %s160
      %s175 = sphi 0, %s161
      %s179 = sphi 0, %s179
      %s181 = sphi 0, %s179
      %s182 = sphi 0, %s181
      %s196 = sphi 0, %s182
      %s202 = sphi 0, %s204
      %s205 = sphi 0, %s202
      %s206 = sphi 0, %s205
      %s222 = sphi 0, %s206
    $region4: #{transformer_forward.30} parent=1 // loop_header_branch
      %16 = sbr.rel (%p14) target = $region8
    $region5: #{transformer_forward.30} parent=1 // loop_body
      %s18 = ssub.s32 %s13, 1
      %s19 = ssub.s32 %s13, 2
      %s26 = sadd.s32 1, %s21
      %p27 = scmp.ge.s32.totalorder %s26, 2
      %s28 = scalar_select %p27, 0, %s26
      %s29 = sadd.s32 1, %s20
      %s30 = scalar_select %p27, %s29, %s20
      %p31 = scmp.ge.s32.totalorder %s30, 1
      %s32 = scalar_select %p31, 0, %s30
      %s33 = ssub.s32 %s20, %s32
      %p34 = scmp.eq.s32.totalorder %s33, 0
      %s36 = sadd.s32 %s35, 1
      %s37 = scalar_select %p34, %s35, %s36
      %p40 = pneg %p34
      %p41 = scmp.eq.s32.totalorder %s13, 1
      %p42 = por %p40, %p41
      %p43 = scmp.ne.s32.totalorder %s35, %s38
      %p44 = scmp.eq.s32.totalorder %s13, 0
      %p45 = por %p43, %p44
      %p46 = scmp.ne.s32.totalorder %s35, %s38
      %p47 = scmp.eq.s32.totalorder %s18, 1
      %p48 = por %p46, %p47
      %p49 = scmp.ne.s32.totalorder %s38, %s39
      %p50 = scmp.eq.s32.totalorder %s18, 0
      %p51 = por %p49, %p50
      %p52 = scmp.ne.s32.totalorder %s38, %s39
      %p53 = scmp.eq.s32.totalorder %s19, 1
      %p54 = por %p52, %p53
      %p56 = scmp.ne.s32.totalorder %s39, %s55
      %p57 = scmp.eq.s32.totalorder %s19, 0
      %p58 = por %p56, %p57
      %s59 = ssub.s32 %s21, %s28
      %p60 = scmp.eq.s32.totalorder %s59, 0
      %s62 = sadd.s32 %s61, 1
      %s63 = scalar_select %p60, %s61, %s62
      %p66 = pneg %p60
      %p67 = scmp.eq.s32.totalorder %s13, 1
      %p68 = por %p66, %p67
      %p69 = scmp.ne.s32.totalorder %s61, %s64
      %p70 = scmp.eq.s32.totalorder %s13, 0
      %p71 = por %p69, %p70
      %p72 = scmp.ne.s32.totalorder %s61, %s64
      %p73 = scmp.eq.s32.totalorder %s18, 1
      %p74 = por %p72, %p73
      %p75 = scmp.ne.s32.totalorder %s64, %s65
      %p76 = scmp.eq.s32.totalorder %s18, 0
      %p77 = por %p75, %p76
      %p78 = scmp.ne.s32.totalorder %s64, %s65
      %p79 = scmp.eq.s32.totalorder %s19, 1
      %p80 = por %p78, %p79
      %p82 = scmp.ne.s32.totalorder %s65, %s81
      %p83 = scmp.eq.s32.totalorder %s19, 0
      %p84 = por %p82, %p83
      %s85 = ssub.s32 %s21, %s28
      %p86 = scmp.eq.s32.totalorder %s85, 0
      %s88 = sadd.s32 %s87, 1
      %s89 = scalar_select %p86, %s87, %s88
      %p92 = pneg %p86
      %p93 = scmp.eq.s32.totalorder %s13, 1
      %p94 = por %p92, %p93
      %p95 = scmp.ne.s32.totalorder %s87, %s90
      %p96 = scmp.eq.s32.totalorder %s13, 0
      %p97 = por %p95, %p96
      %p98 = scmp.ne.s32.totalorder %s87, %s90
      %p99 = scmp.eq.s32.totalorder %s18, 1
      %p100 = por %p98, %p99
      %p101 = scmp.ne.s32.totalorder %s90, %s91
      %p102 = scmp.eq.s32.totalorder %s18, 0
      %p103 = por %p101, %p102
      %p104 = scmp.ne.s32.totalorder %s90, %s91
      %p105 = scmp.eq.s32.totalorder %s19, 1
      %p106 = por %p104, %p105
      %p108 = scmp.ne.s32.totalorder %s91, %s107
      %p109 = scmp.eq.s32.totalorder %s19, 0
      %p110 = por %p108, %p109
      %s111 = ssub.s32 %s21, %s28
      %p112 = scmp.eq.s32.totalorder %s111, 0
      %s114 = sadd.s32 %s113, 1
      %s115 = scalar_select %p112, %s113, %s114
      %p118 = pneg %p112
      %p119 = scmp.eq.s32.totalorder %s13, 1
      %p120 = por %p118, %p119
      %p121 = scmp.ne.s32.totalorder %s113, %s116
      %p122 = scmp.eq.s32.totalorder %s13, 0
      %p123 = por %p121, %p122
      %p124 = scmp.ne.s32.totalorder %s113, %s116
      %p125 = scmp.eq.s32.totalorder %s18, 1
      %p126 = por %p124, %p125
      %p127 = scmp.ne.s32.totalorder %s116, %s117
      %p128 = scmp.eq.s32.totalorder %s18, 0
      %p129 = por %p127, %p128
      %p130 = scmp.ne.s32.totalorder %s116, %s117
      %p131 = scmp.eq.s32.totalorder %s19, 1
      %p132 = por %p130, %p131
      %p134 = scmp.ne.s32.totalorder %s117, %s133
      %p135 = scmp.eq.s32.totalorder %s19, 0
      %p136 = por %p134, %p135
      %s138 = sadd.s32 %s137, 1
      %p141 = scmp.eq.s32.totalorder %s13, 1
      %p142 = scmp.ne.s32.totalorder %s137, %s139
      %p143 = scmp.eq.s32.totalorder %s13, 0
      %p144 = por %p142, %p143
      %p145 = scmp.ne.s32.totalorder %s137, %s139
      %p146 = scmp.eq.s32.totalorder %s18, 1
      %p147 = por %p145, %p146
      %p148 = scmp.ne.s32.totalorder %s139, %s140
      %p149 = scmp.eq.s32.totalorder %s18, 0
      %p150 = por %p148, %p149
      %p151 = scmp.ne.s32.totalorder %s139, %s140
      %p152 = scmp.eq.s32.totalorder %s19, 1
      %p153 = por %p151, %p152
      %p155 = scmp.ne.s32.totalorder %s140, %s154
      %p156 = scmp.eq.s32.totalorder %s19, 0
      %p157 = por %p155, %p156
      %s159 = sadd.s32 %s158, 1
      %p162 = scmp.eq.s32.totalorder %s13, 1
      %p163 = scmp.ne.s32.totalorder %s158, %s160
      %p164 = scmp.eq.s32.totalorder %s13, 0
      %p165 = por %p163, %p164
      %p166 = scmp.ne.s32.totalorder %s158, %s160
      %p167 = scmp.eq.s32.totalorder %s18, 1
      %p168 = por %p166, %p167
      %p169 = scmp.ne.s32.totalorder %s160, %s161
      %p170 = scmp.eq.s32.totalorder %s18, 0
      %p171 = por %p169, %p170
      %p172 = scmp.ne.s32.totalorder %s160, %s161
      %p173 = scmp.eq.s32.totalorder %s19, 1
      %p174 = por %p172, %p173
      %p176 = scmp.ne.s32.totalorder %s161, %s175
      %p177 = scmp.eq.s32.totalorder %s19, 0
      %p178 = por %p176, %p177
      %s180 = sadd.s32 %s179, 1
      %p183 = scmp.eq.s32.totalorder %s13, 1
      %p184 = scmp.ne.s32.totalorder %s179, %s181
      %p185 = scmp.eq.s32.totalorder %s13, 0
      %p186 = por %p184, %p185
      %p187 = scmp.ne.s32.totalorder %s179, %s181
      %p188 = scmp.eq.s32.totalorder %s18, 1
      %p189 = por %p187, %p188
      %p190 = scmp.ne.s32.totalorder %s181, %s182
      %p191 = scmp.eq.s32.totalorder %s18, 0
      %p192 = por %p190, %p191
      %p193 = scmp.ne.s32.totalorder %s181, %s182
      %p194 = scmp.eq.s32.totalorder %s19, 1
      %p195 = por %p193, %p194
      %p197 = scmp.ne.s32.totalorder %s182, %s196
      %p198 = scmp.eq.s32.totalorder %s19, 0
      %p199 = por %p197, %p198
      %s200 = ssub.s32 %s20, %s32
      %p201 = scmp.eq.s32.totalorder %s200, 0
      %s203 = sadd.s32 %s202, 1
      %s204 = scalar_select %p201, %s202, %s203
      %p207 = pneg %p201
      %p208 = scmp.eq.s32.totalorder %s13, 1
      %p209 = por %p207, %p208
      %p210 = scmp.ne.s32.totalorder %s202, %s205
      %p211 = scmp.eq.s32.totalorder %s13, 0
      %p212 = por %p210, %p211
      %p213 = scmp.ne.s32.totalorder %s202, %s205
      %p214 = scmp.eq.s32.totalorder %s18, 1
      %p215 = por %p213, %p214
      %p216 = scmp.ne.s32.totalorder %s205, %s206
      %p217 = scmp.eq.s32.totalorder %s18, 0
      %p218 = por %p216, %p217
      %p219 = scmp.ne.s32.totalorder %s205, %s206
      %p220 = scmp.eq.s32.totalorder %s19, 1
      %p221 = por %p219, %p220
      %p223 = scmp.ne.s32.totalorder %s206, %s222
      %p224 = scmp.eq.s32.totalorder %s19, 0
      %p225 = por %p223, %p224
      %p226 = scmp.le.s32.totalorder 1, %s13
      %p227 = scmp.lt.s32.totalorder %s13, 3
      %p228 = pnand %p226, %p227
      %p229 = pneg %p228
      // Predicated region
      $region9: #{transformer_forward.30} parent=5 // pred_check
        _
      $region10: #{transformer_forward.30} parent=5 // pred_check_branch
        %231 = sbr.rel (%p228) target = $region12
      $region11: #{transformer_forward.30} parent=5 // pred_region
        %s232 = ssub.s32 %s13, 1
        // Predicated region
        $region13: #{transformer_forward.30} parent=11 // pred_check
          %p233 = pneg %p51
        $region14: #{transformer_forward.30} parent=11 // pred_check_branch
          %235 = sbr.rel (%p233) target = $region16
        $region15: #{transformer_forward.30} parent=11 // pred_region
          %s236 = smul.u32 2, %s22
          %p237 = scmp.lt.s32.totalorder %s236, 1
          %s238 = scalar_select %p237, %s236, 1
          %s239 = smul.addr %s238, 8
          %s240 = scalar_lea.vmem %s0, %s239
          %s241 = smul.u32 2, %s22
        $region16: #{transformer_forward.30} parent=11 // pred_fallthru
          _
        // Predicated region
        $region17: #{transformer_forward.30} parent=11 // pred_check
          %p242 = pneg %p150
        $region18: #{transformer_forward.30} parent=11 // pred_check_branch
          %244 = sbr.rel (%p242) target = $region20
        $region19: #{transformer_forward.30} parent=11 // pred_region
          _
        $region20: #{transformer_forward.30} parent=11 // pred_fallthru
          _
        // Predicated region
        $region21: #{transformer_forward.30} parent=11 // pred_check
          %p245 = pneg %p171
        $region22: #{transformer_forward.30} parent=11 // pred_check_branch
          %247 = sbr.rel (%p245) target = $region24
        $region23: #{transformer_forward.30} parent=11 // pred_region
          _
        $region24: #{transformer_forward.30} parent=11 // pred_fallthru
          _
        // Predicated region
        $region25: #{transformer_forward.30} parent=11 // pred_check
          %p248 = pneg %p192
        $region26: #{transformer_forward.30} parent=11 // pred_check_branch
          %250 = sbr.rel (%p248) target = $region28
        $region27: #{transformer_forward.30} parent=11 // pred_region
          _
        $region28: #{transformer_forward.30} parent=11 // pred_fallthru
          _
      $region12: #{transformer_forward.30} parent=5 // pred_fallthru
        _
      %p251 = scmp.lt.s32.totalorder %s13, 2
      // Predicated region
      $region29: #{transformer_forward.30} parent=5 // pred_check
        %p252 = pneg %p251
      $region30: #{transformer_forward.30} parent=5 // pred_check_branch
        %254 = sbr.rel (%p252) target = $region32
      $region31: #{transformer_forward.30} parent=5 // pred_region
        // Predicated region
        $region33: #{transformer_forward.30} parent=31 // pred_check
          %p255 = pneg %p71
        $region34: #{transformer_forward.30} parent=31 // pred_check_branch
          %257 = sbr.rel (%p255) target = $region36
        $region35: #{transformer_forward.30} parent=31 // pred_region
          %s258 = sand.u32 %s61, 1
          %s259 = sand.u32 %s61, 1
          %s260 = smul.addr %s259, 128
          %s261 = scalar_lea.vmem [#allocation3], %s260
          %s262 = smul.u32 8, %s21
          %s263 = smul.addr %s262, 4
          %s264 = scalar_lea.vmem %s1, %s263
          // Predicated region
          $region37: #{transformer_forward.30} parent=35 // pred_check
            _
          $region38: #{transformer_forward.30} parent=35 // pred_check_branch
            %266 = sbr.rel (0) target = $region40
          $region39: #{transformer_forward.30} parent=35 // pred_region
            // Predicated region
            $region41: #{transformer_forward.30} parent=39 // pred_check
              _
            $region42: #{transformer_forward.30} parent=39 // pred_check_branch
              %268 = sbr.rel (0) target = $region44
            $region43: #{transformer_forward.30} parent=39 // pred_region
              loop: start=0, step=1, limit=1
              $region45: #{transformer_forward.30} parent=43 // loop_pre_header
                _
              $region46: #{transformer_forward.30} parent=43 // loop_header
                %s270 = sphi 0, %s274
                %p271 = scmp.ge.s32.totalorder %s270, 1
                %s275 = sphi %s264, %s264
                %s276 = sphi %s261, %s261
              $region47: #{transformer_forward.30} parent=43 // loop_header_branch
                %273 = sbr.rel (%p271) target = $region51
              $region48: #{transformer_forward.30} parent=43 // loop_body
                %v277 = vld [vmem:[%s275] sm:$0xff]
                %278 = vst [vmem:[%s276] sm:$0xff] %v277
                %v279 = vld [vmem:[%s275 + $0x8] sm:$0xff]
                %280 = vst [vmem:[%s276 + $0x8] sm:$0xff] %v279
                %v281 = vld [vmem:[%s275 + $0x10] sm:$0xff]
                %282 = vst [vmem:[%s276 + $0x10] sm:$0xff] %v281
                %v283 = vld [vmem:[%s275 + $0x18] sm:$0xff]
                %284 = vst [vmem:[%s276 + $0x18] sm:$0xff] %v283
                %v285 = vld [vmem:[%s275 + $0x40] sm:$0xff]
                %286 = vst [vmem:[%s276 + $0x20] sm:$0xff] %v285
                %v287 = vld [vmem:[%s275 + $0x48] sm:$0xff]
                %288 = vst [vmem:[%s276 + $0x28] sm:$0xff] %v287
                %v289 = vld [vmem:[%s275 + $0x50] sm:$0xff]
                %290 = vst [vmem:[%s276 + $0x30] sm:$0xff] %v289
                %v291 = vld [vmem:[%s275 + $0x58] sm:$0xff]
                %292 = vst [vmem:[%s276 + $0x38] sm:$0xff] %v291
                %v293 = vld [vmem:[%s275 + $0x80] sm:$0xff]
                %294 = vst [vmem:[%s276 + $0x40] sm:$0xff] %v293
                %v295 = vld [vmem:[%s275 + $0x88] sm:$0xff]
                %296 = vst [vmem:[%s276 + $0x48] sm:$0xff] %v295
                %v297 = vld [vmem:[%s275 + $0x90] sm:$0xff]
                %298 = vst [vmem:[%s276 + $0x50] sm:$0xff] %v297
                %v299 = vld [vmem:[%s275 + $0x98] sm:$0xff]
                %300 = vst [vmem:[%s276 + $0x58] sm:$0xff] %v299
                %v301 = vld [vmem:[%s275 + $0xc0] sm:$0xff]
                %302 = vst [vmem:[%s276 + $0x60] sm:$0xff] %v301
                %v303 = vld [vmem:[%s275 + $0xc8] sm:$0xff]
                %304 = vst [vmem:[%s276 + $0x68] sm:$0xff] %v303
                %v305 = vld [vmem:[%s275 + $0xd0] sm:$0xff]
                %306 = vst [vmem:[%s276 + $0x70] sm:$0xff] %v305
                %v307 = vld [vmem:[%s275 + $0xd8] sm:$0xff]
                %308 = vst [vmem:[%s276 + $0x78] sm:$0xff] %v307
              $region49: #{transformer_forward.30} parent=43 // loop_footer
                %s274 = sadd.s32 1, %s270
              $region50: #{transformer_forward.30} parent=43 // loop_footer_branch
                %269 = sbr.rel target = $region46
              $region51: #{transformer_forward.30} parent=43 // loop_exit
                _
            $region44: #{transformer_forward.30} parent=39 // pred_fallthru
              _
            // Predicated region
            $region52: #{transformer_forward.30} parent=39 // pred_check
              _
            $region53: #{transformer_forward.30} parent=39 // pred_check_branch
              %310 = sbr.rel target = $region55
            $region54: #{transformer_forward.30} parent=39 // pred_region
              _
            $region55: #{transformer_forward.30} parent=39 // pred_fallthru
              _
          $region40: #{transformer_forward.30} parent=35 // pred_fallthru
            _
          %311 = vnop
        $region36: #{transformer_forward.30} parent=31 // pred_fallthru
          _
        // Predicated region
        $region56: #{transformer_forward.30} parent=31 // pred_check
          %p312 = pneg %p97
        $region57: #{transformer_forward.30} parent=31 // pred_check_branch
          %314 = sbr.rel (%p312) target = $region59
        $region58: #{transformer_forward.30} parent=31 // pred_region
          %s315 = smul.u32 8, %s21
          %p316 = scmp.lt.s32.totalorder %s315, 15
          %s317 = scalar_select %p316, %s315, 15
          %s318 = scalar_lea.vmem %s2, %s317
          %s319 = smul.u32 8, %s21
        $region59: #{transformer_forward.30} parent=31 // pred_fallthru
          _
        // Predicated region
        $region60: #{transformer_forward.30} parent=31 // pred_check
          %p320 = pneg %p123
        $region61: #{transformer_forward.30} parent=31 // pred_check_branch
          %322 = sbr.rel (%p320) target = $region63
        $region62: #{transformer_forward.30} parent=31 // pred_region
          %s323 = smul.u32 128, %s21
          %p324 = scmp.lt.s32.totalorder %s323, 255
          %s325 = scalar_select %p324, %s323, 255
          %s326 = smul.addr %s325, 4
          %s327 = scalar_lea.vmem %s3, %s326
          %s328 = smul.u32 128, %s21
        $region63: #{transformer_forward.30} parent=31 // pred_fallthru
          _
      $region32: #{transformer_forward.30} parent=5 // pred_fallthru
        _
      %p329 = scmp.le.s32.totalorder 1, %s13
      %p330 = scmp.lt.s32.totalorder %s13, 3
      %p331 = pnand %p329, %p330
      %p332 = pneg %p331
      // Predicated region
      $region64: #{transformer_forward.30} parent=5 // pred_check
        _
      $region65: #{transformer_forward.30} parent=5 // pred_check_branch
        %334 = sbr.rel (%p331) target = $region67
      $region66: #{transformer_forward.30} parent=5 // pred_region
        %s335 = ssub.s32 %s13, 1
        %s336 = sand.u32 %s64, 1
        %s337 = sand.u32 %s64, 1
        %s338 = smul.addr %s337, 128
        %s339 = scalar_lea.vmem [#allocation3], %s338
        // Predicated region
        $region68: #{transformer_forward.30} parent=66 // pred_check
          %p340 = pneg %p77
        $region69: #{transformer_forward.30} parent=66 // pred_check_branch
          %342 = sbr.rel (%p340) target = $region71
        $region70: #{transformer_forward.30} parent=66 // pred_region
          _
        $region71: #{transformer_forward.30} parent=66 // pred_fallthru
          _
        %s343 = smul.u32 2, %s22
        %p344 = scmp.lt.s32.totalorder %s343, 1
        %s345 = scalar_select %p344, %s343, 1
        %s346 = smul.addr %s345, 8
        %s347 = scalar_lea.vmem %s0, %s346
        %p348 = pneg %p51
        %p349 = pneg %p48
        %s350 = sand.u32 %s64, 1
        %s351 = sand.u32 %s64, 1
        %s352 = smul.addr %s351, 128
        %s353 = scalar_lea.vmem [#allocation3], %s352
        %p354 = pneg %p77
        %p355 = pneg %p74
        %s356 = smul.u32 8, %s23
        %p357 = scmp.lt.s32.totalorder %s356, 15
        %s358 = scalar_select %p357, %s356, 15
        %s359 = scalar_lea.vmem %s2, %s358
        %p360 = pneg %p103
        %p361 = pneg %p100
        %s362 = smul.u32 128, %s23
        %p363 = scmp.lt.s32.totalorder %s362, 255
        %s364 = scalar_select %p363, %s362, 255
        %s365 = smul.addr %s364, 4
        %s366 = scalar_lea.vmem %s3, %s365
        %p367 = pneg %p129
        %p368 = pneg %p126
        %p369 = pneg %p150
        %p370 = pneg %p147
        %p371 = pneg %p171
        %p372 = pneg %p168
        %p373 = pneg %p192
        %p374 = pneg %p189
        %p375 = pneg %p218
        %p376 = pneg %p215
        %s377 = smul.u32 2, %s22
        %p378 = scmp.lt.s32.totalorder %s377, 1
        %s379 = scalar_select %p378, %s377, 1
        %s380 = smul.addr %s379, 8
        %s381 = scalar_lea.vmem %s7, %s380
        %s382 = smul.u32 2, %s22
        %p383 = scmp.lt.s32.totalorder %s382, 1
        %s384 = scalar_select %p383, %s382, 1
        %s385 = smul.addr %s384, 8
        %s386 = scalar_lea.vmem %s0, %s385
        %s387 = smul.u32 2, %s22
        %s388 = smul.u32 8, %s23
        %s389 = smul.u32 8, %s23
        %p390 = scmp.lt.s32.totalorder %s389, 15
        %s391 = scalar_select %p390, %s389, 15
        %s392 = scalar_lea.vmem %s2, %s391
        %s393 = smul.u32 8, %s23
        %s394 = smul.u32 128, %s23
        %p395 = scmp.lt.s32.totalorder %s394, 255
        %s396 = scalar_select %p395, %s394, 255
        %s397 = smul.addr %s396, 4
        %s398 = scalar_lea.vmem %s3, %s397
        %s399 = smul.u32 128, %s23
        %s400 = smul.u32 2, %s22
        %p401 = scmp.lt.s32.totalorder %s400, 1
        %s402 = scalar_select %p401, %s400, 1
        %s403 = smul.addr %s402, 8
        %s404 = scalar_lea.vmem %s7, %s403
        %s405 = smul.u32 2, %s22
        %p407 = scmp.eq.s32.totalorder %s23, 0
        // Predicated region
        $region72: #{transformer_forward.30} parent=66 // pred_check
          %p408 = pneg %p407
        $region73: #{transformer_forward.30} parent=66 // pred_check_branch
          %410 = sbr.rel (%p408) target = $region75
        $region74: #{transformer_forward.30} parent=66 // pred_region
          %vm411 = vcmask 261120
          %412 = vst.msk [vmem:[#allocation2] sm:$0xff] %vm411, 0.0
          %413 = vst.msk [vmem:[#allocation2 + $0x8] sm:$0xff] %vm411, 0.0
        $region75: #{transformer_forward.30} parent=66 // pred_fallthru
          _
        %v414 = vld [vmem:[%s386] sm:$0xff]
        %v415 = vld [vmem:[%s386 + $0x8] sm:$0xff]
        %v416 = vpack.c.bf16 %v415, %v414
        %v417 = vld [vmem:[%s339] sm:$0xff]
        %v418 = vld [vmem:[%s339 + $0x8] sm:$0xff]
        %v419 = vld [vmem:[%s339 + $0x10] sm:$0xff]
        %v420 = vld [vmem:[%s339 + $0x18] sm:$0xff]
        %v421 = vld [vmem:[%s339 + $0x20] sm:$0xff]
        %v422 = vld [vmem:[%s339 + $0x28] sm:$0xff]
        %v423 = vld [vmem:[%s339 + $0x30] sm:$0xff]
        %v424 = vld [vmem:[%s339 + $0x38] sm:$0xff]
        %v425 = vld [vmem:[%s339 + $0x40] sm:$0xff]
        %v426 = vld [vmem:[%s339 + $0x48] sm:$0xff]
        %v427 = vld [vmem:[%s339 + $0x50] sm:$0xff]
        %v428 = vld [vmem:[%s339 + $0x58] sm:$0xff]
        %v429 = vld [vmem:[%s339 + $0x60] sm:$0xff]
        %v430 = vld [vmem:[%s339 + $0x68] sm:$0xff]
        %v431 = vld [vmem:[%s339 + $0x70] sm:$0xff]
        %v432 = vld [vmem:[%s339 + $0x78] sm:$0xff]
        %v433 = vld [vmem:[%s392] sm:$0xff]
        %v435 = vperm.slane %v433, 0
        %v436 = vperm.slane %v433, 1
        %v437 = vperm.slane %v433, 2
        %v438 = vperm.slane %v433, 3
        %v439 = vperm.slane %v433, 4
        %v440 = vperm.slane %v433, 5
        %v441 = vperm.slane %v433, 6
        %v442 = vperm.slane %v433, 7
        %v467 = vunpack.c.l.b16 %v417
        %v468 = vunpack.c.h.b16 %v417
        %v469 = vunpack.c.l.b16 %v418
        %v470 = vunpack.c.h.b16 %v418
        %v471 = vunpack.c.l.b16 %v419
        %v472 = vunpack.c.h.b16 %v419
        %v473 = vunpack.c.l.b16 %v420
        %v474 = vunpack.c.h.b16 %v420
        %v475 = vunpack.c.l.b16 %v421
        %v476 = vunpack.c.h.b16 %v421
        %v477 = vunpack.c.l.b16 %v422
        %v478 = vunpack.c.h.b16 %v422
        %v479 = vunpack.c.l.b16 %v423
        %v480 = vunpack.c.h.b16 %v423
        %v481 = vunpack.c.l.b16 %v424
        %v482 = vunpack.c.h.b16 %v424
        %v483 = vunpack.c.l.b16 %v425
        %v484 = vunpack.c.h.b16 %v425
        %v485 = vunpack.c.l.b16 %v426
        %v486 = vunpack.c.h.b16 %v426
        %v487 = vunpack.c.l.b16 %v427
        %v488 = vunpack.c.h.b16 %v427
        %v489 = vunpack.c.l.b16 %v428
        %v490 = vunpack.c.h.b16 %v428
        %v491 = vunpack.c.l.b16 %v429
        %v492 = vunpack.c.h.b16 %v429
        %v493 = vunpack.c.l.b16 %v430
        %v494 = vunpack.c.h.b16 %v430
        %v495 = vunpack.c.l.b16 %v431
        %v496 = vunpack.c.h.b16 %v431
        %v497 = vunpack.c.l.b16 %v432
        %v498 = vunpack.c.h.b16 %v432
        %v499 = vpack.c.b16 %v475, %v467
        %v500 = vpack.c.b16 %v476, %v468
        %v501 = vpack.c.b16 %v477, %v469
        %v502 = vpack.c.b16 %v478, %v470
        %v503 = vpack.c.b16 %v479, %v471
        %v504 = vpack.c.b16 %v480, %v472
        %v505 = vpack.c.b16 %v481, %v473
        %v506 = vpack.c.b16 %v482, %v474
        %v507 = vpack.c.b16 %v491, %v483
        %v508 = vpack.c.b16 %v492, %v484
        %v509 = vpack.c.b16 %v493, %v485
        %v510 = vpack.c.b16 %v494, %v486
        %v511 = vpack.c.b16 %v495, %v487
        %v512 = vpack.c.b16 %v496, %v488
        %v513 = vpack.c.b16 %v497, %v489
        %v514 = vpack.c.b16 %v498, %v490
        %vm531 = vcmask 261120
        %v533 = vsel %vm531, %v416, 0
        %535 = vmatpush.bf16.msra.mxu0 0
        %536 = vmatpush.bf16.msra.mxu0 0
        %537 = vmatpush.bf16.msra.mxu0 0
        %538 = vmatpush.bf16.msra.mxu0 0
        %539 = vmatpush.bf16.msra.mxu0 0
        %540 = vmatpush.bf16.msra.mxu0 0
        %541 = vmatpush.bf16.msra.mxu0 %v507
        %542 = vmatpush.bf16.msra.mxu0 %v499
        %543 = vmatmul.bf16.gmra.mxu0 %v533
        %v544 = vpop.f32.mrf.mxu0
        %v545 = vadd.f32 %v435, %v544
        %v546 = vpop.f32.mrf.mxu0
        %v547 = vadd.f32 %v435, %v546
        %548 = vdwg.mxu0
        %549 = vmatpush.bf16.msra.mxu0 0
        %550 = vmatpush.bf16.msra.mxu0 0
        %551 = vmatpush.bf16.msra.mxu0 0
        %552 = vmatpush.bf16.msra.mxu0 0
        %553 = vmatpush.bf16.msra.mxu0 0
        %554 = vmatpush.bf16.msra.mxu0 0
        %555 = vmatpush.bf16.msra.mxu0 %v508
        %556 = vmatpush.bf16.msra.mxu0 %v500
        %557 = vmatmul.bf16.gmra.mxu0 %v533
        %v558 = vpop.f32.mrf.mxu0
        %v559 = vadd.f32 %v436, %v558
        %v560 = vpop.f32.mrf.mxu0
        %v561 = vadd.f32 %v436, %v560
        %562 = vdwg.mxu0
        %563 = vmatpush.bf16.msra.mxu0 0
        %564 = vmatpush.bf16.msra.mxu0 0
        %565 = vmatpush.bf16.msra.mxu0 0
        %566 = vmatpush.bf16.msra.mxu0 0
        %567 = vmatpush.bf16.msra.mxu0 0
        %568 = vmatpush.bf16.msra.mxu0 0
        %569 = vmatpush.bf16.msra.mxu0 %v509
        %570 = vmatpush.bf16.msra.mxu0 %v501
        %571 = vmatmul.bf16.gmra.mxu0 %v533
        %v572 = vpop.f32.mrf.mxu0
        %v573 = vadd.f32 %v437, %v572
        %v574 = vpop.f32.mrf.mxu0
        %v575 = vadd.f32 %v437, %v574
        %576 = vdwg.mxu0
        %577 = vmatpush.bf16.msra.mxu0 0
        %578 = vmatpush.bf16.msra.mxu0 0
        %579 = vmatpush.bf16.msra.mxu0 0
        %580 = vmatpush.bf16.msra.mxu0 0
        %581 = vmatpush.bf16.msra.mxu0 0
        %582 = vmatpush.bf16.msra.mxu0 0
        %583 = vmatpush.bf16.msra.mxu0 %v510
        %584 = vmatpush.bf16.msra.mxu0 %v502
        %585 = vmatmul.bf16.gmra.mxu0 %v533
        %v586 = vpop.f32.mrf.mxu0
        %v587 = vadd.f32 %v438, %v586
        %v588 = vpop.f32.mrf.mxu0
        %v589 = vadd.f32 %v438, %v588
        %590 = vdwg.mxu0
        %591 = vmatpush.bf16.msra.mxu0 0
        %592 = vmatpush.bf16.msra.mxu0 0
        %593 = vmatpush.bf16.msra.mxu0 0
        %594 = vmatpush.bf16.msra.mxu0 0
        %595 = vmatpush.bf16.msra.mxu0 0
        %596 = vmatpush.bf16.msra.mxu0 0
        %597 = vmatpush.bf16.msra.mxu0 %v511
        %598 = vmatpush.bf16.msra.mxu0 %v503
        %599 = vmatmul.bf16.gmra.mxu0 %v533
        %v600 = vpop.f32.mrf.mxu0
        %v601 = vadd.f32 %v439, %v600
        %v602 = vpop.f32.mrf.mxu0
        %v603 = vadd.f32 %v439, %v602
        %604 = vdwg.mxu0
        %605 = vmatpush.bf16.msra.mxu0 0
        %606 = vmatpush.bf16.msra.mxu0 0
        %607 = vmatpush.bf16.msra.mxu0 0
        %608 = vmatpush.bf16.msra.mxu0 0
        %609 = vmatpush.bf16.msra.mxu0 0
        %610 = vmatpush.bf16.msra.mxu0 0
        %611 = vmatpush.bf16.msra.mxu0 %v512
        %612 = vmatpush.bf16.msra.mxu0 %v504
        %613 = vmatmul.bf16.gmra.mxu0 %v533
        %v614 = vpop.f32.mrf.mxu0
        %v615 = vadd.f32 %v440, %v614
        %v616 = vpop.f32.mrf.mxu0
        %v617 = vadd.f32 %v440, %v616
        %618 = vdwg.mxu0
        %619 = vmatpush.bf16.msra.mxu0 0
        %620 = vmatpush.bf16.msra.mxu0 0
        %621 = vmatpush.bf16.msra.mxu0 0
        %622 = vmatpush.bf16.msra.mxu0 0
        %623 = vmatpush.bf16.msra.mxu0 0
        %624 = vmatpush.bf16.msra.mxu0 0
        %625 = vmatpush.bf16.msra.mxu0 %v513
        %626 = vmatpush.bf16.msra.mxu0 %v505
        %627 = vmatmul.bf16.gmra.mxu0 %v533
        %v628 = vpop.f32.mrf.mxu0
        %v629 = vadd.f32 %v441, %v628
        %v630 = vpop.f32.mrf.mxu0
        %v631 = vadd.f32 %v441, %v630
        %632 = vdwg.mxu0
        %633 = vmatpush.bf16.msra.mxu0 0
        %634 = vmatpush.bf16.msra.mxu0 0
        %635 = vmatpush.bf16.msra.mxu0 0
        %636 = vmatpush.bf16.msra.mxu0 0
        %637 = vmatpush.bf16.msra.mxu0 0
        %638 = vmatpush.bf16.msra.mxu0 0
        %639 = vmatpush.bf16.msra.mxu0 %v514
        %640 = vmatpush.bf16.msra.mxu0 %v506
        %641 = vmatmul.bf16.gmra.mxu0 %v533
        %v642 = vpop.f32.mrf.mxu0
        %v643 = vadd.f32 %v442, %v642
        %v644 = vpop.f32.mrf.mxu0
        %v645 = vadd.f32 %v442, %v644
        %646 = vdwg.mxu0
        %v647 = vmax.f32 %v545, 0.0
        %v648 = vmax.f32 %v559, 0.0
        %v649 = vmax.f32 %v573, 0.0
        %v650 = vmax.f32 %v587, 0.0
        %v651 = vmax.f32 %v601, 0.0
        %v652 = vmax.f32 %v615, 0.0
        %v653 = vmax.f32 %v629, 0.0
        %v654 = vmax.f32 %v643, 0.0
        %v655 = vmax.f32 %v547, 0.0
        %v656 = vmax.f32 %v561, 0.0
        %v657 = vmax.f32 %v575, 0.0
        %v658 = vmax.f32 %v589, 0.0
        %v659 = vmax.f32 %v603, 0.0
        %v660 = vmax.f32 %v617, 0.0
        %v661 = vmax.f32 %v631, 0.0
        %v662 = vmax.f32 %v645, 0.0
        %v663 = vld [vmem:[#allocation2] sm:$0xff]
        %v664 = vld [vmem:[#allocation2 + $0x8] sm:$0xff]
        %v665 = vpack.c.bf16 %v655, %v647
        %v666 = vpack.c.bf16 %v656, %v648
        %v667 = vpack.c.bf16 %v657, %v649
        %v668 = vpack.c.bf16 %v658, %v650
        %v669 = vpack.c.bf16 %v659, %v651
        %v670 = vpack.c.bf16 %v660, %v652
        %v671 = vpack.c.bf16 %v661, %v653
        %v672 = vpack.c.bf16 %v662, %v654
        %v673 = vld [vmem:[%s398] sm:$0xf]
        %v674 = vld [vmem:[%s398 + $0x4] sm:$0xf]
        %v675 = vld [vmem:[%s398 + $0x8] sm:$0xf]
        %v676 = vld [vmem:[%s398 + $0xc] sm:$0xf]
        %v677 = vld [vmem:[%s398 + $0x10] sm:$0xf]
        %v678 = vld [vmem:[%s398 + $0x14] sm:$0xf]
        %v679 = vld [vmem:[%s398 + $0x18] sm:$0xf]
        %v680 = vld [vmem:[%s398 + $0x1c] sm:$0xf]
        %v681 = vld [vmem:[%s398 + $0x20] sm:$0xf]
        %v682 = vld [vmem:[%s398 + $0x24] sm:$0xf]
        %v683 = vld [vmem:[%s398 + $0x28] sm:$0xf]
        %v684 = vld [vmem:[%s398 + $0x2c] sm:$0xf]
        %v685 = vld [vmem:[%s398 + $0x30] sm:$0xf]
        %v686 = vld [vmem:[%s398 + $0x34] sm:$0xf]
        %v687 = vld [vmem:[%s398 + $0x38] sm:$0xf]
        %v688 = vld [vmem:[%s398 + $0x3c] sm:$0xf]
        %v689 = vld [vmem:[%s398 + $0x40] sm:$0xf]
        %v690 = vld [vmem:[%s398 + $0x44] sm:$0xf]
        %v691 = vld [vmem:[%s398 + $0x48] sm:$0xf]
        %v692 = vld [vmem:[%s398 + $0x4c] sm:$0xf]
        %v693 = vld [vmem:[%s398 + $0x50] sm:$0xf]
        %v694 = vld [vmem:[%s398 + $0x54] sm:$0xf]
        %v695 = vld [vmem:[%s398 + $0x58] sm:$0xf]
        %v696 = vld [vmem:[%s398 + $0x5c] sm:$0xf]
        %v697 = vld [vmem:[%s398 + $0x60] sm:$0xf]
        %v698 = vld [vmem:[%s398 + $0x64] sm:$0xf]
        %v699 = vld [vmem:[%s398 + $0x68] sm:$0xf]
        %v700 = vld [vmem:[%s398 + $0x6c] sm:$0xf]
        %v701 = vld [vmem:[%s398 + $0x70] sm:$0xf]
        %v702 = vld [vmem:[%s398 + $0x74] sm:$0xf]
        %v703 = vld [vmem:[%s398 + $0x78] sm:$0xf]
        %v704 = vld [vmem:[%s398 + $0x7c] sm:$0xf]
        %v705 = vld [vmem:[%s398 + $0x80] sm:$0xf]
        %v706 = vld [vmem:[%s398 + $0x84] sm:$0xf]
        %v707 = vld [vmem:[%s398 + $0x88] sm:$0xf]
        %v708 = vld [vmem:[%s398 + $0x8c] sm:$0xf]
        %v709 = vld [vmem:[%s398 + $0x90] sm:$0xf]
        %v710 = vld [vmem:[%s398 + $0x94] sm:$0xf]
        %v711 = vld [vmem:[%s398 + $0x98] sm:$0xf]
        %v712 = vld [vmem:[%s398 + $0x9c] sm:$0xf]
        %v713 = vld [vmem:[%s398 + $0xa0] sm:$0xf]
        %v714 = vld [vmem:[%s398 + $0xa4] sm:$0xf]
        %v715 = vld [vmem:[%s398 + $0xa8] sm:$0xf]
        %v716 = vld [vmem:[%s398 + $0xac] sm:$0xf]
        %v717 = vld [vmem:[%s398 + $0xb0] sm:$0xf]
        %v718 = vld [vmem:[%s398 + $0xb4] sm:$0xf]
        %v719 = vld [vmem:[%s398 + $0xb8] sm:$0xf]
        %v720 = vld [vmem:[%s398 + $0xbc] sm:$0xf]
        %v721 = vld [vmem:[%s398 + $0xc0] sm:$0xf]
        %v722 = vld [vmem:[%s398 + $0xc4] sm:$0xf]
        %v723 = vld [vmem:[%s398 + $0xc8] sm:$0xf]
        %v724 = vld [vmem:[%s398 + $0xcc] sm:$0xf]
        %v725 = vld [vmem:[%s398 + $0xd0] sm:$0xf]
        %v726 = vld [vmem:[%s398 + $0xd4] sm:$0xf]
        %v727 = vld [vmem:[%s398 + $0xd8] sm:$0xf]
        %v728 = vld [vmem:[%s398 + $0xdc] sm:$0xf]
        %v729 = vld [vmem:[%s398 + $0xe0] sm:$0xf]
        %v730 = vld [vmem:[%s398 + $0xe4] sm:$0xf]
        %v731 = vld [vmem:[%s398 + $0xe8] sm:$0xf]
        %v732 = vld [vmem:[%s398 + $0xec] sm:$0xf]
        %v733 = vld [vmem:[%s398 + $0xf0] sm:$0xf]
        %v734 = vld [vmem:[%s398 + $0xf4] sm:$0xf]
        %v735 = vld [vmem:[%s398 + $0xf8] sm:$0xf]
        %v736 = vld [vmem:[%s398 + $0xfc] sm:$0xf]
        %v737 = vld [vmem:[%s398 + $0x100] sm:$0xf]
        %v738 = vld [vmem:[%s398 + $0x104] sm:$0xf]
        %v739 = vld [vmem:[%s398 + $0x108] sm:$0xf]
        %v740 = vld [vmem:[%s398 + $0x10c] sm:$0xf]
        %v741 = vld [vmem:[%s398 + $0x110] sm:$0xf]
        %v742 = vld [vmem:[%s398 + $0x114] sm:$0xf]
        %v743 = vld [vmem:[%s398 + $0x118] sm:$0xf]
        %v744 = vld [vmem:[%s398 + $0x11c] sm:$0xf]
        %v745 = vld [vmem:[%s398 + $0x120] sm:$0xf]
        %v746 = vld [vmem:[%s398 + $0x124] sm:$0xf]
        %v747 = vld [vmem:[%s398 + $0x128] sm:$0xf]
        %v748 = vld [vmem:[%s398 + $0x12c] sm:$0xf]
        %v749 = vld [vmem:[%s398 + $0x130] sm:$0xf]
        %v750 = vld [vmem:[%s398 + $0x134] sm:$0xf]
        %v751 = vld [vmem:[%s398 + $0x138] sm:$0xf]
        %v752 = vld [vmem:[%s398 + $0x13c] sm:$0xf]
        %v753 = vld [vmem:[%s398 + $0x140] sm:$0xf]
        %v754 = vld [vmem:[%s398 + $0x144] sm:$0xf]
        %v755 = vld [vmem:[%s398 + $0x148] sm:$0xf]
        %v756 = vld [vmem:[%s398 + $0x14c] sm:$0xf]
        %v757 = vld [vmem:[%s398 + $0x150] sm:$0xf]
        %v758 = vld [vmem:[%s398 + $0x154] sm:$0xf]
        %v759 = vld [vmem:[%s398 + $0x158] sm:$0xf]
        %v760 = vld [vmem:[%s398 + $0x15c] sm:$0xf]
        %v761 = vld [vmem:[%s398 + $0x160] sm:$0xf]
        %v762 = vld [vmem:[%s398 + $0x164] sm:$0xf]
        %v763 = vld [vmem:[%s398 + $0x168] sm:$0xf]
        %v764 = vld [vmem:[%s398 + $0x16c] sm:$0xf]
        %v765 = vld [vmem:[%s398 + $0x170] sm:$0xf]
        %v766 = vld [vmem:[%s398 + $0x174] sm:$0xf]
        %v767 = vld [vmem:[%s398 + $0x178] sm:$0xf]
        %v768 = vld [vmem:[%s398 + $0x17c] sm:$0xf]
        %v769 = vld [vmem:[%s398 + $0x180] sm:$0xf]
        %v770 = vld [vmem:[%s398 + $0x184] sm:$0xf]
        %v771 = vld [vmem:[%s398 + $0x188] sm:$0xf]
        %v772 = vld [vmem:[%s398 + $0x18c] sm:$0xf]
        %v773 = vld [vmem:[%s398 + $0x190] sm:$0xf]
        %v774 = vld [vmem:[%s398 + $0x194] sm:$0xf]
        %v775 = vld [vmem:[%s398 + $0x198] sm:$0xf]
        %v776 = vld [vmem:[%s398 + $0x19c] sm:$0xf]
        %v777 = vld [vmem:[%s398 + $0x1a0] sm:$0xf]
        %v778 = vld [vmem:[%s398 + $0x1a4] sm:$0xf]
        %v779 = vld [vmem:[%s398 + $0x1a8] sm:$0xf]
        %v780 = vld [vmem:[%s398 + $0x1ac] sm:$0xf]
        %v781 = vld [vmem:[%s398 + $0x1b0] sm:$0xf]
        %v782 = vld [vmem:[%s398 + $0x1b4] sm:$0xf]
        %v783 = vld [vmem:[%s398 + $0x1b8] sm:$0xf]
        %v784 = vld [vmem:[%s398 + $0x1bc] sm:$0xf]
        %v785 = vld [vmem:[%s398 + $0x1c0] sm:$0xf]
        %v786 = vld [vmem:[%s398 + $0x1c4] sm:$0xf]
        %v787 = vld [vmem:[%s398 + $0x1c8] sm:$0xf]
        %v788 = vld [vmem:[%s398 + $0x1cc] sm:$0xf]
        %v789 = vld [vmem:[%s398 + $0x1d0] sm:$0xf]
        %v790 = vld [vmem:[%s398 + $0x1d4] sm:$0xf]
        %v791 = vld [vmem:[%s398 + $0x1d8] sm:$0xf]
        %v792 = vld [vmem:[%s398 + $0x1dc] sm:$0xf]
        %v793 = vld [vmem:[%s398 + $0x1e0] sm:$0xf]
        %v794 = vld [vmem:[%s398 + $0x1e4] sm:$0xf]
        %v795 = vld [vmem:[%s398 + $0x1e8] sm:$0xf]
        %v796 = vld [vmem:[%s398 + $0x1ec] sm:$0xf]
        %v797 = vld [vmem:[%s398 + $0x1f0] sm:$0xf]
        %v798 = vld [vmem:[%s398 + $0x1f4] sm:$0xf]
        %v799 = vld [vmem:[%s398 + $0x1f8] sm:$0xf]
        %v800 = vld [vmem:[%s398 + $0x1fc] sm:$0xf]
        %v929 = vunpack.c.l.b16 %v673
        %v930 = vunpack.c.l.b16 %v674
        %v931 = vunpack.c.l.b16 %v675
        %v932 = vunpack.c.l.b16 %v676
        %v933 = vunpack.c.l.b16 %v677
        %v934 = vunpack.c.l.b16 %v678
        %v935 = vunpack.c.l.b16 %v679
        %v936 = vunpack.c.l.b16 %v680
        %v937 = vunpack.c.l.b16 %v681
        %v938 = vunpack.c.l.b16 %v682
        %v939 = vunpack.c.l.b16 %v683
        %v940 = vunpack.c.l.b16 %v684
        %v941 = vunpack.c.l.b16 %v685
        %v942 = vunpack.c.l.b16 %v686
        %v943 = vunpack.c.l.b16 %v687
        %v944 = vunpack.c.l.b16 %v688
        %v945 = vunpack.c.l.b16 %v689
        %v946 = vunpack.c.l.b16 %v690
        %v947 = vunpack.c.l.b16 %v691
        %v948 = vunpack.c.l.b16 %v692
        %v949 = vunpack.c.l.b16 %v693
        %v950 = vunpack.c.l.b16 %v694
        %v951 = vunpack.c.l.b16 %v695
        %v952 = vunpack.c.l.b16 %v696
        %v953 = vunpack.c.l.b16 %v697
        %v954 = vunpack.c.l.b16 %v698
        %v955 = vunpack.c.l.b16 %v699
        %v956 = vunpack.c.l.b16 %v700
        %v957 = vunpack.c.l.b16 %v701
        %v958 = vunpack.c.l.b16 %v702
        %v959 = vunpack.c.l.b16 %v703
        %v960 = vunpack.c.l.b16 %v704
        %v961 = vunpack.c.l.b16 %v705
        %v962 = vunpack.c.l.b16 %v706
        %v963 = vunpack.c.l.b16 %v707
        %v964 = vunpack.c.l.b16 %v708
        %v965 = vunpack.c.l.b16 %v709
        %v966 = vunpack.c.l.b16 %v710
        %v967 = vunpack.c.l.b16 %v711
        %v968 = vunpack.c.l.b16 %v712
        %v969 = vunpack.c.l.b16 %v713
        %v970 = vunpack.c.l.b16 %v714
        %v971 = vunpack.c.l.b16 %v715
        %v972 = vunpack.c.l.b16 %v716
        %v973 = vunpack.c.l.b16 %v717
        %v974 = vunpack.c.l.b16 %v718
        %v975 = vunpack.c.l.b16 %v719
        %v976 = vunpack.c.l.b16 %v720
        %v977 = vunpack.c.l.b16 %v721
        %v978 = vunpack.c.l.b16 %v722
        %v979 = vunpack.c.l.b16 %v723
        %v980 = vunpack.c.l.b16 %v724
        %v981 = vunpack.c.l.b16 %v725
        %v982 = vunpack.c.l.b16 %v726
        %v983 = vunpack.c.l.b16 %v727
        %v984 = vunpack.c.l.b16 %v728
        %v985 = vunpack.c.l.b16 %v729
        %v986 = vunpack.c.l.b16 %v730
        %v987 = vunpack.c.l.b16 %v731
        %v988 = vunpack.c.l.b16 %v732
        %v989 = vunpack.c.l.b16 %v733
        %v990 = vunpack.c.l.b16 %v734
        %v991 = vunpack.c.l.b16 %v735
        %v992 = vunpack.c.l.b16 %v736
        %v993 = vunpack.c.l.b16 %v737
        %v994 = vunpack.c.l.b16 %v738
        %v995 = vunpack.c.l.b16 %v739
        %v996 = vunpack.c.l.b16 %v740
        %v997 = vunpack.c.l.b16 %v741
        %v998 = vunpack.c.l.b16 %v742
        %v999 = vunpack.c.l.b16 %v743
        %v1000 = vunpack.c.l.b16 %v744
        %v1001 = vunpack.c.l.b16 %v745
        %v1002 = vunpack.c.l.b16 %v746
        %v1003 = vunpack.c.l.b16 %v747
        %v1004 = vunpack.c.l.b16 %v748
        %v1005 = vunpack.c.l.b16 %v749
        %v1006 = vunpack.c.l.b16 %v750
        %v1007 = vunpack.c.l.b16 %v751
        %v1008 = vunpack.c.l.b16 %v752
        %v1009 = vunpack.c.l.b16 %v753
        %v1010 = vunpack.c.l.b16 %v754
        %v1011 = vunpack.c.l.b16 %v755
        %v1012 = vunpack.c.l.b16 %v756
        %v1013 = vunpack.c.l.b16 %v757
        %v1014 = vunpack.c.l.b16 %v758
        %v1015 = vunpack.c.l.b16 %v759
        %v1016 = vunpack.c.l.b16 %v760
        %v1017 = vunpack.c.l.b16 %v761
        %v1018 = vunpack.c.l.b16 %v762
        %v1019 = vunpack.c.l.b16 %v763
        %v1020 = vunpack.c.l.b16 %v764
        %v1021 = vunpack.c.l.b16 %v765
        %v1022 = vunpack.c.l.b16 %v766
        %v1023 = vunpack.c.l.b16 %v767
        %v1024 = vunpack.c.l.b16 %v768
        %v1025 = vunpack.c.l.b16 %v769
        %v1026 = vunpack.c.l.b16 %v770
        %v1027 = vunpack.c.l.b16 %v771
        %v1028 = vunpack.c.l.b16 %v772
        %v1029 = vunpack.c.l.b16 %v773
        %v1030 = vunpack.c.l.b16 %v774
        %v1031 = vunpack.c.l.b16 %v775
        %v1032 = vunpack.c.l.b16 %v776
        %v1033 = vunpack.c.l.b16 %v777
        %v1034 = vunpack.c.l.b16 %v778
        %v1035 = vunpack.c.l.b16 %v779
        %v1036 = vunpack.c.l.b16 %v780
        %v1037 = vunpack.c.l.b16 %v781
        %v1038 = vunpack.c.l.b16 %v782
        %v1039 = vunpack.c.l.b16 %v783
        %v1040 = vunpack.c.l.b16 %v784
        %v1041 = vunpack.c.l.b16 %v785
        %v1042 = vunpack.c.l.b16 %v786
        %v1043 = vunpack.c.l.b16 %v787
        %v1044 = vunpack.c.l.b16 %v788
        %v1045 = vunpack.c.l.b16 %v789
        %v1046 = vunpack.c.l.b16 %v790
        %v1047 = vunpack.c.l.b16 %v791
        %v1048 = vunpack.c.l.b16 %v792
        %v1049 = vunpack.c.l.b16 %v793
        %v1050 = vunpack.c.l.b16 %v794
        %v1051 = vunpack.c.l.b16 %v795
        %v1052 = vunpack.c.l.b16 %v796
        %v1053 = vunpack.c.l.b16 %v797
        %v1054 = vunpack.c.l.b16 %v798
        %v1055 = vunpack.c.l.b16 %v799
        %v1056 = vunpack.c.l.b16 %v800
        %v1057 = vpack.c.b16 %v930, %v929
        %v1058 = vpack.c.b16 %v932, %v931
        %v1059 = vpack.c.b16 %v934, %v933
        %v1060 = vpack.c.b16 %v936, %v935
        %v1061 = vpack.c.b16 %v938, %v937
        %v1062 = vpack.c.b16 %v940, %v939
        %v1063 = vpack.c.b16 %v942, %v941
        %v1064 = vpack.c.b16 %v944, %v943
        %v1065 = vpack.c.b16 %v946, %v945
        %v1066 = vpack.c.b16 %v948, %v947
        %v1067 = vpack.c.b16 %v950, %v949
        %v1068 = vpack.c.b16 %v952, %v951
        %v1069 = vpack.c.b16 %v954, %v953
        %v1070 = vpack.c.b16 %v956, %v955
        %v1071 = vpack.c.b16 %v958, %v957
        %v1072 = vpack.c.b16 %v960, %v959
        %v1073 = vpack.c.b16 %v962, %v961
        %v1074 = vpack.c.b16 %v964, %v963
        %v1075 = vpack.c.b16 %v966, %v965
        %v1076 = vpack.c.b16 %v968, %v967
        %v1077 = vpack.c.b16 %v970, %v969
        %v1078 = vpack.c.b16 %v972, %v971
        %v1079 = vpack.c.b16 %v974, %v973
        %v1080 = vpack.c.b16 %v976, %v975
        %v1081 = vpack.c.b16 %v978, %v977
        %v1082 = vpack.c.b16 %v980, %v979
        %v1083 = vpack.c.b16 %v982, %v981
        %v1084 = vpack.c.b16 %v984, %v983
        %v1085 = vpack.c.b16 %v986, %v985
        %v1086 = vpack.c.b16 %v988, %v987
        %v1087 = vpack.c.b16 %v990, %v989
        %v1088 = vpack.c.b16 %v992, %v991
        %v1089 = vpack.c.b16 %v994, %v993
        %v1090 = vpack.c.b16 %v996, %v995
        %v1091 = vpack.c.b16 %v998, %v997
        %v1092 = vpack.c.b16 %v1000, %v999
        %v1093 = vpack.c.b16 %v1002, %v1001
        %v1094 = vpack.c.b16 %v1004, %v1003
        %v1095 = vpack.c.b16 %v1006, %v1005
        %v1096 = vpack.c.b16 %v1008, %v1007
        %v1097 = vpack.c.b16 %v1010, %v1009
        %v1098 = vpack.c.b16 %v1012, %v1011
        %v1099 = vpack.c.b16 %v1014, %v1013
        %v1100 = vpack.c.b16 %v1016, %v1015
        %v1101 = vpack.c.b16 %v1018, %v1017
        %v1102 = vpack.c.b16 %v1020, %v1019
        %v1103 = vpack.c.b16 %v1022, %v1021
        %v1104 = vpack.c.b16 %v1024, %v1023
        %v1105 = vpack.c.b16 %v1026, %v1025
        %v1106 = vpack.c.b16 %v1028, %v1027
        %v1107 = vpack.c.b16 %v1030, %v1029
        %v1108 = vpack.c.b16 %v1032, %v1031
        %v1109 = vpack.c.b16 %v1034, %v1033
        %v1110 = vpack.c.b16 %v1036, %v1035
        %v1111 = vpack.c.b16 %v1038, %v1037
        %v1112 = vpack.c.b16 %v1040, %v1039
        %v1113 = vpack.c.b16 %v1042, %v1041
        %v1114 = vpack.c.b16 %v1044, %v1043
        %v1115 = vpack.c.b16 %v1046, %v1045
        %v1116 = vpack.c.b16 %v1048, %v1047
        %v1117 = vpack.c.b16 %v1050, %v1049
        %v1118 = vpack.c.b16 %v1052, %v1051
        %v1119 = vpack.c.b16 %v1054, %v1053
        %v1120 = vpack.c.b16 %v1056, %v1055
        %1185 = vmatpush.bf16.msra.mxu0 %v1064
        %1186 = vmatpush.bf16.msra.mxu0 %v1063
        %1187 = vmatpush.bf16.msra.mxu0 %v1062
        %1188 = vmatpush.bf16.msra.mxu0 %v1061
        %1189 = vmatpush.bf16.msra.mxu0 %v1060
        %1190 = vmatpush.bf16.msra.mxu0 %v1059
        %1191 = vmatpush.bf16.msra.mxu0 %v1058
        %1192 = vmatpush.bf16.msra.mxu0 %v1057
        %1193 = vmatmul.bf16.gmra.mxu0 %v665
        %v1194 = vpop.f32.mrf.mxu0
        %v1195 = vadd.f32 0.0, %v1194
        %v1196 = vpop.f32.mrf.mxu0
        %v1197 = vadd.f32 0.0, %v1196
        %1198 = vdwg.mxu0
        %1199 = vmatpush.bf16.msra.mxu0 %v1072
        %1200 = vmatpush.bf16.msra.mxu0 %v1071
        %1201 = vmatpush.bf16.msra.mxu0 %v1070
        %1202 = vmatpush.bf16.msra.mxu0 %v1069
        %1203 = vmatpush.bf16.msra.mxu0 %v1068
        %1204 = vmatpush.bf16.msra.mxu0 %v1067
        %1205 = vmatpush.bf16.msra.mxu0 %v1066
        %1206 = vmatpush.bf16.msra.mxu0 %v1065
        %1207 = vmatmul.bf16.gmra.mxu0 %v666
        %v1208 = vpop.f32.mrf.mxu0
        %v1209 = vadd.f32 %v1195, %v1208
        %v1210 = vpop.f32.mrf.mxu0
        %v1211 = vadd.f32 %v1197, %v1210
        %1212 = vdwg.mxu0
        %1213 = vmatpush.bf16.msra.mxu0 %v1080
        %1214 = vmatpush.bf16.msra.mxu0 %v1079
        %1215 = vmatpush.bf16.msra.mxu0 %v1078
        %1216 = vmatpush.bf16.msra.mxu0 %v1077
        %1217 = vmatpush.bf16.msra.mxu0 %v1076
        %1218 = vmatpush.bf16.msra.mxu0 %v1075
        %1219 = vmatpush.bf16.msra.mxu0 %v1074
        %1220 = vmatpush.bf16.msra.mxu0 %v1073
        %1221 = vmatmul.bf16.gmra.mxu0 %v667
        %v1222 = vpop.f32.mrf.mxu0
        %v1223 = vadd.f32 %v1209, %v1222
        %v1224 = vpop.f32.mrf.mxu0
        %v1225 = vadd.f32 %v1211, %v1224
        %1226 = vdwg.mxu0
        %1227 = vmatpush.bf16.msra.mxu0 %v1088
        %1228 = vmatpush.bf16.msra.mxu0 %v1087
        %1229 = vmatpush.bf16.msra.mxu0 %v1086
        %1230 = vmatpush.bf16.msra.mxu0 %v1085
        %1231 = vmatpush.bf16.msra.mxu0 %v1084
        %1232 = vmatpush.bf16.msra.mxu0 %v1083
        %1233 = vmatpush.bf16.msra.mxu0 %v1082
        %1234 = vmatpush.bf16.msra.mxu0 %v1081
        %1235 = vmatmul.bf16.gmra.mxu0 %v668
        %v1236 = vpop.f32.mrf.mxu0
        %v1237 = vadd.f32 %v1223, %v1236
        %v1238 = vpop.f32.mrf.mxu0
        %v1239 = vadd.f32 %v1225, %v1238
        %1240 = vdwg.mxu0
        %1241 = vmatpush.bf16.msra.mxu0 %v1096
        %1242 = vmatpush.bf16.msra.mxu0 %v1095
        %1243 = vmatpush.bf16.msra.mxu0 %v1094
        %1244 = vmatpush.bf16.msra.mxu0 %v1093
        %1245 = vmatpush.bf16.msra.mxu0 %v1092
        %1246 = vmatpush.bf16.msra.mxu0 %v1091
        %1247 = vmatpush.bf16.msra.mxu0 %v1090
        %1248 = vmatpush.bf16.msra.mxu0 %v1089
        %1249 = vmatmul.bf16.gmra.mxu0 %v669
        %v1250 = vpop.f32.mrf.mxu0
        %v1251 = vadd.f32 %v1237, %v1250
        %v1252 = vpop.f32.mrf.mxu0
        %v1253 = vadd.f32 %v1239, %v1252
        %1254 = vdwg.mxu0
        %1255 = vmatpush.bf16.msra.mxu0 %v1104
        %1256 = vmatpush.bf16.msra.mxu0 %v1103
        %1257 = vmatpush.bf16.msra.mxu0 %v1102
        %1258 = vmatpush.bf16.msra.mxu0 %v1101
        %1259 = vmatpush.bf16.msra.mxu0 %v1100
        %1260 = vmatpush.bf16.msra.mxu0 %v1099
        %1261 = vmatpush.bf16.msra.mxu0 %v1098
        %1262 = vmatpush.bf16.msra.mxu0 %v1097
        %1263 = vmatmul.bf16.gmra.mxu0 %v670
        %v1264 = vpop.f32.mrf.mxu0
        %v1265 = vadd.f32 %v1251, %v1264
        %v1266 = vpop.f32.mrf.mxu0
        %v1267 = vadd.f32 %v1253, %v1266
        %1268 = vdwg.mxu0
        %1269 = vmatpush.bf16.msra.mxu0 %v1112
        %1270 = vmatpush.bf16.msra.mxu0 %v1111
        %1271 = vmatpush.bf16.msra.mxu0 %v1110
        %1272 = vmatpush.bf16.msra.mxu0 %v1109
        %1273 = vmatpush.bf16.msra.mxu0 %v1108
        %1274 = vmatpush.bf16.msra.mxu0 %v1107
        %1275 = vmatpush.bf16.msra.mxu0 %v1106
        %1276 = vmatpush.bf16.msra.mxu0 %v1105
        %1277 = vmatmul.bf16.gmra.mxu0 %v671
        %v1278 = vpop.f32.mrf.mxu0
        %v1279 = vadd.f32 %v1265, %v1278
        %v1280 = vpop.f32.mrf.mxu0
        %v1281 = vadd.f32 %v1267, %v1280
        %1282 = vdwg.mxu0
        %1283 = vmatpush.bf16.msra.mxu0 %v1120
        %1284 = vmatpush.bf16.msra.mxu0 %v1119
        %1285 = vmatpush.bf16.msra.mxu0 %v1118
        %1286 = vmatpush.bf16.msra.mxu0 %v1117
        %1287 = vmatpush.bf16.msra.mxu0 %v1116
        %1288 = vmatpush.bf16.msra.mxu0 %v1115
        %1289 = vmatpush.bf16.msra.mxu0 %v1114
        %1290 = vmatpush.bf16.msra.mxu0 %v1113
        %1291 = vmatmul.bf16.gmra.mxu0 %v672
        %v1292 = vpop.f32.mrf.mxu0
        %v1293 = vadd.f32 %v1279, %v1292
        %v1294 = vpop.f32.mrf.mxu0
        %v1295 = vadd.f32 %v1281, %v1294
        %1296 = vdwg.mxu0
        %v1297 = vadd.f32 %v663, %v1293
        %v1298 = vadd.f32 %v664, %v1295
        %1299 = vst.msk [vmem:[#allocation2] sm:$0xff] %vm531, %v1297
        %1300 = vst.msk [vmem:[#allocation2 + $0x8] sm:$0xff] %vm531, %v1298
        %p1301 = scmp.eq.s32.totalorder %s23, 1
        // Predicated region
        $region76: #{transformer_forward.30} parent=66 // pred_check
          %p1302 = pneg %p1301
        $region77: #{transformer_forward.30} parent=66 // pred_check_branch
          %1304 = sbr.rel (%p1302) target = $region79
        $region78: #{transformer_forward.30} parent=66 // pred_region
          %v1305 = vld [vmem:[#allocation2] sm:$0xff]
          %v1306 = vld [vmem:[#allocation2 + $0x8] sm:$0xff]
          %v1307 = vld [vmem:[%s4] sm:$0x1]
          %v1309 = vperm.slane %v1307, 0
          %v1311 = vadd.f32 %v1305, %v1309
          %v1312 = vadd.f32 %v1306, %v1309
          %v1313 = vadd.f32 %v1311, %v414
          %v1314 = vadd.f32 %v1312, %v415
          %v1315 = vld [vmem:[%s5] sm:$0x1]
          %v1316 = vld [vmem:[%s6] sm:$0x1]
          %v1317 = vsel %vm531, %v1313, 0.0
          %1318 = vadd.xlane.f32.xlu0 %v1317
          %v1319 = vpop.xlane.xlu0 %1318
          %v1320 = vsel %vm531, %v1314, 0.0
          %1321 = vadd.xlane.f32.xlu0 %v1320
          %v1322 = vpop.xlane.xlu0 %1321
          %v1323 = vrcp.pop 32.0
          %v1324 = vmul.f32 32.0, %v1323
          %v1325 = vsub.f32 1.0, %v1324
          %v1326 = vmul.f32 %v1323, %v1325
          %v1327 = vadd.f32 %v1323, %v1326
          %vm1328 = vweird.f32 %v1323
          %v1329 = vsel %vm1328, %v1323, %v1327
          %v1330 = vmul.f32 %v1319, %v1329
          %v1331 = vmul.f32 %v1322, %v1329
          %v1332 = vsub.f32 %v1313, %v1330
          %v1333 = vsub.f32 %v1314, %v1331
          %v1334 = vmul.f32 %v1332, %v1332
          %v1335 = vmul.f32 %v1333, %v1333
          %v1336 = vsel %vm531, %v1334, 0.0
          %1337 = vadd.xlane.f32.xlu0 %v1336
          %v1338 = vpop.xlane.xlu0 %1337
          %v1339 = vsel %vm531, %v1335, 0.0
          %1340 = vadd.xlane.f32.xlu0 %v1339
          %v1341 = vpop.xlane.xlu0 %1340
          %v1342 = vmul.f32 %v1338, %v1329
          %v1343 = vmul.f32 %v1341, %v1329
          %v1344 = vadd.f32 %v1342, 1e-05
          %v1345 = vadd.f32 %v1343, 1e-05
          %v1346 = vrsqrt.pop %v1344
          %v1347 = vmul.f32 %v1346, %v1344
          %v1348 = vmul.f32 %v1347, %v1346
          %v1349 = vmul.f32 0.5, %v1348
          %v1350 = vsub.f32 1.5, %v1349
          %v1351 = vmul.f32 %v1346, %v1350
          %vm1352 = vweird.f32 %v1344
          %vm1353 = vweird.f32 %v1346
          %vm1354 = vmor %vm1352, %vm1353
          %v1355 = vsel %vm1354, %v1346, %v1351
          %v1356 = vrsqrt.pop %v1345
          %v1357 = vmul.f32 %v1356, %v1345
          %v1358 = vmul.f32 %v1357, %v1356
          %v1359 = vmul.f32 0.5, %v1358
          %v1360 = vsub.f32 1.5, %v1359
          %v1361 = vmul.f32 %v1356, %v1360
          %vm1362 = vweird.f32 %v1345
          %vm1363 = vweird.f32 %v1356
          %vm1364 = vmor %vm1362, %vm1363
          %v1365 = vsel %vm1364, %v1356, %v1361
          %v1366 = vmul.f32 %v1332, %v1355
          %v1367 = vmul.f32 %v1333, %v1365
          %v1369 = vperm.slane %v1315, 0
          %v1371 = vmul.f32 %v1366, %v1369
          %v1372 = vmul.f32 %v1367, %v1369
          %v1374 = vperm.slane %v1316, 0
          %v1376 = vadd.f32 %v1371, %v1374
          %v1377 = vadd.f32 %v1372, %v1374
          %1378 = vst.msk [vmem:[%s404] sm:$0xff] %vm531, %v1376
          %1379 = vst.msk [vmem:[%s404 + $0x8] sm:$0xff] %vm531, %v1377
        $region79: #{transformer_forward.30} parent=66 // pred_fallthru
          _
        %s1380 = smul.u32 2, %s22
        %p1381 = scmp.lt.s32.totalorder %s1380, 1
        %s1382 = scalar_select %p1381, %s1380, 1
        %s1383 = smul.addr %s1382, 8
        %s1384 = scalar_lea.vmem %s7, %s1383
        // Predicated region
        $region80: #{transformer_forward.30} parent=66 // pred_check
          %p1385 = pneg %p215
        $region81: #{transformer_forward.30} parent=66 // pred_check_branch
          %1387 = sbr.rel (%p1385) target = $region83
        $region82: #{transformer_forward.30} parent=66 // pred_region
          %s1388 = smul.u32 2, %s22
        $region83: #{transformer_forward.30} parent=66 // pred_fallthru
          _
        // Predicated region
        $region84: #{transformer_forward.30} parent=66 // pred_check
          %p1389 = pneg %p215
        $region85: #{transformer_forward.30} parent=66 // pred_check_branch
          %1391 = sbr.rel (%p1389) target = $region87
        $region86: #{transformer_forward.30} parent=66 // pred_region
          %s1392 = smul.u32 2, %s22
          %p1393 = scmp.lt.s32.totalorder %s1392, 1
          %s1394 = scalar_select %p1393, %s1392, 1
          %s1395 = smul.addr %s1394, 8
          %s1396 = scalar_lea.vmem %s7, %s1395
        $region87: #{transformer_forward.30} parent=66 // pred_fallthru
          _
      $region67: #{transformer_forward.30} parent=5 // pred_fallthru
        _
      %p1397 = scmp.le.s32.totalorder 2, %s13
      // Predicated region
      $region88: #{transformer_forward.30} parent=5 // pred_check
        %p1398 = pneg %p1397
      $region89: #{transformer_forward.30} parent=5 // pred_check_branch
        %1400 = sbr.rel (%p1398) target = $region91
      $region90: #{transformer_forward.30} parent=5 // pred_region
        %s1401 = ssub.s32 %s13, 2
      $region91: #{transformer_forward.30} parent=5 // pred_fallthru
        _
    $region6: #{transformer_forward.30} parent=1 // loop_footer
      %s17 = sadd.s32 1, %s13
    $region7: #{transformer_forward.30} parent=1 // loop_footer_branch
      %12 = sbr.rel target = $region3
    $region8: #{transformer_forward.30} parent=1 // loop_exit
      _

// kernel: transformer_forward.53
$region0: #{transformer_forward.53}
  #allocation0 [shape = 'u32[]', space=smem, size = 0x4, offset = 0x4, fixed_abs, tag = 'smem constant byte address 0x4 - core index']
  #allocation1 [shape = 'u32[72,128]{1,0:T(1,128)}', space=vmem, size = 0x9000, scoped, tag = 'internal scratch']
  #allocation2 [shape = 'f32[16,64]{1,0:T(8,128)}', space=vmem, size = 0x2000, scoped, tag = 'scratch operand']
  %s0 = inlined_call_operand.vmem [shape: f32[16,32], index: 0, kind: input, shape index: {}]
  %s1 = inlined_call_operand.vmem [shape: bf16[32,64], index: 1, kind: input, shape index: {}]
  %s2 = inlined_call_operand.vmem [shape: f32[1,64], index: 2, kind: input, shape index: {}]
  %s3 = inlined_call_operand.hbm [shape: f32[16,64], index: 3, kind: output, shape index: {}]
  %s4 = sld [smem:[#allocation0]]
  $region30: #{transformer_forward.53} parent=0
    _
  %s6 = ssub.s32 1, %s4
  %s7 = scalar_select 0, %s6, %s4
  $region1: #{transformer_forward.53} parent=0
    #allocation3 [shape = 'u8[8192]{0}', space=vmem, size = 0x2000, scoped, tag = 'output window, operand 0, single buffered']
    #allocation4 [shape = 's32[1]{0}', space=sflag, size = 0x4, scoped, tag = 'scoped memory for transformer_forward.53']
    %8 = vsyncpa [#allocation4], 0
    // Predicated region
    $region2: #{transformer_forward.53} parent=1 // pred_check
      _
    $region3: #{transformer_forward.53} parent=1 // pred_check_branch
      %10 = sbr.rel (0) target = $region5
    $region4: #{transformer_forward.53} parent=1 // pred_region
      _
    $region5: #{transformer_forward.53} parent=1 // pred_fallthru
      _
    // Predicated region
    $region6: #{transformer_forward.53} parent=1 // pred_check
      _
    $region7: #{transformer_forward.53} parent=1 // pred_check_branch
      %12 = sbr.rel (0) target = $region9
    $region8: #{transformer_forward.53} parent=1 // pred_region
      _
    $region9: #{transformer_forward.53} parent=1 // pred_fallthru
      _
    // Predicated region
    $region10: #{transformer_forward.53} parent=1 // pred_check
      _
    $region11: #{transformer_forward.53} parent=1 // pred_check_branch
      %14 = sbr.rel (0) target = $region13
    $region12: #{transformer_forward.53} parent=1 // pred_region
      _
    $region13: #{transformer_forward.53} parent=1 // pred_fallthru
      _
    %p16 = scmp.eq.s32.totalorder 0, 0
    // Predicated region
    $region14: #{transformer_forward.53} parent=1 // pred_check
      %p17 = pneg %p16
    $region15: #{transformer_forward.53} parent=1 // pred_check_branch
      %19 = sbr.rel (%p17) target = $region17
    $region16: #{transformer_forward.53} parent=1 // pred_region
      %vm20 = vcmask 523264
      %21 = vst.msk [vmem:[#allocation2] sm:$0xff] %vm20, 0.0
      %22 = vst.msk [vmem:[#allocation2 + $0x8] sm:$0xff] %vm20, 0.0
    $region17: #{transformer_forward.53} parent=1 // pred_fallthru
      _
    %v23 = vld [vmem:[#allocation2] sm:$0xff]
    %v24 = vld [vmem:[#allocation2 + $0x8] sm:$0xff]
    %v25 = vld [vmem:[%s0] sm:$0xff]
    %v26 = vld [vmem:[%s0 + $0x8] sm:$0xff]
    %v27 = vpack.c.bf16 %v26, %v25
    %v28 = vld [vmem:[%s1] sm:$0xf]
    %v29 = vld [vmem:[%s1 + $0x4] sm:$0xf]
    %v30 = vld [vmem:[%s1 + $0x8] sm:$0xf]
    %v31 = vld [vmem:[%s1 + $0xc] sm:$0xf]
    %v36 = vunpack.c.l.b16 %v28
    %v37 = vunpack.c.l.b16 %v29
    %v38 = vunpack.c.l.b16 %v30
    %v39 = vunpack.c.l.b16 %v31
    %v40 = vpack.c.b16 %v37, %v36
    %v41 = vpack.c.b16 %v39, %v38
    %vm44 = vcmask 261120
    %v46 = vsel %vm44, %v27, 0
    %48 = vmatpush.bf16.msra.mxu0 0
    %49 = vmatpush.bf16.msra.mxu0 0
    %50 = vmatpush.bf16.msra.mxu0 0
    %51 = vmatpush.bf16.msra.mxu0 0
    %52 = vmatpush.bf16.msra.mxu0 0
    %53 = vmatpush.bf16.msra.mxu0 0
    %54 = vmatpush.bf16.msra.mxu0 %v41
    %55 = vmatpush.bf16.msra.mxu0 %v40
    %56 = vmatmul.bf16.gmra.mxu0 %v46
    %v57 = vpop.f32.mrf.mxu0
    %v58 = vadd.f32 0.0, %v57
    %v59 = vpop.f32.mrf.mxu0
    %v60 = vadd.f32 0.0, %v59
    %61 = vdwg.mxu0
    %v62 = vadd.f32 %v23, %v58
    %v63 = vadd.f32 %v24, %v60
    %vm64 = vcmask 523264
    %65 = vst.msk [vmem:[#allocation2] sm:$0xff] %vm64, %v62
    %66 = vst.msk [vmem:[#allocation2 + $0x8] sm:$0xff] %vm64, %v63
    // Predicated region
    $region18: #{transformer_forward.53} parent=1 // pred_check
      %p67 = pneg %p16
    $region19: #{transformer_forward.53} parent=1 // pred_check_branch
      %69 = sbr.rel (%p67) target = $region21
    $region20: #{transformer_forward.53} parent=1 // pred_region
      %v70 = vld [vmem:[#allocation2] sm:$0xff]
      %v71 = vld [vmem:[#allocation2 + $0x8] sm:$0xff]
      %v72 = vld [vmem:[%s2] sm:$0x1]
      %v74 = vperm.slane %v72, 0
      %v76 = vadd.f32 %v70, %v74
      %v77 = vadd.f32 %v71, %v74
      %78 = vst.msk [vmem:[#allocation3] sm:$0xff] %vm64, %v76
      %79 = vst.msk [vmem:[#allocation3 + $0x8] sm:$0xff] %vm64, %v77
    $region21: #{transformer_forward.53} parent=1 // pred_fallthru
      _
    // Predicated region
    $region22: #{transformer_forward.53} parent=1 // pred_check
      _
    $region23: #{transformer_forward.53} parent=1 // pred_check_branch
      %81 = sbr.rel (0) target = $region25
    $region24: #{transformer_forward.53} parent=1 // pred_region
      %83 = vsyncadd [#allocation4], 0
      %s84 = sshll.u32 [#allocation3], 4
      %s85 = int_to_ptr.vmem [resolvable:$true] %s84
      %s86 = sshll.u32 %s3, 4
      %s87 = int_to_ptr.hbm [resolvable:$true] %s86
      %92 = dma.vmem_to_hbm [thread:$0]  %s85, 256, %s87, [#allocation4], 128, 128, 8
    $region25: #{transformer_forward.53} parent=1 // pred_fallthru
      _
    // Predicated region
    $region26: #{transformer_forward.53} parent=1 // pred_check
      _
    $region27: #{transformer_forward.53} parent=1 // pred_check_branch
      %94 = sbr.rel (0) target = $region29
    $region28: #{transformer_forward.53} parent=1 // pred_region
      %96 = dma.done [#allocation4], 256
    $region29: #{transformer_forward.53} parent=1 // pred_fallthru
      _
    %97 = vsyncpa [#allocation4], 1

</llo_original>
